<compile_context>
chip_gen: v5e
topology: v5e:2x2
jax: 0.10.0
libtpu: 0.0.40
codegen_flags: <defaults>
</compile_context>

<pallas_src>
import jax
import jax.numpy as jnp
from jax import lax
from jax.experimental import pallas as pl
from jax.experimental.pallas import tpu as pltpu


def _round_up(n, m):
    return ((n + m - 1) // m) * m


def _pad_gate_rows(w, h, h_pad):
    """(4*h, ...) -> (4*h_pad, ...), zero-padding each of the 4 PyTorch gate blocks (i,f,g,o)."""
    tail = w.shape[1:]
    w4 = w.reshape((4, h) + tail)
    pad = [(0, 0), (0, h_pad - h)] + [(0, 0)] * len(tail)
    return jnp.pad(w4, pad).reshape((4 * h_pad,) + tail)


def _vmem_capacity_bytes():
    try:
        return int(pltpu.get_tpu_info().vmem_capacity_bytes)
    except Exception:
        return 64 * 1024 * 1024   # conservative default (v7x per-core VMEM)


def encoder_forward(y, x, w_ih, w_hh, b_ih, b_hh, *,
                    time_block=256,
                    split_batch_across_cores=False,
                    out_dtype=None):
    """Pallas implementation of Encoder.forward.

    y: (B, T, input_size), x: (B, T, embed_size)
    w_ih: (4H, D), w_hh: (4H, H), b_ih/b_hh: (4H,)   (PyTorch nn.LSTM parameter shapes)
    Returns: outputs (B, T, H), (h_n (1, B, H), c_n (1, B, H)).

    split_batch_across_cores: set True only on multi-TensorCore chips (v7x) -- on v5e/v6e
    a batch split just serializes the recurrence twice.
    """
    B, T, in_size = y.shape
    _, _, embed_size = x.shape
    Dc = in_size + embed_size
    H = w_hh.shape[1]

    # ---- vreg geometry padding: 8 sublanes (f32), 128 lanes ----
    Bp = _round_up(B, 8)
    Hp = _round_up(H, 128)
    G = 4 * Hp

    # ---- batch tiling (only split where a second TensorCore exists) ----
    if split_batch_across_cores and Bp >= 16 and (Bp // 2) % 8 == 0:
        Bt = Bp // 2
    else:
        Bt = Bp
    nb = Bp // Bt

    out_dt = jnp.float32 if out_dtype is None else jnp.dtype(out_dtype)
    out_bytes = jnp.dtype(out_dt).itemsize

    # ---- VMEM budget -> maximum time-block length, then minimize padded steps ----
    vmem_cap = _vmem_capacity_bytes()
    budget = int(vmem_cap * 0.6)                 # headroom for compiler-internal scratch
    dcp = _round_up(Dc, 128)                     # lane padding of the streamed input block
    fixed = (2 * Hp * G * 2                      # W_hh bf16, double-buffered
             + 2 * _round_up(Dc, 16) * G * 2     # W_ih bf16, double-buffered
             + 2 * 8 * G * 4                     # bias block
             + 2 * Bt * Hp * 4                   # h/c state scratch
             + 2 * 2 * Bt * Hp * 4)              # hN/cN output blocks
    per_t = (2 * Bt * dcp * 2                    # raw-input block, double-buffered, bf16
             + 2 * Bt * Hp * out_bytes           # output block, double-buffered
             + Bt * G * 4)                       # in-kernel gates scratch (single-buffered)
    max_tt = max(8, ((budget - fixed) // per_t) // 8 * 8)
    tb = max(8, min(time_block, max_tt))

    nt = pl.cdiv(T, tb)
    Tt = _round_up(pl.cdiv(T, nt), 8)            # pad waste bounded by <8 + (Tt - T%Tt) steps
    nt = pl.cdiv(T, Tt)
    Tp = nt * Tt
    needs_mask = Tp != T
    seq_len = T

    footprint = fixed + per_t * Tt
    vmem_limit = int(min(vmem_cap, max(2 * footprint, 32 * 1024 * 1024)))

    if Tt <= 16:
        unroll = True
    elif G >= 4096:
        unroll = 4        # keep f32 gate intermediates inside the 64-vreg file (no spills)
    else:
        unroll = 8

    # ---- zero-padded, gate-blocked parameters (padded lanes stay exactly zero) ----
    wih_p = _pad_gate_rows(w_ih.astype(jnp.float32), H, Hp)            # (G, Dc)
    whh_p = _pad_gate_rows(w_hh.astype(jnp.float32), H, Hp)            # (G, H)
    whh_p = jnp.pad(whh_p, ((0, 0), (0, Hp - H)))                      # (G, Hp)
    bias_p = _pad_gate_rows((b_ih + b_hh).astype(jnp.float32), H, Hp)  # (G,)

    wih_t = wih_p.T.astype(jnp.bfloat16)                               # (Dc, G)
    whh_t = whh_p.T.astype(jnp.bfloat16)                               # (Hp, G)
    bias2 = bias_p.reshape(1, G)                                       # (1, G) f32

    # ---- raw inputs, time-major, bf16 (only D*2 bytes/token streamed from HBM) ----
    inp = jnp.concatenate((y, x), axis=2).astype(jnp.bfloat16)         # (B, T, Dc)
    inp_tm = jnp.transpose(inp, (1, 0, 2))                             # (T, B, Dc)
    inp_tm = jnp.pad(inp_tm, ((0, Tp - T), (0, Bp - B), (0, 0)))       # (Tp, Bp, Dc)

    def kernel(inp_ref, wih_ref, bias_ref, whh_ref,
               out_ref, hN_ref, cN_ref,
               gx_scr, h_scr, c_scr):
        t = pl.program_id(1)

        @pl.when(t == 0)
        def _init():
            h_scr[...] = jnp.zeros_like(h_scr)
            c_scr[...] = jnp.zeros_like(c_scr)

        # Hoisted per-block input projection: one big MXU matmul (bf16 operands, f32 accum)
        # over all Tt timesteps; only the serial h @ W_hh remains inside the loop.
        inp2 = inp_ref[...].reshape(Tt * Bt, Dc)
        gx = jnp.dot(inp2, wih_ref[...], preferred_element_type=jnp.float32)
        gx_scr[...] = (gx + bias_ref[...]).reshape(Tt, Bt, G)

        def make_step(masked):
            def step(s, carry):
                h, c = carry
                # Serial critical path: one small MXU matmul + f32 gate math per step.
                gates = gx_scr[s] + jnp.dot(
                    h.astype(jnp.bfloat16), whh_ref[...],
                    preferred_element_type=jnp.float32)                # (Bt, G) f32, dense
                i_g = jax.nn.sigmoid(gates[:, 0 * Hp:1 * Hp])
                f_g = jax.nn.sigmoid(gates[:, 1 * Hp:2 * Hp])
                g_g = jnp.tanh(gates[:, 2 * Hp:3 * Hp])
                o_g = jax.nn.sigmoid(gates[:, 3 * Hp:4 * Hp])
                c_new = f_g * c + i_g * g_g
                h_new = o_g * jnp.tanh(c_new)
                out_ref[s] = h_new.astype(out_ref.dtype)               # dense (Bt, Hp) store
                if masked:
                    # Only the last time block (and only when T % Tt != 0) pays this:
                    # padded steps must not advance the carried state.
                    valid = (t * Tt + s) < seq_len
                    h_new = jnp.where(valid, h_new, h)
                    c_new = jnp.where(valid, c_new, c)
                return h_new, c_new
            return step

        def run_block(masked, capture):
            h_last, c_last = lax.fori_loop(0, Tt, make_step(masked),
                                           (h_scr[...], c_scr[...]), unroll=unroll)
            h_scr[...] = h_last
            c_scr[...] = c_last
            if capture:
                hN_ref[...] = h_last
                cN_ref[...] = c_last

        if nt > 1:
            @pl.when(t < nt - 1)
            def _body():
                run_block(masked=False, capture=False)

        @pl.when(t == nt - 1)
        def _last():
            run_block(masked=needs_mask, capture=True)

    out_tm, hN, cN = pl.pallas_call(
        kernel,
        out_shape=(
            jax.ShapeDtypeStruct((Tp, Bp, Hp), out_dt),
            jax.ShapeDtypeStruct((Bp, Hp), jnp.float32),
            jax.ShapeDtypeStruct((Bp, Hp), jnp.float32),
        ),
        grid_spec=pltpu.PrefetchScalarGridSpec(
            num_scalar_prefetch=0,
            grid=(nb, nt),
            in_specs=[
                pl.BlockSpec((Tt, Bt, Dc), lambda b, t: (t, b, 0)),    # raw bf16 inputs
                pl.BlockSpec((Dc, G), lambda b, t: (0, 0)),            # W_ih^T (constant)
                pl.BlockSpec((1, G), lambda b, t: (0, 0)),             # bias (constant)
                # Constant-index W_hh^T block.  For very large Hp on v7x (64 MiB VMEM) it can
                # be single-buffered with pipeline_mode=pl.Buffered(1); the fused projection
                # already keeps the default footprint within budget here.
                pl.BlockSpec((Hp, G), lambda b, t: (0, 0)),
            ],
            out_specs=[
                pl.BlockSpec((Tt, Bt, Hp), lambda b, t: (t, b, 0)),    # time-major outputs
                pl.BlockSpec((Bt, Hp), lambda b, t: (b, 0)),           # h_n
                pl.BlockSpec((Bt, Hp), lambda b, t: (b, 0)),           # c_n
            ],
            scratch_shapes=[
                pltpu.VMEM((Tt, Bt, G), jnp.float32),  # per-block input-projection gates
                pltpu.VMEM((Bt, Hp), jnp.float32),     # h state (persists across time blocks)
                pltpu.VMEM((Bt, Hp), jnp.float32),     # c state
            ],
        ),
        compiler_params=pltpu.CompilerParams(
            dimension_semantics=("parallel", "arbitrary"),
            vmem_limit_bytes=vmem_limit),
    )(inp_tm, wih_t, bias2, whh_t)

    outputs = jnp.transpose(out_tm[:T, :B, :H], (1, 0, 2))             # (B, T, H)
    h_n = hN[:B, :H][None]
    c_n = cN[:B, :H][None]
    return outputs, (h_n, c_n)


def _reference_lstm(y, x, w_ih, w_hh, b_ih, b_hh, matmul_dtype=jnp.float32):
    """Pure-JAX reference with PyTorch LSTM semantics.

    matmul_dtype=float32  -> exact PyTorch f32 semantics.
    matmul_dtype=bfloat16 -> same MXU precision policy as the Pallas kernel.
    """
    inp = jnp.concatenate((y, x), axis=2).astype(jnp.float32)  # (B, T, D)
    B, T, _ = inp.shape
    H = w_hh.shape[1]
    bias = (b_ih + b_hh).astype(jnp.float32)
    wih_t = jnp.transpose(w_ih).astype(matmul_dtype)           # (D, 4H)
    whh_t = jnp.transpose(w_hh).astype(matmul_dtype)           # (H, 4H)

    def step(carry, x_t):
        h, c = carry
        gates = (jnp.dot(x_t.astype(matmul_dtype), wih_t,
                         preferred_element_type=jnp.float32)
                 + jnp.dot(h.astype(matmul_dtype), whh_t,
                           preferred_element_type=jnp.float32)
                 + bias)
        i = jax.nn.sigmoid(gates[:, 0 * H:1 * H])
        f = jax.nn.sigmoid(gates[:, 1 * H:2 * H])
        g = jnp.tanh(gates[:, 2 * H:3 * H])
        o = jax.nn.sigmoid(gates[:, 3 * H:4 * H])
        c_new = f * c + i * g
        h_new = o * jnp.tanh(c_new)
        return (h_new, c_new), h_new

    h0 = jnp.zeros((B, H), jnp.float32)
    c0 = jnp.zeros((B, H), jnp.float32)
    (h_n, c_n), outs = lax.scan(step, (h0, c0), jnp.transpose(inp, (1, 0, 2)))
    return jnp.transpose(outs, (1, 0, 2)), (h_n[None], c_n[None])


if __name__ == "__main__":
    # Small shapes consistent with the module's forward.
    batch, seq_len = 2, 8
    input_size, embed_size, hidden_size = 4, 4, 32
    D = input_size + embed_size

    key = jax.random.PRNGKey(0)
    k_y, k_x, k_wih, k_whh, k_bih, k_bhh = jax.random.split(key, 6)

    y = jax.random.normal(k_y, (batch, seq_len, input_size), jnp.float32)
    x = jax.random.normal(k_x, (batch, seq_len, embed_size), jnp.float32)

    # PyTorch LSTM init: U(-1/sqrt(H), 1/sqrt(H)).
    bound = 1.0 / jnp.sqrt(jnp.float32(hidden_size))
    w_ih = jax.random.uniform(k_wih, (4 * hidden_size, D), jnp.float32, -bound, bound)
    w_hh = jax.random.uniform(k_whh, (4 * hidden_size, hidden_size), jnp.float32, -bound, bound)
    b_ih = jax.random.uniform(k_bih, (4 * hidden_size,), jnp.float32, -bound, bound)
    b_hh = jax.random.uniform(k_bhh, (4 * hidden_size,), jnp.float32, -bound, bound)

    fwd = jax.jit(encoder_forward)
    outputs, (h_n, c_n) = fwd(y, x, w_ih, w_hh, b_ih, b_hh)
    jax.block_until_ready((outputs, h_n, c_n))

    assert outputs.shape == (batch, seq_len, hidden_size)
    assert h_n.shape == (1, batch, hidden_size)
    assert c_n.shape == (1, batch, hidden_size)

    # Tight check vs a reference using the same bf16-operand / f32-accumulate matmul policy.
    ref_out, (ref_h, ref_c) = _reference_lstm(y, x, w_ih, w_hh, b_ih, b_hh,
                                              matmul_dtype=jnp.bfloat16)
    assert jnp.allclose(outputs, ref_out, atol=1e-3, rtol=1e-3)
    assert jnp.allclose(h_n, ref_h, atol=1e-3, rtol=1e-3)
    assert jnp.allclose(c_n, ref_c, atol=1e-3, rtol=1e-3)

    # Looser check vs full-f32 PyTorch semantics (difference is only bf16 MXU operands).
    f32_out, (f32_h, f32_c) = _reference_lstm(y, x, w_ih, w_hh, b_ih, b_hh,
                                              matmul_dtype=jnp.float32)
    assert jnp.allclose(outputs, f32_out, atol=2e-2, rtol=2e-2)
    assert jnp.allclose(h_n, f32_h, atol=2e-2, rtol=2e-2)
    assert jnp.allclose(c_n, f32_c, atol=2e-2, rtol=2e-2)

    print("KERNEL_OK")
</pallas_src>

<mosaic_0001>
module attributes {stable_mosaic.version = 11 : i64} {
  func.func @kernel(%arg0: i32, %arg1: i32, %arg2: memref<8x8x8xbf16, #tpu.memory_space<vmem>>, %arg3: memref<8x512xbf16, #tpu.memory_space<vmem>>, %arg4: memref<1x512xf32, #tpu.memory_space<vmem>>, %arg5: memref<128x512xbf16, #tpu.memory_space<vmem>>, %arg6: memref<8x8x128xf32, #tpu.memory_space<vmem>>, %arg7: memref<8x128xf32, #tpu.memory_space<vmem>>, %arg8: memref<8x128xf32, #tpu.memory_space<vmem>>, %arg9: memref<8x8x512xf32, #tpu.memory_space<vmem>>, %arg10: memref<8x128xf32, #tpu.memory_space<vmem>>, %arg11: memref<8x128xf32, #tpu.memory_space<vmem>>) attributes {dimension_semantics = [#tpu.dimension_semantics<parallel>, #tpu.dimension_semantics<arbitrary>], iteration_bounds = array<i64: 1, 1>, scalar_prefetch = 0 : i64, scratch_operands = 3 : i64, tpu.core_type = #tpu.core_type<tc>, window_params = [{transform_indices = @transform_0, window_bounds = array<i64: 8, 8, 8>}, {pipeline_mode = #tpu.pipeline_mode<synchronous>, transform_indices = @transform_1, window_bounds = array<i64: 8, 512>}, {pipeline_mode = #tpu.pipeline_mode<synchronous>, transform_indices = @transform_2, window_bounds = array<i64: 1, 512>}, {pipeline_mode = #tpu.pipeline_mode<synchronous>, transform_indices = @transform_3, window_bounds = array<i64: 128, 512>}, {transform_indices = @transform_4, window_bounds = array<i64: 8, 8, 128>}, {transform_indices = @transform_5, window_bounds = array<i64: 8, 128>}, {transform_indices = @transform_6, window_bounds = array<i64: 8, 128>}]} {
    %c0_i32 = arith.constant 0 : i32
    %0 = arith.cmpi eq, %arg1, %c0_i32 : i32
    %1 = arith.extui %0 : i1 to i32
    %c0_i32_0 = arith.constant 0 : i32
    %2 = arith.cmpi ne, %1, %c0_i32_0 : i32
    scf.if %2 {
      %cst_12 = arith.constant 0.000000e+00 : f32
      %15 = vector.broadcast %cst_12 : f32 to vector<8x128xf32>
      %c0_13 = arith.constant 0 : index
      %c0_14 = arith.constant 0 : index
      %16 = vector.load %arg10[%c0_13, %c0_14] : memref<8x128xf32, #tpu.memory_space<vmem>>, vector<8x128xf32>
      tpu.vector_store %arg10[%c0_13, %c0_14], %15 {strides = array<i32>} : memref<8x128xf32, #tpu.memory_space<vmem>>, vector<8x128xf32>,
      %cst_15 = arith.constant 0.000000e+00 : f32
      %17 = vector.broadcast %cst_15 : f32 to vector<8x128xf32>
      %c0_16 = arith.constant 0 : index
      %c0_17 = arith.constant 0 : index
      %18 = vector.load %arg11[%c0_16, %c0_17] : memref<8x128xf32, #tpu.memory_space<vmem>>, vector<8x128xf32>
      tpu.vector_store %arg11[%c0_16, %c0_17], %17 {strides = array<i32>} : memref<8x128xf32, #tpu.memory_space<vmem>>, vector<8x128xf32>,
    } else {
    }
    %c0 = arith.constant 0 : index
    %c0_1 = arith.constant 0 : index
    %c0_2 = arith.constant 0 : index
    %3 = vector.load %arg2[%c0, %c0_1, %c0_2] : memref<8x8x8xbf16, #tpu.memory_space<vmem>>, vector<8x8x8xbf16>
    %4 = vector.shape_cast %3 : vector<8x8x8xbf16> to vector<64x8xbf16>
    %c0_3 = arith.constant 0 : index
    %c0_4 = arith.constant 0 : index
    %5 = vector.load %arg3[%c0_3, %c0_4] : memref<8x512xbf16, #tpu.memory_space<vmem>>, vector<8x512xbf16>
    %cst = arith.constant dense<0.000000e+00> : vector<64x512xf32>
    %6 = tpu.matmul %4, %5, %cst {dimension_numbers = #tpu.dot_dimension_numbers<[1], [0], [0], [1], [0, 0, 1, 1], [], []>} : vector<64x8xbf16>, vector<8x512xbf16>, vector<64x512xf32> -> vector<64x512xf32>
    %c0_5 = arith.constant 0 : index
    %c0_6 = arith.constant 0 : index
    %7 = vector.load %arg4[%c0_5, %c0_6] : memref<1x512xf32, #tpu.memory_space<vmem>>, vector<1x512xf32>
    %8 = vector.broadcast %7 : vector<1x512xf32> to vector<64x512xf32>
    %9 = arith.addf %6, %8 : vector<64x512xf32>
    %10 = vector.shape_cast %9 : vector<64x512xf32> to vector<8x8x512xf32>
    %c0_7 = arith.constant 0 : index
    %c0_8 = arith.constant 0 : index
    %c0_9 = arith.constant 0 : index
    %11 = vector.load %arg9[%c0_7, %c0_8, %c0_9] : memref<8x8x512xf32, #tpu.memory_space<vmem>>, vector<8x8x512xf32>
    tpu.vector_store %arg9[%c0_7, %c0_8, %c0_9], %10 {strides = array<i32>} : memref<8x8x512xf32, #tpu.memory_space<vmem>>, vector<8x8x512xf32>,
    %c0_i32_10 = arith.constant 0 : i32
    %12 = arith.cmpi eq, %arg1, %c0_i32_10 : i32
    %13 = arith.extui %12 : i1 to i32
    %c0_i32_11 = arith.constant 0 : i32
    %14 = arith.cmpi ne, %13, %c0_i32_11 : i32
    scf.if %14 {
      %c0_12 = arith.constant 0 : index
      %c0_13 = arith.constant 0 : index
      %15 = vector.load %arg10[%c0_12, %c0_13] : memref<8x128xf32, #tpu.memory_space<vmem>>, vector<8x128xf32>
      %c0_14 = arith.constant 0 : index
      %c0_15 = arith.constant 0 : index
      %16 = vector.load %arg11[%c0_14, %c0_15] : memref<8x128xf32, #tpu.memory_space<vmem>>, vector<8x128xf32>
      %c0_i32_16 = arith.constant 0 : i32
      %17 = arith.index_cast %c0_i32_16 : i32 to index
      %c0_17 = arith.constant 0 : index
      %c0_18 = arith.constant 0 : index
      %18 = vector.load %arg9[%17, %c0_17, %c0_18] : memref<8x8x512xf32, #tpu.memory_space<vmem>>, vector<1x8x512xf32>
      %19 = vector.shape_cast %18 : vector<1x8x512xf32> to vector<8x512xf32>
      %20 = arith.truncf %15 : vector<8x128xf32> to vector<8x128xbf16>
      %c0_19 = arith.constant 0 : index
      %c0_20 = arith.constant 0 : index
      %21 = vector.load %arg5[%c0_19, %c0_20] : memref<128x512xbf16, #tpu.memory_space<vmem>>, vector<128x512xbf16>
      %cst_21 = arith.constant dense<0.000000e+00> : vector<8x512xf32>
      %22 = tpu.matmul %20, %21, %cst_21 {dimension_numbers = #tpu.dot_dimension_numbers<[1], [0], [0], [1], [0, 0, 1, 1], [], []>} : vector<8x128xbf16>, vector<128x512xbf16>, vector<8x512xf32> -> vector<8x512xf32>
      %23 = arith.addf %19, %22 : vector<8x512xf32>
      %24 = vector.extract_strided_slice %23 {offsets = [0, 0], sizes = [8, 128], strides = [1, 1]} : vector<8x512xf32> to vector<8x128xf32>
      %25 = arith.negf %24 : vector<8x128xf32>
      %26 = math.exp %25 : vector<8x128xf32>
      %cst_22 = arith.constant 1.000000e+00 : f32
      %27 = vector.broadcast %cst_22 : f32 to vector<8x128xf32>
      %28 = arith.addf %27, %26 : vector<8x128xf32>
      %29 = arith.divf %27, %28 : vector<8x128xf32>
      %30 = vector.extract_strided_slice %23 {offsets = [0, 128], sizes = [8, 128], strides = [1, 1]} : vector<8x512xf32> to vector<8x128xf32>
      %31 = arith.negf %30 : vector<8x128xf32>
      %32 = math.exp %31 : vector<8x128xf32>
      %cst_23 = arith.constant 1.000000e+00 : f32
      %33 = vector.broadcast %cst_23 : f32 to vector<8x128xf32>
      %34 = arith.addf %33, %32 : vector<8x128xf32>
      %35 = arith.divf %33, %34 : vector<8x128xf32>
      %36 = vector.extract_strided_slice %23 {offsets = [0, 256], sizes = [8, 128], strides = [1, 1]} : vector<8x512xf32> to vector<8x128xf32>
      %37 = math.tanh %36 : vector<8x128xf32>
      %38 = vector.extract_strided_slice %23 {offsets = [0, 384], sizes = [8, 128], strides = [1, 1]} : vector<8x512xf32> to vector<8x128xf32>
      %39 = arith.negf %38 : vector<8x128xf32>
      %40 = math.exp %39 : vector<8x128xf32>
      %cst_24 = arith.constant 1.000000e+00 : f32
      %41 = vector.broadcast %cst_24 : f32 to vector<8x128xf32>
      %42 = arith.addf %41, %40 : vector<8x128xf32>
      %43 = arith.divf %41, %42 : vector<8x128xf32>
      %44 = arith.mulf %35, %16 : vector<8x128xf32>
      %45 = arith.mulf %29, %37 : vector<8x128xf32>
      %46 = arith.addf %44, %45 : vector<8x128xf32>
      %47 = math.tanh %46 : vector<8x128xf32>
      %48 = arith.mulf %43, %47 : vector<8x128xf32>
      %49 = arith.index_cast %c0_i32_16 : i32 to index
      %c0_25 = arith.constant 0 : index
      %c0_26 = arith.constant 0 : index
      %50 = vector.load %arg6[%49, %c0_25, %c0_26] : memref<8x8x128xf32, #tpu.memory_space<vmem>>, vector<1x8x128xf32>
      %51 = vector.shape_cast %50 : vector<1x8x128xf32> to vector<8x128xf32>
      %52 = vector.shape_cast %48 : vector<8x128xf32> to vector<1x8x128xf32>
      tpu.vector_store %arg6[%49, %c0_25, %c0_26], %52 {strides = array<i32>} : memref<8x8x128xf32, #tpu.memory_space<vmem>>, vector<1x8x128xf32>,
      %c1_i32 = arith.constant 1 : i32
      %53 = arith.index_cast %c1_i32 : i32 to index
      %c0_27 = arith.constant 0 : index
      %c0_28 = arith.constant 0 : index
      %54 = vector.load %arg9[%53, %c0_27, %c0_28] : memref<8x8x512xf32, #tpu.memory_space<vmem>>, vector<1x8x512xf32>
      %55 = vector.shape_cast %54 : vector<1x8x512xf32> to vector<8x512xf32>
      %56 = arith.truncf %48 : vector<8x128xf32> to vector<8x128xbf16>
      %c0_29 = arith.constant 0 : index
      %c0_30 = arith.constant 0 : index
      %57 = vector.load %arg5[%c0_29, %c0_30] : memref<128x512xbf16, #tpu.memory_space<vmem>>, vector<128x512xbf16>
      %cst_31 = arith.constant dense<0.000000e+00> : vector<8x512xf32>
      %58 = tpu.matmul %56, %57, %cst_31 {dimension_numbers = #tpu.dot_dimension_numbers<[1], [0], [0], [1], [0, 0, 1, 1], [], []>} : vector<8x128xbf16>, vector<128x512xbf16>, vector<8x512xf32> -> vector<8x512xf32>
      %59 = arith.addf %55, %58 : vector<8x512xf32>
      %60 = vector.extract_strided_slice %59 {offsets = [0, 0], sizes = [8, 128], strides = [1, 1]} : vector<8x512xf32> to vector<8x128xf32>
      %61 = arith.negf %60 : vector<8x128xf32>
      %62 = math.exp %61 : vector<8x128xf32>
      %cst_32 = arith.constant 1.000000e+00 : f32
      %63 = vector.broadcast %cst_32 : f32 to vector<8x128xf32>
      %64 = arith.addf %63, %62 : vector<8x128xf32>
      %65 = arith.divf %63, %64 : vector<8x128xf32>
      %66 = vector.extract_strided_slice %59 {offsets = [0, 128], sizes = [8, 128], strides = [1, 1]} : vector<8x512xf32> to vector<8x128xf32>
      %67 = arith.negf %66 : vector<8x128xf32>
      %68 = math.exp %67 : vector<8x128xf32>
      %cst_33 = arith.constant 1.000000e+00 : f32
      %69 = vector.broadcast %cst_33 : f32 to vector<8x128xf32>
      %70 = arith.addf %69, %68 : vector<8x128xf32>
      %71 = arith.divf %69, %70 : vector<8x128xf32>
      %72 = vector.extract_strided_slice %59 {offsets = [0, 256], sizes = [8, 128], strides = [1, 1]} : vector<8x512xf32> to vector<8x128xf32>
      %73 = math.tanh %72 : vector<8x128xf32>
      %74 = vector.extract_strided_slice %59 {offsets = [0, 384], sizes = [8, 128], strides = [1, 1]} : vector<8x512xf32> to vector<8x128xf32>
      %75 = arith.negf %74 : vector<8x128xf32>
      %76 = math.exp %75 : vector<8x128xf32>
      %cst_34 = arith.constant 1.000000e+00 : f32
      %77 = vector.broadcast %cst_34 : f32 to vector<8x128xf32>
      %78 = arith.addf %77, %76 : vector<8x128xf32>
      %79 = arith.divf %77, %78 : vector<8x128xf32>
      %80 = arith.mulf %71, %46 : vector<8x128xf32>
      %81 = arith.mulf %65, %73 : vector<8x128xf32>
      %82 = arith.addf %80, %81 : vector<8x128xf32>
      %83 = math.tanh %82 : vector<8x128xf32>
      %84 = arith.mulf %79, %83 : vector<8x128xf32>
      %85 = arith.index_cast %c1_i32 : i32 to index
      %c0_35 = arith.constant 0 : index
      %c0_36 = arith.constant 0 : index
      %86 = vector.load %arg6[%85, %c0_35, %c0_36] : memref<8x8x128xf32, #tpu.memory_space<vmem>>, vector<1x8x128xf32>
      %87 = vector.shape_cast %86 : vector<1x8x128xf32> to vector<8x128xf32>
      %88 = vector.shape_cast %84 : vector<8x128xf32> to vector<1x8x128xf32>
      tpu.vector_store %arg6[%85, %c0_35, %c0_36], %88 {strides = array<i32>} : memref<8x8x128xf32, #tpu.memory_space<vmem>>, vector<1x8x128xf32>,
      %c2_i32 = arith.constant 2 : i32
      %89 = arith.index_cast %c2_i32 : i32 to index
      %c0_37 = arith.constant 0 : index
      %c0_38 = arith.constant 0 : index
      %90 = vector.load %arg9[%89, %c0_37, %c0_38] : memref<8x8x512xf32, #tpu.memory_space<vmem>>, vector<1x8x512xf32>
      %91 = vector.shape_cast %90 : vector<1x8x512xf32> to vector<8x512xf32>
      %92 = arith.truncf %84 : vector<8x128xf32> to vector<8x128xbf16>
      %c0_39 = arith.constant 0 : index
      %c0_40 = arith.constant 0 : index
      %93 = vector.load %arg5[%c0_39, %c0_40] : memref<128x512xbf16, #tpu.memory_space<vmem>>, vector<128x512xbf16>
      %cst_41 = arith.constant dense<0.000000e+00> : vector<8x512xf32>
      %94 = tpu.matmul %92, %93, %cst_41 {dimension_numbers = #tpu.dot_dimension_numbers<[1], [0], [0], [1], [0, 0, 1, 1], [], []>} : vector<8x128xbf16>, vector<128x512xbf16>, vector<8x512xf32> -> vector<8x512xf32>
      %95 = arith.addf %91, %94 : vector<8x512xf32>
      %96 = vector.extract_strided_slice %95 {offsets = [0, 0], sizes = [8, 128], strides = [1, 1]} : vector<8x512xf32> to vector<8x128xf32>
      %97 = arith.negf %96 : vector<8x128xf32>
      %98 = math.exp %97 : vector<8x128xf32>
      %cst_42 = arith.constant 1.000000e+00 : f32
      %99 = vector.broadcast %cst_42 : f32 to vector<8x128xf32>
      %100 = arith.addf %99, %98 : vector<8x128xf32>
      %101 = arith.divf %99, %100 : vector<8x128xf32>
      %102 = vector.extract_strided_slice %95 {offsets = [0, 128], sizes = [8, 128], strides = [1, 1]} : vector<8x512xf32> to vector<8x128xf32>
      %103 = arith.negf %102 : vector<8x128xf32>
      %104 = math.exp %103 : vector<8x128xf32>
      %cst_43 = arith.constant 1.000000e+00 : f32
      %105 = vector.broadcast %cst_43 : f32 to vector<8x128xf32>
      %106 = arith.addf %105, %104 : vector<8x128xf32>
      %107 = arith.divf %105, %106 : vector<8x128xf32>
      %108 = vector.extract_strided_slice %95 {offsets = [0, 256], sizes = [8, 128], strides = [1, 1]} : vector<8x512xf32> to vector<8x128xf32>
      %109 = math.tanh %108 : vector<8x128xf32>
      %110 = vector.extract_strided_slice %95 {offsets = [0, 384], sizes = [8, 128], strides = [1, 1]} : vector<8x512xf32> to vector<8x128xf32>
      %111 = arith.negf %110 : vector<8x128xf32>
      %112 = math.exp %111 : vector<8x128xf32>
      %cst_44 = arith.constant 1.000000e+00 : f32
      %113 = vector.broadcast %cst_44 : f32 to vector<8x128xf32>
      %114 = arith.addf %113, %112 : vector<8x128xf32>
      %115 = arith.divf %113, %114 : vector<8x128xf32>
      %116 = arith.mulf %107, %82 : vector<8x128xf32>
      %117 = arith.mulf %101, %109 : vector<8x128xf32>
      %118 = arith.addf %116, %117 : vector<8x128xf32>
      %119 = math.tanh %118 : vector<8x128xf32>
      %120 = arith.mulf %115, %119 : vector<8x128xf32>
      %121 = arith.index_cast %c2_i32 : i32 to index
      %c0_45 = arith.constant 0 : index
      %c0_46 = arith.constant 0 : index
      %122 = vector.load %arg6[%121, %c0_45, %c0_46] : memref<8x8x128xf32, #tpu.memory_space<vmem>>, vector<1x8x128xf32>
      %123 = vector.shape_cast %122 : vector<1x8x128xf32> to vector<8x128xf32>
      %124 = vector.shape_cast %120 : vector<8x128xf32> to vector<1x8x128xf32>
      tpu.vector_store %arg6[%121, %c0_45, %c0_46], %124 {strides = array<i32>} : memref<8x8x128xf32, #tpu.memory_space<vmem>>, vector<1x8x128xf32>,
      %c3_i32 = arith.constant 3 : i32
      %125 = arith.index_cast %c3_i32 : i32 to index
      %c0_47 = arith.constant 0 : index
      %c0_48 = arith.constant 0 : index
      %126 = vector.load %arg9[%125, %c0_47, %c0_48] : memref<8x8x512xf32, #tpu.memory_space<vmem>>, vector<1x8x512xf32>
      %127 = vector.shape_cast %126 : vector<1x8x512xf32> to vector<8x512xf32>
      %128 = arith.truncf %120 : vector<8x128xf32> to vector<8x128xbf16>
      %c0_49 = arith.constant 0 : index
      %c0_50 = arith.constant 0 : index
      %129 = vector.load %arg5[%c0_49, %c0_50] : memref<128x512xbf16, #tpu.memory_space<vmem>>, vector<128x512xbf16>
      %cst_51 = arith.constant dense<0.000000e+00> : vector<8x512xf32>
      %130 = tpu.matmul %128, %129, %cst_51 {dimension_numbers = #tpu.dot_dimension_numbers<[1], [0], [0], [1], [0, 0, 1, 1], [], []>} : vector<8x128xbf16>, vector<128x512xbf16>, vector<8x512xf32> -> vector<8x512xf32>
      %131 = arith.addf %127, %130 : vector<8x512xf32>
      %132 = vector.extract_strided_slice %131 {offsets = [0, 0], sizes = [8, 128], strides = [1, 1]} : vector<8x512xf32> to vector<8x128xf32>
      %133 = arith.negf %132 : vector<8x128xf32>
      %134 = math.exp %133 : vector<8x128xf32>
      %cst_52 = arith.constant 1.000000e+00 : f32
      %135 = vector.broadcast %cst_52 : f32 to vector<8x128xf32>
      %136 = arith.addf %135, %134 : vector<8x128xf32>
      %137 = arith.divf %135, %136 : vector<8x128xf32>
      %138 = vector.extract_strided_slice %131 {offsets = [0, 128], sizes = [8, 128], strides = [1, 1]} : vector<8x512xf32> to vector<8x128xf32>
      %139 = arith.negf %138 : vector<8x128xf32>
      %140 = math.exp %139 : vector<8x128xf32>
      %cst_53 = arith.constant 1.000000e+00 : f32
      %141 = vector.broadcast %cst_53 : f32 to vector<8x128xf32>
      %142 = arith.addf %141, %140 : vector<8x128xf32>
      %143 = arith.divf %141, %142 : vector<8x128xf32>
      %144 = vector.extract_strided_slice %131 {offsets = [0, 256], sizes = [8, 128], strides = [1, 1]} : vector<8x512xf32> to vector<8x128xf32>
      %145 = math.tanh %144 : vector<8x128xf32>
      %146 = vector.extract_strided_slice %131 {offsets = [0, 384], sizes = [8, 128], strides = [1, 1]} : vector<8x512xf32> to vector<8x128xf32>
      %147 = arith.negf %146 : vector<8x128xf32>
      %148 = math.exp %147 : vector<8x128xf32>
      %cst_54 = arith.constant 1.000000e+00 : f32
      %149 = vector.broadcast %cst_54 : f32 to vector<8x128xf32>
      %150 = arith.addf %149, %148 : vector<8x128xf32>
      %151 = arith.divf %149, %150 : vector<8x128xf32>
      %152 = arith.mulf %143, %118 : vector<8x128xf32>
      %153 = arith.mulf %137, %145 : vector<8x128xf32>
      %154 = arith.addf %152, %153 : vector<8x128xf32>
      %155 = math.tanh %154 : vector<8x128xf32>
      %156 = arith.mulf %151, %155 : vector<8x128xf32>
      %157 = arith.index_cast %c3_i32 : i32 to index
      %c0_55 = arith.constant 0 : index
      %c0_56 = arith.constant 0 : index
      %158 = vector.load %arg6[%157, %c0_55, %c0_56] : memref<8x8x128xf32, #tpu.memory_space<vmem>>, vector<1x8x128xf32>
      %159 = vector.shape_cast %158 : vector<1x8x128xf32> to vector<8x128xf32>
      %160 = vector.shape_cast %156 : vector<8x128xf32> to vector<1x8x128xf32>
      tpu.vector_store %arg6[%157, %c0_55, %c0_56], %160 {strides = array<i32>} : memref<8x8x128xf32, #tpu.memory_space<vmem>>, vector<1x8x128xf32>,
      %c4_i32 = arith.constant 4 : i32
      %161 = arith.index_cast %c4_i32 : i32 to index
      %c0_57 = arith.constant 0 : index
      %c0_58 = arith.constant 0 : index
      %162 = vector.load %arg9[%161, %c0_57, %c0_58] : memref<8x8x512xf32, #tpu.memory_space<vmem>>, vector<1x8x512xf32>
      %163 = vector.shape_cast %162 : vector<1x8x512xf32> to vector<8x512xf32>
      %164 = arith.truncf %156 : vector<8x128xf32> to vector<8x128xbf16>
      %c0_59 = arith.constant 0 : index
      %c0_60 = arith.constant 0 : index
      %165 = vector.load %arg5[%c0_59, %c0_60] : memref<128x512xbf16, #tpu.memory_space<vmem>>, vector<128x512xbf16>
      %cst_61 = arith.constant dense<0.000000e+00> : vector<8x512xf32>
      %166 = tpu.matmul %164, %165, %cst_61 {dimension_numbers = #tpu.dot_dimension_numbers<[1], [0], [0], [1], [0, 0, 1, 1], [], []>} : vector<8x128xbf16>, vector<128x512xbf16>, vector<8x512xf32> -> vector<8x512xf32>
      %167 = arith.addf %163, %166 : vector<8x512xf32>
      %168 = vector.extract_strided_slice %167 {offsets = [0, 0], sizes = [8, 128], strides = [1, 1]} : vector<8x512xf32> to vector<8x128xf32>
      %169 = arith.negf %168 : vector<8x128xf32>
      %170 = math.exp %169 : vector<8x128xf32>
      %cst_62 = arith.constant 1.000000e+00 : f32
      %171 = vector.broadcast %cst_62 : f32 to vector<8x128xf32>
      %172 = arith.addf %171, %170 : vector<8x128xf32>
      %173 = arith.divf %171, %172 : vector<8x128xf32>
      %174 = vector.extract_strided_slice %167 {offsets = [0, 128], sizes = [8, 128], strides = [1, 1]} : vector<8x512xf32> to vector<8x128xf32>
      %175 = arith.negf %174 : vector<8x128xf32>
      %176 = math.exp %175 : vector<8x128xf32>
      %cst_63 = arith.constant 1.000000e+00 : f32
      %177 = vector.broadcast %cst_63 : f32 to vector<8x128xf32>
      %178 = arith.addf %177, %176 : vector<8x128xf32>
      %179 = arith.divf %177, %178 : vector<8x128xf32>
      %180 = vector.extract_strided_slice %167 {offsets = [0, 256], sizes = [8, 128], strides = [1, 1]} : vector<8x512xf32> to vector<8x128xf32>
      %181 = math.tanh %180 : vector<8x128xf32>
      %182 = vector.extract_strided_slice %167 {offsets = [0, 384], sizes = [8, 128], strides = [1, 1]} : vector<8x512xf32> to vector<8x128xf32>
      %183 = arith.negf %182 : vector<8x128xf32>
      %184 = math.exp %183 : vector<8x128xf32>
      %cst_64 = arith.constant 1.000000e+00 : f32
      %185 = vector.broadcast %cst_64 : f32 to vector<8x128xf32>
      %186 = arith.addf %185, %184 : vector<8x128xf32>
      %187 = arith.divf %185, %186 : vector<8x128xf32>
      %188 = arith.mulf %179, %154 : vector<8x128xf32>
      %189 = arith.mulf %173, %181 : vector<8x128xf32>
      %190 = arith.addf %188, %189 : vector<8x128xf32>
      %191 = math.tanh %190 : vector<8x128xf32>
      %192 = arith.mulf %187, %191 : vector<8x128xf32>
      %193 = arith.index_cast %c4_i32 : i32 to index
      %c0_65 = arith.constant 0 : index
      %c0_66 = arith.constant 0 : index
      %194 = vector.load %arg6[%193, %c0_65, %c0_66] : memref<8x8x128xf32, #tpu.memory_space<vmem>>, vector<1x8x128xf32>
      %195 = vector.shape_cast %194 : vector<1x8x128xf32> to vector<8x128xf32>
      %196 = vector.shape_cast %192 : vector<8x128xf32> to vector<1x8x128xf32>
      tpu.vector_store %arg6[%193, %c0_65, %c0_66], %196 {strides = array<i32>} : memref<8x8x128xf32, #tpu.memory_space<vmem>>, vector<1x8x128xf32>,
      %c5_i32 = arith.constant 5 : i32
      %197 = arith.index_cast %c5_i32 : i32 to index
      %c0_67 = arith.constant 0 : index
      %c0_68 = arith.constant 0 : index
      %198 = vector.load %arg9[%197, %c0_67, %c0_68] : memref<8x8x512xf32, #tpu.memory_space<vmem>>, vector<1x8x512xf32>
      %199 = vector.shape_cast %198 : vector<1x8x512xf32> to vector<8x512xf32>
      %200 = arith.truncf %192 : vector<8x128xf32> to vector<8x128xbf16>
      %c0_69 = arith.constant 0 : index
      %c0_70 = arith.constant 0 : index
      %201 = vector.load %arg5[%c0_69, %c0_70] : memref<128x512xbf16, #tpu.memory_space<vmem>>, vector<128x512xbf16>
      %cst_71 = arith.constant dense<0.000000e+00> : vector<8x512xf32>
      %202 = tpu.matmul %200, %201, %cst_71 {dimension_numbers = #tpu.dot_dimension_numbers<[1], [0], [0], [1], [0, 0, 1, 1], [], []>} : vector<8x128xbf16>, vector<128x512xbf16>, vector<8x512xf32> -> vector<8x512xf32>
      %203 = arith.addf %199, %202 : vector<8x512xf32>
      %204 = vector.extract_strided_slice %203 {offsets = [0, 0], sizes = [8, 128], strides = [1, 1]} : vector<8x512xf32> to vector<8x128xf32>
      %205 = arith.negf %204 : vector<8x128xf32>
      %206 = math.exp %205 : vector<8x128xf32>
      %cst_72 = arith.constant 1.000000e+00 : f32
      %207 = vector.broadcast %cst_72 : f32 to vector<8x128xf32>
      %208 = arith.addf %207, %206 : vector<8x128xf32>
      %209 = arith.divf %207, %208 : vector<8x128xf32>
      %210 = vector.extract_strided_slice %203 {offsets = [0, 128], sizes = [8, 128], strides = [1, 1]} : vector<8x512xf32> to vector<8x128xf32>
      %211 = arith.negf %210 : vector<8x128xf32>
      %212 = math.exp %211 : vector<8x128xf32>
      %cst_73 = arith.constant 1.000000e+00 : f32
      %213 = vector.broadcast %cst_73 : f32 to vector<8x128xf32>
      %214 = arith.addf %213, %212 : vector<8x128xf32>
      %215 = arith.divf %213, %214 : vector<8x128xf32>
      %216 = vector.extract_strided_slice %203 {offsets = [0, 256], sizes = [8, 128], strides = [1, 1]} : vector<8x512xf32> to vector<8x128xf32>
      %217 = math.tanh %216 : vector<8x128xf32>
      %218 = vector.extract_strided_slice %203 {offsets = [0, 384], sizes = [8, 128], strides = [1, 1]} : vector<8x512xf32> to vector<8x128xf32>
      %219 = arith.negf %218 : vector<8x128xf32>
      %220 = math.exp %219 : vector<8x128xf32>
      %cst_74 = arith.constant 1.000000e+00 : f32
      %221 = vector.broadcast %cst_74 : f32 to vector<8x128xf32>
      %222 = arith.addf %221, %220 : vector<8x128xf32>
      %223 = arith.divf %221, %222 : vector<8x128xf32>
      %224 = arith.mulf %215, %190 : vector<8x128xf32>
      %225 = arith.mulf %209, %217 : vector<8x128xf32>
      %226 = arith.addf %224, %225 : vector<8x128xf32>
      %227 = math.tanh %226 : vector<8x128xf32>
      %228 = arith.mulf %223, %227 : vector<8x128xf32>
      %229 = arith.index_cast %c5_i32 : i32 to index
      %c0_75 = arith.constant 0 : index
      %c0_76 = arith.constant 0 : index
      %230 = vector.load %arg6[%229, %c0_75, %c0_76] : memref<8x8x128xf32, #tpu.memory_space<vmem>>, vector<1x8x128xf32>
      %231 = vector.shape_cast %230 : vector<1x8x128xf32> to vector<8x128xf32>
      %232 = vector.shape_cast %228 : vector<8x128xf32> to vector<1x8x128xf32>
      tpu.vector_store %arg6[%229, %c0_75, %c0_76], %232 {strides = array<i32>} : memref<8x8x128xf32, #tpu.memory_space<vmem>>, vector<1x8x128xf32>,
      %c6_i32 = arith.constant 6 : i32
      %233 = arith.index_cast %c6_i32 : i32 to index
      %c0_77 = arith.constant 0 : index
      %c0_78 = arith.constant 0 : index
      %234 = vector.load %arg9[%233, %c0_77, %c0_78] : memref<8x8x512xf32, #tpu.memory_space<vmem>>, vector<1x8x512xf32>
      %235 = vector.shape_cast %234 : vector<1x8x512xf32> to vector<8x512xf32>
      %236 = arith.truncf %228 : vector<8x128xf32> to vector<8x128xbf16>
      %c0_79 = arith.constant 0 : index
      %c0_80 = arith.constant 0 : index
      %237 = vector.load %arg5[%c0_79, %c0_80] : memref<128x512xbf16, #tpu.memory_space<vmem>>, vector<128x512xbf16>
      %cst_81 = arith.constant dense<0.000000e+00> : vector<8x512xf32>
      %238 = tpu.matmul %236, %237, %cst_81 {dimension_numbers = #tpu.dot_dimension_numbers<[1], [0], [0], [1], [0, 0, 1, 1], [], []>} : vector<8x128xbf16>, vector<128x512xbf16>, vector<8x512xf32> -> vector<8x512xf32>
      %239 = arith.addf %235, %238 : vector<8x512xf32>
      %240 = vector.extract_strided_slice %239 {offsets = [0, 0], sizes = [8, 128], strides = [1, 1]} : vector<8x512xf32> to vector<8x128xf32>
      %241 = arith.negf %240 : vector<8x128xf32>
      %242 = math.exp %241 : vector<8x128xf32>
      %cst_82 = arith.constant 1.000000e+00 : f32
      %243 = vector.broadcast %cst_82 : f32 to vector<8x128xf32>
      %244 = arith.addf %243, %242 : vector<8x128xf32>
      %245 = arith.divf %243, %244 : vector<8x128xf32>
      %246 = vector.extract_strided_slice %239 {offsets = [0, 128], sizes = [8, 128], strides = [1, 1]} : vector<8x512xf32> to vector<8x128xf32>
      %247 = arith.negf %246 : vector<8x128xf32>
      %248 = math.exp %247 : vector<8x128xf32>
      %cst_83 = arith.constant 1.000000e+00 : f32
      %249 = vector.broadcast %cst_83 : f32 to vector<8x128xf32>
      %250 = arith.addf %249, %248 : vector<8x128xf32>
      %251 = arith.divf %249, %250 : vector<8x128xf32>
      %252 = vector.extract_strided_slice %239 {offsets = [0, 256], sizes = [8, 128], strides = [1, 1]} : vector<8x512xf32> to vector<8x128xf32>
      %253 = math.tanh %252 : vector<8x128xf32>
      %254 = vector.extract_strided_slice %239 {offsets = [0, 384], sizes = [8, 128], strides = [1, 1]} : vector<8x512xf32> to vector<8x128xf32>
      %255 = arith.negf %254 : vector<8x128xf32>
      %256 = math.exp %255 : vector<8x128xf32>
      %cst_84 = arith.constant 1.000000e+00 : f32
      %257 = vector.broadcast %cst_84 : f32 to vector<8x128xf32>
      %258 = arith.addf %257, %256 : vector<8x128xf32>
      %259 = arith.divf %257, %258 : vector<8x128xf32>
      %260 = arith.mulf %251, %226 : vector<8x128xf32>
      %261 = arith.mulf %245, %253 : vector<8x128xf32>
      %262 = arith.addf %260, %261 : vector<8x128xf32>
      %263 = math.tanh %262 : vector<8x128xf32>
      %264 = arith.mulf %259, %263 : vector<8x128xf32>
      %265 = arith.index_cast %c6_i32 : i32 to index
      %c0_85 = arith.constant 0 : index
      %c0_86 = arith.constant 0 : index
      %266 = vector.load %arg6[%265, %c0_85, %c0_86] : memref<8x8x128xf32, #tpu.memory_space<vmem>>, vector<1x8x128xf32>
      %267 = vector.shape_cast %266 : vector<1x8x128xf32> to vector<8x128xf32>
      %268 = vector.shape_cast %264 : vector<8x128xf32> to vector<1x8x128xf32>
      tpu.vector_store %arg6[%265, %c0_85, %c0_86], %268 {strides = array<i32>} : memref<8x8x128xf32, #tpu.memory_space<vmem>>, vector<1x8x128xf32>,
      %c7_i32 = arith.constant 7 : i32
      %269 = arith.index_cast %c7_i32 : i32 to index
      %c0_87 = arith.constant 0 : index
      %c0_88 = arith.constant 0 : index
      %270 = vector.load %arg9[%269, %c0_87, %c0_88] : memref<8x8x512xf32, #tpu.memory_space<vmem>>, vector<1x8x512xf32>
      %271 = vector.shape_cast %270 : vector<1x8x512xf32> to vector<8x512xf32>
      %272 = arith.truncf %264 : vector<8x128xf32> to vector<8x128xbf16>
      %c0_89 = arith.constant 0 : index
      %c0_90 = arith.constant 0 : index
      %273 = vector.load %arg5[%c0_89, %c0_90] : memref<128x512xbf16, #tpu.memory_space<vmem>>, vector<128x512xbf16>
      %cst_91 = arith.constant dense<0.000000e+00> : vector<8x512xf32>
      %274 = tpu.matmul %272, %273, %cst_91 {dimension_numbers = #tpu.dot_dimension_numbers<[1], [0], [0], [1], [0, 0, 1, 1], [], []>} : vector<8x128xbf16>, vector<128x512xbf16>, vector<8x512xf32> -> vector<8x512xf32>
      %275 = arith.addf %271, %274 : vector<8x512xf32>
      %276 = vector.extract_strided_slice %275 {offsets = [0, 0], sizes = [8, 128], strides = [1, 1]} : vector<8x512xf32> to vector<8x128xf32>
      %277 = arith.negf %276 : vector<8x128xf32>
      %278 = math.exp %277 : vector<8x128xf32>
      %cst_92 = arith.constant 1.000000e+00 : f32
      %279 = vector.broadcast %cst_92 : f32 to vector<8x128xf32>
      %280 = arith.addf %279, %278 : vector<8x128xf32>
      %281 = arith.divf %279, %280 : vector<8x128xf32>
      %282 = vector.extract_strided_slice %275 {offsets = [0, 128], sizes = [8, 128], strides = [1, 1]} : vector<8x512xf32> to vector<8x128xf32>
      %283 = arith.negf %282 : vector<8x128xf32>
      %284 = math.exp %283 : vector<8x128xf32>
      %cst_93 = arith.constant 1.000000e+00 : f32
      %285 = vector.broadcast %cst_93 : f32 to vector<8x128xf32>
      %286 = arith.addf %285, %284 : vector<8x128xf32>
      %287 = arith.divf %285, %286 : vector<8x128xf32>
      %288 = vector.extract_strided_slice %275 {offsets = [0, 256], sizes = [8, 128], strides = [1, 1]} : vector<8x512xf32> to vector<8x128xf32>
      %289 = math.tanh %288 : vector<8x128xf32>
      %290 = vector.extract_strided_slice %275 {offsets = [0, 384], sizes = [8, 128], strides = [1, 1]} : vector<8x512xf32> to vector<8x128xf32>
      %291 = arith.negf %290 : vector<8x128xf32>
      %292 = math.exp %291 : vector<8x128xf32>
      %cst_94 = arith.constant 1.000000e+00 : f32
      %293 = vector.broadcast %cst_94 : f32 to vector<8x128xf32>
      %294 = arith.addf %293, %292 : vector<8x128xf32>
      %295 = arith.divf %293, %294 : vector<8x128xf32>
      %296 = arith.mulf %287, %262 : vector<8x128xf32>
      %297 = arith.mulf %281, %289 : vector<8x128xf32>
      %298 = arith.addf %296, %297 : vector<8x128xf32>
      %299 = math.tanh %298 : vector<8x128xf32>
      %300 = arith.mulf %295, %299 : vector<8x128xf32>
      %301 = arith.index_cast %c7_i32 : i32 to index
      %c0_95 = arith.constant 0 : index
      %c0_96 = arith.constant 0 : index
      %302 = vector.load %arg6[%301, %c0_95, %c0_96] : memref<8x8x128xf32, #tpu.memory_space<vmem>>, vector<1x8x128xf32>
      %303 = vector.shape_cast %302 : vector<1x8x128xf32> to vector<8x128xf32>
      %304 = vector.shape_cast %300 : vector<8x128xf32> to vector<1x8x128xf32>
      tpu.vector_store %arg6[%301, %c0_95, %c0_96], %304 {strides = array<i32>} : memref<8x8x128xf32, #tpu.memory_space<vmem>>, vector<1x8x128xf32>,
      %c8_i32 = arith.constant 8 : i32
      %c0_97 = arith.constant 0 : index
      %c0_98 = arith.constant 0 : index
      %305 = vector.load %arg10[%c0_97, %c0_98] : memref<8x128xf32, #tpu.memory_space<vmem>>, vector<8x128xf32>
      tpu.vector_store %arg10[%c0_97, %c0_98], %300 {strides = array<i32>} : memref<8x128xf32, #tpu.memory_space<vmem>>, vector<8x128xf32>,
      %c0_99 = arith.constant 0 : index
      %c0_100 = arith.constant 0 : index
      %306 = vector.load %arg11[%c0_99, %c0_100] : memref<8x128xf32, #tpu.memory_space<vmem>>, vector<8x128xf32>
      tpu.vector_store %arg11[%c0_99, %c0_100], %298 {strides = array<i32>} : memref<8x128xf32, #tpu.memory_space<vmem>>, vector<8x128xf32>,
      %c0_101 = arith.constant 0 : index
      %c0_102 = arith.constant 0 : index
      %307 = vector.load %arg7[%c0_101, %c0_102] : memref<8x128xf32, #tpu.memory_space<vmem>>, vector<8x128xf32>
      tpu.vector_store %arg7[%c0_101, %c0_102], %300 {strides = array<i32>} : memref<8x128xf32, #tpu.memory_space<vmem>>, vector<8x128xf32>,
      %c0_103 = arith.constant 0 : index
      %c0_104 = arith.constant 0 : index
      %308 = vector.load %arg8[%c0_103, %c0_104] : memref<8x128xf32, #tpu.memory_space<vmem>>, vector<8x128xf32>
      tpu.vector_store %arg8[%c0_103, %c0_104], %298 {strides = array<i32>} : memref<8x128xf32, #tpu.memory_space<vmem>>, vector<8x128xf32>,
    } else {
    }
    return
  }
  func.func @transform_0(%arg0: i32, %arg1: i32) -> (i32, i32, i32) {
    %c0_i32 = arith.constant 0 : i32
    %c0_i32_0 = arith.constant 0 : i32
    return %arg1, %arg0, %c0_i32 : i32, i32, i32
  }
  func.func @transform_1(%arg0: i32, %arg1: i32) -> (i32, i32) {
    %c0_i32 = arith.constant 0 : i32
    %c0_i32_0 = arith.constant 0 : i32
    %c0_i32_1 = arith.constant 0 : i32
    return %c0_i32, %c0_i32_0 : i32, i32
  }
  func.func @transform_2(%arg0: i32, %arg1: i32) -> (i32, i32) {
    %c0_i32 = arith.constant 0 : i32
    %c0_i32_0 = arith.constant 0 : i32
    %c0_i32_1 = arith.constant 0 : i32
    return %c0_i32, %c0_i32_0 : i32, i32
  }
  func.func @transform_3(%arg0: i32, %arg1: i32) -> (i32, i32) {
    %c0_i32 = arith.constant 0 : i32
    %c0_i32_0 = arith.constant 0 : i32
    %c0_i32_1 = arith.constant 0 : i32
    return %c0_i32, %c0_i32_0 : i32, i32
  }
  func.func @transform_4(%arg0: i32, %arg1: i32) -> (i32, i32, i32) {
    %c0_i32 = arith.constant 0 : i32
    %c0_i32_0 = arith.constant 0 : i32
    return %arg1, %arg0, %c0_i32 : i32, i32, i32
  }
  func.func @transform_5(%arg0: i32, %arg1: i32) -> (i32, i32) {
    %c0_i32 = arith.constant 0 : i32
    %c0_i32_0 = arith.constant 0 : i32
    return %arg0, %c0_i32 : i32, i32
  }
  func.func @transform_6(%arg0: i32, %arg1: i32) -> (i32, i32) {
    %c0_i32 = arith.constant 0 : i32
    %c0_i32_0 = arith.constant 0 : i32
    return %arg0, %c0_i32 : i32, i32
  }
}

</mosaic_0001>

<llo_original>
// kernel: encoder_forward.1
$region0: #{encoder_forward.1}
  #allocation0 [shape = 'u32[]', space=smem, size = 0x4, offset = 0x4, fixed_abs, tag = 'smem constant byte address 0x4 - core index']
  #allocation1 [shape = 'u32[72,128]{1,0:T(1,128)}', space=vmem, size = 0x9000, scoped, tag = 'internal scratch']
  #allocation2 [shape = 'f32[8,8,512]{2,1,0:T(8,128)}', space=vmem, size = 0x20000, scoped, tag = 'scratch operand']
  #allocation3 [shape = 'f32[8,128]{1,0:T(8,128)}', space=vmem, size = 0x1000, scoped, tag = 'scratch operand']
  #allocation4 [shape = 'f32[8,128]{1,0:T(8,128)}', space=vmem, size = 0x1000, scoped, tag = 'scratch operand']
  %s0 = inlined_call_operand.vmem [shape: bf16[8,8,8], index: 0, kind: input, shape index: {}]
  %s1 = inlined_call_operand.vmem [shape: bf16[8,512], index: 1, kind: input, shape index: {}]
  %s2 = inlined_call_operand.vmem [shape: f32[1,512], index: 2, kind: input, shape index: {}]
  %s3 = inlined_call_operand.vmem [shape: bf16[128,512], index: 3, kind: input, shape index: {}]
  %s4 = inlined_call_operand.vmem [shape: f32[8,8,128], index: 4, kind: output, shape index: {0}]
  %s5 = inlined_call_operand.vmem [shape: f32[8,128], index: 5, kind: output, shape index: {1}]
  %s6 = inlined_call_operand.vmem [shape: f32[8,128], index: 6, kind: output, shape index: {2}]
  %7 = xla_tuple %s4, %s5, %s6
  %s8 = sld [smem:[#allocation0]]
  $region50: #{encoder_forward.1} parent=0
    _
  %s10 = ssub.s32 1, %s8
  %s11 = scalar_select 0, %s10, %s8
  // Predicated region
  $region2: #{encoder_forward.1} parent=0 // pred_check
    _
  $region3: #{encoder_forward.1} parent=0 // pred_check_branch
    %13 = sbr.rel (0) target = $region5
  $region4: #{encoder_forward.1} parent=0 // pred_region
    _
  $region5: #{encoder_forward.1} parent=0 // pred_fallthru
    _
  // Predicated region
  $region6: #{encoder_forward.1} parent=0 // pred_check
    _
  $region7: #{encoder_forward.1} parent=0 // pred_check_branch
    %15 = sbr.rel (0) target = $region9
  $region8: #{encoder_forward.1} parent=0 // pred_region
    _
  $region9: #{encoder_forward.1} parent=0 // pred_fallthru
    _
  // Predicated region
  $region10: #{encoder_forward.1} parent=0 // pred_check
    _
  $region11: #{encoder_forward.1} parent=0 // pred_check_branch
    %17 = sbr.rel (0) target = $region13
  $region12: #{encoder_forward.1} parent=0 // pred_region
    _
  $region13: #{encoder_forward.1} parent=0 // pred_fallthru
    _
  // Predicated region
  $region14: #{encoder_forward.1} parent=0 // pred_check
    _
  $region15: #{encoder_forward.1} parent=0 // pred_check_branch
    %19 = sbr.rel (0) target = $region17
  $region16: #{encoder_forward.1} parent=0 // pred_region
    _
  $region17: #{encoder_forward.1} parent=0 // pred_fallthru
    _
  %p21 = scmp.eq.s32.totalorder 0, 0
  // Predicated region
  $region18: #{encoder_forward.1} parent=0 // pred_check
    %p22 = pneg %p21
  $region19: #{encoder_forward.1} parent=0 // pred_check_branch
    %24 = sbr.rel (%p22) target = $region21
  $region20: #{encoder_forward.1} parent=0 // pred_region
    %25 = vst [vmem:[#allocation3] sm:$0xff] 0.0
    %26 = vst [vmem:[#allocation4] sm:$0xff] 0.0
  $region21: #{encoder_forward.1} parent=0 // pred_fallthru
    _
  %v27 = vld [vmem:[%s0] sm:$0xf]
  %v28 = vld [vmem:[%s0 + $0x4] sm:$0xf]
  %v29 = vld [vmem:[%s0 + $0x8] sm:$0xf]
  %v30 = vld [vmem:[%s0 + $0xc] sm:$0xf]
  %v31 = vld [vmem:[%s0 + $0x10] sm:$0xf]
  %v32 = vld [vmem:[%s0 + $0x14] sm:$0xf]
  %v33 = vld [vmem:[%s0 + $0x18] sm:$0xf]
  %v34 = vld [vmem:[%s0 + $0x1c] sm:$0xf]
  %v35 = vld [vmem:[%s1] sm:$0xff]
  %v36 = vld [vmem:[%s1 + $0x8] sm:$0xff]
  %v37 = vld [vmem:[%s2] sm:$0xf]
  %v39 = vperm.slane %v37, 0
  %v40 = vperm.slane %v37, 1
  %v41 = vperm.slane %v37, 2
  %v42 = vperm.slane %v37, 3
  %v55 = vunpack.c.l.b16 %v27
  %v56 = vunpack.c.l.b16 %v28
  %v57 = vunpack.c.l.b16 %v29
  %v58 = vunpack.c.l.b16 %v30
  %v59 = vunpack.c.l.b16 %v31
  %v60 = vunpack.c.l.b16 %v32
  %v61 = vunpack.c.l.b16 %v33
  %v62 = vunpack.c.l.b16 %v34
  %v63 = vpack.c.b16 %v56, %v55
  %v64 = vpack.c.b16 %v58, %v57
  %v65 = vpack.c.b16 %v60, %v59
  %v66 = vpack.c.b16 %v62, %v61
  %v69 = vunpack.c.l.b16 %v35
  %v70 = vunpack.c.h.b16 %v35
  %v71 = vunpack.c.l.b16 %v36
  %v72 = vunpack.c.h.b16 %v36
  %v73 = vpack.c.b16 %v69, %v69
  %v74 = vpack.c.b16 %v70, %v70
  %v75 = vpack.c.b16 %v71, %v71
  %v76 = vpack.c.b16 %v72, %v72
  %vm77 = vcmask 64512
  %v79 = vsel %vm77, %v63, 0
  %v82 = vsel %vm77, %v64, 0
  %v85 = vsel %vm77, %v65, 0
  %v88 = vsel %vm77, %v66, 0
  %vm90 = vcmask 1043456
  %v92 = vsel %vm90, %v73, 0
  %v95 = vsel %vm90, %v74, 0
  %v98 = vsel %vm90, %v75, 0
  %v101 = vsel %vm90, %v76, 0
  %103 = vmatpush.bf16.msra.mxu0 0
  %104 = vmatpush.bf16.msra.mxu0 0
  %105 = vmatpush.bf16.msra.mxu0 0
  %106 = vmatpush.bf16.msra.mxu0 0
  %107 = vmatpush.bf16.msra.mxu0 0
  %108 = vmatpush.bf16.msra.mxu0 0
  %109 = vmatpush.bf16.msra.mxu0 0
  %110 = vmatpush.bf16.msra.mxu0 %v92
  %111 = vmatmul.bf16.gmra.mxu0 %v79
  %v112 = vpop.f32.mrf.mxu0
  %v113 = vadd.f32 %v39, %v112
  %v114 = vpop.f32.mrf.mxu0
  %v115 = vadd.f32 %v39, %v114
  %116 = vmatmul.bf16.gmra.mxu0 %v82
  %v117 = vpop.f32.mrf.mxu0
  %v118 = vadd.f32 %v39, %v117
  %v119 = vpop.f32.mrf.mxu0
  %v120 = vadd.f32 %v39, %v119
  %121 = vmatmul.bf16.gmra.mxu0 %v85
  %v122 = vpop.f32.mrf.mxu0
  %v123 = vadd.f32 %v39, %v122
  %v124 = vpop.f32.mrf.mxu0
  %v125 = vadd.f32 %v39, %v124
  %126 = vmatmul.bf16.gmra.mxu0 %v88
  %v127 = vpop.f32.mrf.mxu0
  %v128 = vadd.f32 %v39, %v127
  %v129 = vpop.f32.mrf.mxu0
  %v130 = vadd.f32 %v39, %v129
  %131 = vdwg.mxu0
  %132 = vmatpush.bf16.msra.mxu0 0
  %133 = vmatpush.bf16.msra.mxu0 0
  %134 = vmatpush.bf16.msra.mxu0 0
  %135 = vmatpush.bf16.msra.mxu0 0
  %136 = vmatpush.bf16.msra.mxu0 0
  %137 = vmatpush.bf16.msra.mxu0 0
  %138 = vmatpush.bf16.msra.mxu0 0
  %139 = vmatpush.bf16.msra.mxu0 %v95
  %140 = vmatmul.bf16.gmra.mxu0 %v79
  %v141 = vpop.f32.mrf.mxu0
  %v142 = vadd.f32 %v40, %v141
  %v143 = vpop.f32.mrf.mxu0
  %v144 = vadd.f32 %v40, %v143
  %145 = vmatmul.bf16.gmra.mxu0 %v82
  %v146 = vpop.f32.mrf.mxu0
  %v147 = vadd.f32 %v40, %v146
  %v148 = vpop.f32.mrf.mxu0
  %v149 = vadd.f32 %v40, %v148
  %150 = vmatmul.bf16.gmra.mxu0 %v85
  %v151 = vpop.f32.mrf.mxu0
  %v152 = vadd.f32 %v40, %v151
  %v153 = vpop.f32.mrf.mxu0
  %v154 = vadd.f32 %v40, %v153
  %155 = vmatmul.bf16.gmra.mxu0 %v88
  %v156 = vpop.f32.mrf.mxu0
  %v157 = vadd.f32 %v40, %v156
  %v158 = vpop.f32.mrf.mxu0
  %v159 = vadd.f32 %v40, %v158
  %160 = vdwg.mxu0
  %161 = vmatpush.bf16.msra.mxu0 0
  %162 = vmatpush.bf16.msra.mxu0 0
  %163 = vmatpush.bf16.msra.mxu0 0
  %164 = vmatpush.bf16.msra.mxu0 0
  %165 = vmatpush.bf16.msra.mxu0 0
  %166 = vmatpush.bf16.msra.mxu0 0
  %167 = vmatpush.bf16.msra.mxu0 0
  %168 = vmatpush.bf16.msra.mxu0 %v98
  %169 = vmatmul.bf16.gmra.mxu0 %v79
  %v170 = vpop.f32.mrf.mxu0
  %v171 = vadd.f32 %v41, %v170
  %v172 = vpop.f32.mrf.mxu0
  %v173 = vadd.f32 %v41, %v172
  %174 = vmatmul.bf16.gmra.mxu0 %v82
  %v175 = vpop.f32.mrf.mxu0
  %v176 = vadd.f32 %v41, %v175
  %v177 = vpop.f32.mrf.mxu0
  %v178 = vadd.f32 %v41, %v177
  %179 = vmatmul.bf16.gmra.mxu0 %v85
  %v180 = vpop.f32.mrf.mxu0
  %v181 = vadd.f32 %v41, %v180
  %v182 = vpop.f32.mrf.mxu0
  %v183 = vadd.f32 %v41, %v182
  %184 = vmatmul.bf16.gmra.mxu0 %v88
  %v185 = vpop.f32.mrf.mxu0
  %v186 = vadd.f32 %v41, %v185
  %v187 = vpop.f32.mrf.mxu0
  %v188 = vadd.f32 %v41, %v187
  %189 = vdwg.mxu0
  %190 = vmatpush.bf16.msra.mxu0 0
  %191 = vmatpush.bf16.msra.mxu0 0
  %192 = vmatpush.bf16.msra.mxu0 0
  %193 = vmatpush.bf16.msra.mxu0 0
  %194 = vmatpush.bf16.msra.mxu0 0
  %195 = vmatpush.bf16.msra.mxu0 0
  %196 = vmatpush.bf16.msra.mxu0 0
  %197 = vmatpush.bf16.msra.mxu0 %v101
  %198 = vmatmul.bf16.gmra.mxu0 %v79
  %v199 = vpop.f32.mrf.mxu0
  %v200 = vadd.f32 %v42, %v199
  %v201 = vpop.f32.mrf.mxu0
  %v202 = vadd.f32 %v42, %v201
  %203 = vmatmul.bf16.gmra.mxu0 %v82
  %v204 = vpop.f32.mrf.mxu0
  %v205 = vadd.f32 %v42, %v204
  %v206 = vpop.f32.mrf.mxu0
  %v207 = vadd.f32 %v42, %v206
  %208 = vmatmul.bf16.gmra.mxu0 %v85
  %v209 = vpop.f32.mrf.mxu0
  %v210 = vadd.f32 %v42, %v209
  %v211 = vpop.f32.mrf.mxu0
  %v212 = vadd.f32 %v42, %v211
  %213 = vmatmul.bf16.gmra.mxu0 %v88
  %v214 = vpop.f32.mrf.mxu0
  %v215 = vadd.f32 %v42, %v214
  %v216 = vpop.f32.mrf.mxu0
  %v217 = vadd.f32 %v42, %v216
  %218 = vdwg.mxu0
  %219 = vst [vmem:[#allocation2] sm:$0xff] %v113
  %220 = vst [vmem:[#allocation2 + $0x8] sm:$0xff] %v142
  %221 = vst [vmem:[#allocation2 + $0x10] sm:$0xff] %v171
  %222 = vst [vmem:[#allocation2 + $0x18] sm:$0xff] %v200
  %223 = vst [vmem:[#allocation2 + $0x20] sm:$0xff] %v115
  %224 = vst [vmem:[#allocation2 + $0x28] sm:$0xff] %v144
  %225 = vst [vmem:[#allocation2 + $0x30] sm:$0xff] %v173
  %226 = vst [vmem:[#allocation2 + $0x38] sm:$0xff] %v202
  %227 = vst [vmem:[#allocation2 + $0x40] sm:$0xff] %v118
  %228 = vst [vmem:[#allocation2 + $0x48] sm:$0xff] %v147
  %229 = vst [vmem:[#allocation2 + $0x50] sm:$0xff] %v176
  %230 = vst [vmem:[#allocation2 + $0x58] sm:$0xff] %v205
  %231 = vst [vmem:[#allocation2 + $0x60] sm:$0xff] %v120
  %232 = vst [vmem:[#allocation2 + $0x68] sm:$0xff] %v149
  %233 = vst [vmem:[#allocation2 + $0x70] sm:$0xff] %v178
  %234 = vst [vmem:[#allocation2 + $0x78] sm:$0xff] %v207
  %235 = vst [vmem:[#allocation2 + $0x80] sm:$0xff] %v123
  %236 = vst [vmem:[#allocation2 + $0x88] sm:$0xff] %v152
  %237 = vst [vmem:[#allocation2 + $0x90] sm:$0xff] %v181
  %238 = vst [vmem:[#allocation2 + $0x98] sm:$0xff] %v210
  %239 = vst [vmem:[#allocation2 + $0xa0] sm:$0xff] %v125
  %240 = vst [vmem:[#allocation2 + $0xa8] sm:$0xff] %v154
  %241 = vst [vmem:[#allocation2 + $0xb0] sm:$0xff] %v183
  %242 = vst [vmem:[#allocation2 + $0xb8] sm:$0xff] %v212
  %243 = vst [vmem:[#allocation2 + $0xc0] sm:$0xff] %v128
  %244 = vst [vmem:[#allocation2 + $0xc8] sm:$0xff] %v157
  %245 = vst [vmem:[#allocation2 + $0xd0] sm:$0xff] %v186
  %246 = vst [vmem:[#allocation2 + $0xd8] sm:$0xff] %v215
  %247 = vst [vmem:[#allocation2 + $0xe0] sm:$0xff] %v130
  %248 = vst [vmem:[#allocation2 + $0xe8] sm:$0xff] %v159
  %249 = vst [vmem:[#allocation2 + $0xf0] sm:$0xff] %v188
  %250 = vst [vmem:[#allocation2 + $0xf8] sm:$0xff] %v217
  // Predicated region
  $region22: #{encoder_forward.1} parent=0 // pred_check
    %p251 = pneg %p21
  $region23: #{encoder_forward.1} parent=0 // pred_check_branch
    %253 = sbr.rel (%p251) target = $region25
  $region24: #{encoder_forward.1} parent=0 // pred_region
    %v254 = vld [vmem:[#allocation3] sm:$0xff]
    %v255 = vld [vmem:[#allocation4] sm:$0xff]
    %v256 = vld [vmem:[#allocation2] sm:$0xff]
    %v257 = vld [vmem:[#allocation2 + $0x8] sm:$0xff]
    %v258 = vld [vmem:[#allocation2 + $0x10] sm:$0xff]
    %v259 = vld [vmem:[#allocation2 + $0x18] sm:$0xff]
    %v260 = vpack.c.bf16 %v254, %v254
    %v261 = vld [vmem:[%s3] sm:$0xff]
    %v262 = vld [vmem:[%s3 + $0x8] sm:$0xff]
    %v263 = vld [vmem:[%s3 + $0x10] sm:$0xff]
    %v264 = vld [vmem:[%s3 + $0x18] sm:$0xff]
    %v265 = vld [vmem:[%s3 + $0x20] sm:$0xff]
    %v266 = vld [vmem:[%s3 + $0x28] sm:$0xff]
    %v267 = vld [vmem:[%s3 + $0x30] sm:$0xff]
    %v268 = vld [vmem:[%s3 + $0x38] sm:$0xff]
    %v269 = vld [vmem:[%s3 + $0x40] sm:$0xff]
    %v270 = vld [vmem:[%s3 + $0x48] sm:$0xff]
    %v271 = vld [vmem:[%s3 + $0x50] sm:$0xff]
    %v272 = vld [vmem:[%s3 + $0x58] sm:$0xff]
    %v273 = vld [vmem:[%s3 + $0x60] sm:$0xff]
    %v274 = vld [vmem:[%s3 + $0x68] sm:$0xff]
    %v275 = vld [vmem:[%s3 + $0x70] sm:$0xff]
    %v276 = vld [vmem:[%s3 + $0x78] sm:$0xff]
    %v277 = vld [vmem:[%s3 + $0x80] sm:$0xff]
    %v278 = vld [vmem:[%s3 + $0x88] sm:$0xff]
    %v279 = vld [vmem:[%s3 + $0x90] sm:$0xff]
    %v280 = vld [vmem:[%s3 + $0x98] sm:$0xff]
    %v281 = vld [vmem:[%s3 + $0xa0] sm:$0xff]
    %v282 = vld [vmem:[%s3 + $0xa8] sm:$0xff]
    %v283 = vld [vmem:[%s3 + $0xb0] sm:$0xff]
    %v284 = vld [vmem:[%s3 + $0xb8] sm:$0xff]
    %v285 = vld [vmem:[%s3 + $0xc0] sm:$0xff]
    %v286 = vld [vmem:[%s3 + $0xc8] sm:$0xff]
    %v287 = vld [vmem:[%s3 + $0xd0] sm:$0xff]
    %v288 = vld [vmem:[%s3 + $0xd8] sm:$0xff]
    %v289 = vld [vmem:[%s3 + $0xe0] sm:$0xff]
    %v290 = vld [vmem:[%s3 + $0xe8] sm:$0xff]
    %v291 = vld [vmem:[%s3 + $0xf0] sm:$0xff]
    %v292 = vld [vmem:[%s3 + $0xf8] sm:$0xff]
    %v325 = vunpack.c.l.b16 %v261
    %v326 = vunpack.c.h.b16 %v261
    %v327 = vunpack.c.l.b16 %v262
    %v328 = vunpack.c.h.b16 %v262
    %v329 = vunpack.c.l.b16 %v263
    %v330 = vunpack.c.h.b16 %v263
    %v331 = vunpack.c.l.b16 %v264
    %v332 = vunpack.c.h.b16 %v264
    %v333 = vunpack.c.l.b16 %v265
    %v334 = vunpack.c.h.b16 %v265
    %v335 = vunpack.c.l.b16 %v266
    %v336 = vunpack.c.h.b16 %v266
    %v337 = vunpack.c.l.b16 %v267
    %v338 = vunpack.c.h.b16 %v267
    %v339 = vunpack.c.l.b16 %v268
    %v340 = vunpack.c.h.b16 %v268
    %v341 = vunpack.c.l.b16 %v269
    %v342 = vunpack.c.h.b16 %v269
    %v343 = vunpack.c.l.b16 %v270
    %v344 = vunpack.c.h.b16 %v270
    %v345 = vunpack.c.l.b16 %v271
    %v346 = vunpack.c.h.b16 %v271
    %v347 = vunpack.c.l.b16 %v272
    %v348 = vunpack.c.h.b16 %v272
    %v349 = vunpack.c.l.b16 %v273
    %v350 = vunpack.c.h.b16 %v273
    %v351 = vunpack.c.l.b16 %v274
    %v352 = vunpack.c.h.b16 %v274
    %v353 = vunpack.c.l.b16 %v275
    %v354 = vunpack.c.h.b16 %v275
    %v355 = vunpack.c.l.b16 %v276
    %v356 = vunpack.c.h.b16 %v276
    %v357 = vunpack.c.l.b16 %v277
    %v358 = vunpack.c.h.b16 %v277
    %v359 = vunpack.c.l.b16 %v278
    %v360 = vunpack.c.h.b16 %v278
    %v361 = vunpack.c.l.b16 %v279
    %v362 = vunpack.c.h.b16 %v279
    %v363 = vunpack.c.l.b16 %v280
    %v364 = vunpack.c.h.b16 %v280
    %v365 = vunpack.c.l.b16 %v281
    %v366 = vunpack.c.h.b16 %v281
    %v367 = vunpack.c.l.b16 %v282
    %v368 = vunpack.c.h.b16 %v282
    %v369 = vunpack.c.l.b16 %v283
    %v370 = vunpack.c.h.b16 %v283
    %v371 = vunpack.c.l.b16 %v284
    %v372 = vunpack.c.h.b16 %v284
    %v373 = vunpack.c.l.b16 %v285
    %v374 = vunpack.c.h.b16 %v285
    %v375 = vunpack.c.l.b16 %v286
    %v376 = vunpack.c.h.b16 %v286
    %v377 = vunpack.c.l.b16 %v287
    %v378 = vunpack.c.h.b16 %v287
    %v379 = vunpack.c.l.b16 %v288
    %v380 = vunpack.c.h.b16 %v288
    %v381 = vunpack.c.l.b16 %v289
    %v382 = vunpack.c.h.b16 %v289
    %v383 = vunpack.c.l.b16 %v290
    %v384 = vunpack.c.h.b16 %v290
    %v385 = vunpack.c.l.b16 %v291
    %v386 = vunpack.c.h.b16 %v291
    %v387 = vunpack.c.l.b16 %v292
    %v388 = vunpack.c.h.b16 %v292
    %v389 = vpack.c.b16 %v329, %v325
    %v390 = vpack.c.b16 %v330, %v326
    %v391 = vpack.c.b16 %v331, %v327
    %v392 = vpack.c.b16 %v332, %v328
    %v393 = vpack.c.b16 %v337, %v333
    %v394 = vpack.c.b16 %v338, %v334
    %v395 = vpack.c.b16 %v339, %v335
    %v396 = vpack.c.b16 %v340, %v336
    %v397 = vpack.c.b16 %v345, %v341
    %v398 = vpack.c.b16 %v346, %v342
    %v399 = vpack.c.b16 %v347, %v343
    %v400 = vpack.c.b16 %v348, %v344
    %v401 = vpack.c.b16 %v353, %v349
    %v402 = vpack.c.b16 %v354, %v350
    %v403 = vpack.c.b16 %v355, %v351
    %v404 = vpack.c.b16 %v356, %v352
    %v405 = vpack.c.b16 %v361, %v357
    %v406 = vpack.c.b16 %v362, %v358
    %v407 = vpack.c.b16 %v363, %v359
    %v408 = vpack.c.b16 %v364, %v360
    %v409 = vpack.c.b16 %v369, %v365
    %v410 = vpack.c.b16 %v370, %v366
    %v411 = vpack.c.b16 %v371, %v367
    %v412 = vpack.c.b16 %v372, %v368
    %v413 = vpack.c.b16 %v377, %v373
    %v414 = vpack.c.b16 %v378, %v374
    %v415 = vpack.c.b16 %v379, %v375
    %v416 = vpack.c.b16 %v380, %v376
    %v417 = vpack.c.b16 %v385, %v381
    %v418 = vpack.c.b16 %v386, %v382
    %v419 = vpack.c.b16 %v387, %v383
    %v420 = vpack.c.b16 %v388, %v384
    %453 = vmatpush.bf16.msra.mxu0 %v417
    %454 = vmatpush.bf16.msra.mxu0 %v413
    %455 = vmatpush.bf16.msra.mxu0 %v409
    %456 = vmatpush.bf16.msra.mxu0 %v405
    %457 = vmatpush.bf16.msra.mxu0 %v401
    %458 = vmatpush.bf16.msra.mxu0 %v397
    %459 = vmatpush.bf16.msra.mxu0 %v393
    %460 = vmatpush.bf16.msra.mxu0 %v389
    %461 = vmatmul.bf16.gmra.mxu0 %v260
    %v462 = vpop.f32.mrf.mxu0
    %v463 = vadd.f32 0.0, %v462
    %v464 = vpop.f32.mrf.mxu0
    %465 = vdwg.mxu0
    %466 = vmatpush.bf16.msra.mxu0 %v418
    %467 = vmatpush.bf16.msra.mxu0 %v414
    %468 = vmatpush.bf16.msra.mxu0 %v410
    %469 = vmatpush.bf16.msra.mxu0 %v406
    %470 = vmatpush.bf16.msra.mxu0 %v402
    %471 = vmatpush.bf16.msra.mxu0 %v398
    %472 = vmatpush.bf16.msra.mxu0 %v394
    %473 = vmatpush.bf16.msra.mxu0 %v390
    %474 = vmatmul.bf16.gmra.mxu0 %v260
    %v475 = vpop.f32.mrf.mxu0
    %v476 = vadd.f32 0.0, %v475
    %v477 = vpop.f32.mrf.mxu0
    %478 = vdwg.mxu0
    %479 = vmatpush.bf16.msra.mxu0 %v419
    %480 = vmatpush.bf16.msra.mxu0 %v415
    %481 = vmatpush.bf16.msra.mxu0 %v411
    %482 = vmatpush.bf16.msra.mxu0 %v407
    %483 = vmatpush.bf16.msra.mxu0 %v403
    %484 = vmatpush.bf16.msra.mxu0 %v399
    %485 = vmatpush.bf16.msra.mxu0 %v395
    %486 = vmatpush.bf16.msra.mxu0 %v391
    %487 = vmatmul.bf16.gmra.mxu0 %v260
    %v488 = vpop.f32.mrf.mxu0
    %v489 = vadd.f32 0.0, %v488
    %v490 = vpop.f32.mrf.mxu0
    %491 = vdwg.mxu0
    %492 = vmatpush.bf16.msra.mxu0 %v420
    %493 = vmatpush.bf16.msra.mxu0 %v416
    %494 = vmatpush.bf16.msra.mxu0 %v412
    %495 = vmatpush.bf16.msra.mxu0 %v408
    %496 = vmatpush.bf16.msra.mxu0 %v404
    %497 = vmatpush.bf16.msra.mxu0 %v400
    %498 = vmatpush.bf16.msra.mxu0 %v396
    %499 = vmatpush.bf16.msra.mxu0 %v392
    %500 = vmatmul.bf16.gmra.mxu0 %v260
    %v501 = vpop.f32.mrf.mxu0
    %v502 = vadd.f32 0.0, %v501
    %v503 = vpop.f32.mrf.mxu0
    %504 = vdwg.mxu0
    %v505 = vadd.f32 %v256, %v463
    %v506 = vadd.f32 %v257, %v476
    %v507 = vadd.f32 %v258, %v489
    %v508 = vadd.f32 %v259, %v502
    %v509 = vxor.u32 %v505, 2147483648
    %v510 = vmul.f32 %v509, 1.442695
    %v511 = vpow.pop %v510
    %v512 = vadd.f32 %v511, 1.0
    %v513 = vrcp.pop %v512
    %v514 = vmul.f32 %v512, %v513
    %v515 = vsub.f32 1.0, %v514
    %v516 = vmul.f32 %v513, %v515
    %v517 = vadd.f32 %v513, %v516
    %vm518 = vweird.f32 %v512
    %vm519 = vweird.f32 %v513
    %vm520 = vmor %vm518, %vm519
    %v521 = vsel %vm520, %v513, %v517
    %v522 = vand.u32 2147483647, %v512
    %vm523 = vcmp.eq.f32.partialorder %v522, 8.507059e+37
    %v524 = vand.u32 %v512, 2147483648
    %v525 = vor.u32 1.1754944e-38, %v524
    %v526 = vsel %vm523, %v525, %v521
    %v527 = vmul.f32 1.0, %v526
    %v528 = vxor.u32 %v506, 2147483648
    %v529 = vmul.f32 %v528, 1.442695
    %v530 = vpow.pop %v529
    %v531 = vadd.f32 %v530, 1.0
    %v532 = vrcp.pop %v531
    %v533 = vmul.f32 %v531, %v532
    %v534 = vsub.f32 1.0, %v533
    %v535 = vmul.f32 %v532, %v534
    %v536 = vadd.f32 %v532, %v535
    %vm537 = vweird.f32 %v531
    %vm538 = vweird.f32 %v532
    %vm539 = vmor %vm537, %vm538
    %v540 = vsel %vm539, %v532, %v536
    %v541 = vand.u32 2147483647, %v531
    %vm542 = vcmp.eq.f32.partialorder %v541, 8.507059e+37
    %v543 = vand.u32 %v531, 2147483648
    %v544 = vor.u32 1.1754944e-38, %v543
    %v545 = vsel %vm542, %v544, %v540
    %v546 = vmul.f32 1.0, %v545
    %v547 = vtanh.pop %v507
    %v548 = vxor.u32 %v508, 2147483648
    %v549 = vmul.f32 %v548, 1.442695
    %v550 = vpow.pop %v549
    %v551 = vadd.f32 %v550, 1.0
    %v552 = vrcp.pop %v551
    %v553 = vmul.f32 %v551, %v552
    %v554 = vsub.f32 1.0, %v553
    %v555 = vmul.f32 %v552, %v554
    %v556 = vadd.f32 %v552, %v555
    %vm557 = vweird.f32 %v551
    %vm558 = vweird.f32 %v552
    %vm559 = vmor %vm557, %vm558
    %v560 = vsel %vm559, %v552, %v556
    %v561 = vand.u32 2147483647, %v551
    %vm562 = vcmp.eq.f32.partialorder %v561, 8.507059e+37
    %v563 = vand.u32 %v551, 2147483648
    %v564 = vor.u32 1.1754944e-38, %v563
    %v565 = vsel %vm562, %v564, %v560
    %v566 = vmul.f32 1.0, %v565
    %v567 = vmul.f32 %v546, %v255
    %v568 = vmul.f32 %v527, %v547
    %v569 = vadd.f32 %v567, %v568
    %v570 = vtanh.pop %v569
    %v571 = vmul.f32 %v566, %v570
    %572 = vst [vmem:[%s4] sm:$0xff] %v571
    %s573 = scalar_lea.vmem [#allocation2], 32
    %v574 = vld [vmem:[%s573] sm:$0xff]
    %v575 = vld [vmem:[%s573 + $0x8] sm:$0xff]
    %v576 = vld [vmem:[%s573 + $0x10] sm:$0xff]
    %v577 = vld [vmem:[%s573 + $0x18] sm:$0xff]
    %v578 = vpack.c.bf16 %v571, %v571
    %v579 = vld [vmem:[%s3] sm:$0xff]
    %v580 = vld [vmem:[%s3 + $0x8] sm:$0xff]
    %v581 = vld [vmem:[%s3 + $0x10] sm:$0xff]
    %v582 = vld [vmem:[%s3 + $0x18] sm:$0xff]
    %v583 = vld [vmem:[%s3 + $0x20] sm:$0xff]
    %v584 = vld [vmem:[%s3 + $0x28] sm:$0xff]
    %v585 = vld [vmem:[%s3 + $0x30] sm:$0xff]
    %v586 = vld [vmem:[%s3 + $0x38] sm:$0xff]
    %v587 = vld [vmem:[%s3 + $0x40] sm:$0xff]
    %v588 = vld [vmem:[%s3 + $0x48] sm:$0xff]
    %v589 = vld [vmem:[%s3 + $0x50] sm:$0xff]
    %v590 = vld [vmem:[%s3 + $0x58] sm:$0xff]
    %v591 = vld [vmem:[%s3 + $0x60] sm:$0xff]
    %v592 = vld [vmem:[%s3 + $0x68] sm:$0xff]
    %v593 = vld [vmem:[%s3 + $0x70] sm:$0xff]
    %v594 = vld [vmem:[%s3 + $0x78] sm:$0xff]
    %v595 = vld [vmem:[%s3 + $0x80] sm:$0xff]
    %v596 = vld [vmem:[%s3 + $0x88] sm:$0xff]
    %v597 = vld [vmem:[%s3 + $0x90] sm:$0xff]
    %v598 = vld [vmem:[%s3 + $0x98] sm:$0xff]
    %v599 = vld [vmem:[%s3 + $0xa0] sm:$0xff]
    %v600 = vld [vmem:[%s3 + $0xa8] sm:$0xff]
    %v601 = vld [vmem:[%s3 + $0xb0] sm:$0xff]
    %v602 = vld [vmem:[%s3 + $0xb8] sm:$0xff]
    %v603 = vld [vmem:[%s3 + $0xc0] sm:$0xff]
    %v604 = vld [vmem:[%s3 + $0xc8] sm:$0xff]
    %v605 = vld [vmem:[%s3 + $0xd0] sm:$0xff]
    %v606 = vld [vmem:[%s3 + $0xd8] sm:$0xff]
    %v607 = vld [vmem:[%s3 + $0xe0] sm:$0xff]
    %v608 = vld [vmem:[%s3 + $0xe8] sm:$0xff]
    %v609 = vld [vmem:[%s3 + $0xf0] sm:$0xff]
    %v610 = vld [vmem:[%s3 + $0xf8] sm:$0xff]
    %v643 = vunpack.c.l.b16 %v579
    %v644 = vunpack.c.h.b16 %v579
    %v645 = vunpack.c.l.b16 %v580
    %v646 = vunpack.c.h.b16 %v580
    %v647 = vunpack.c.l.b16 %v581
    %v648 = vunpack.c.h.b16 %v581
    %v649 = vunpack.c.l.b16 %v582
    %v650 = vunpack.c.h.b16 %v582
    %v651 = vunpack.c.l.b16 %v583
    %v652 = vunpack.c.h.b16 %v583
    %v653 = vunpack.c.l.b16 %v584
    %v654 = vunpack.c.h.b16 %v584
    %v655 = vunpack.c.l.b16 %v585
    %v656 = vunpack.c.h.b16 %v585
    %v657 = vunpack.c.l.b16 %v586
    %v658 = vunpack.c.h.b16 %v586
    %v659 = vunpack.c.l.b16 %v587
    %v660 = vunpack.c.h.b16 %v587
    %v661 = vunpack.c.l.b16 %v588
    %v662 = vunpack.c.h.b16 %v588
    %v663 = vunpack.c.l.b16 %v589
    %v664 = vunpack.c.h.b16 %v589
    %v665 = vunpack.c.l.b16 %v590
    %v666 = vunpack.c.h.b16 %v590
    %v667 = vunpack.c.l.b16 %v591
    %v668 = vunpack.c.h.b16 %v591
    %v669 = vunpack.c.l.b16 %v592
    %v670 = vunpack.c.h.b16 %v592
    %v671 = vunpack.c.l.b16 %v593
    %v672 = vunpack.c.h.b16 %v593
    %v673 = vunpack.c.l.b16 %v594
    %v674 = vunpack.c.h.b16 %v594
    %v675 = vunpack.c.l.b16 %v595
    %v676 = vunpack.c.h.b16 %v595
    %v677 = vunpack.c.l.b16 %v596
    %v678 = vunpack.c.h.b16 %v596
    %v679 = vunpack.c.l.b16 %v597
    %v680 = vunpack.c.h.b16 %v597
    %v681 = vunpack.c.l.b16 %v598
    %v682 = vunpack.c.h.b16 %v598
    %v683 = vunpack.c.l.b16 %v599
    %v684 = vunpack.c.h.b16 %v599
    %v685 = vunpack.c.l.b16 %v600
    %v686 = vunpack.c.h.b16 %v600
    %v687 = vunpack.c.l.b16 %v601
    %v688 = vunpack.c.h.b16 %v601
    %v689 = vunpack.c.l.b16 %v602
    %v690 = vunpack.c.h.b16 %v602
    %v691 = vunpack.c.l.b16 %v603
    %v692 = vunpack.c.h.b16 %v603
    %v693 = vunpack.c.l.b16 %v604
    %v694 = vunpack.c.h.b16 %v604
    %v695 = vunpack.c.l.b16 %v605
    %v696 = vunpack.c.h.b16 %v605
    %v697 = vunpack.c.l.b16 %v606
    %v698 = vunpack.c.h.b16 %v606
    %v699 = vunpack.c.l.b16 %v607
    %v700 = vunpack.c.h.b16 %v607
    %v701 = vunpack.c.l.b16 %v608
    %v702 = vunpack.c.h.b16 %v608
    %v703 = vunpack.c.l.b16 %v609
    %v704 = vunpack.c.h.b16 %v609
    %v705 = vunpack.c.l.b16 %v610
    %v706 = vunpack.c.h.b16 %v610
    %v707 = vpack.c.b16 %v647, %v643
    %v708 = vpack.c.b16 %v648, %v644
    %v709 = vpack.c.b16 %v649, %v645
    %v710 = vpack.c.b16 %v650, %v646
    %v711 = vpack.c.b16 %v655, %v651
    %v712 = vpack.c.b16 %v656, %v652
    %v713 = vpack.c.b16 %v657, %v653
    %v714 = vpack.c.b16 %v658, %v654
    %v715 = vpack.c.b16 %v663, %v659
    %v716 = vpack.c.b16 %v664, %v660
    %v717 = vpack.c.b16 %v665, %v661
    %v718 = vpack.c.b16 %v666, %v662
    %v719 = vpack.c.b16 %v671, %v667
    %v720 = vpack.c.b16 %v672, %v668
    %v721 = vpack.c.b16 %v673, %v669
    %v722 = vpack.c.b16 %v674, %v670
    %v723 = vpack.c.b16 %v679, %v675
    %v724 = vpack.c.b16 %v680, %v676
    %v725 = vpack.c.b16 %v681, %v677
    %v726 = vpack.c.b16 %v682, %v678
    %v727 = vpack.c.b16 %v687, %v683
    %v728 = vpack.c.b16 %v688, %v684
    %v729 = vpack.c.b16 %v689, %v685
    %v730 = vpack.c.b16 %v690, %v686
    %v731 = vpack.c.b16 %v695, %v691
    %v732 = vpack.c.b16 %v696, %v692
    %v733 = vpack.c.b16 %v697, %v693
    %v734 = vpack.c.b16 %v698, %v694
    %v735 = vpack.c.b16 %v703, %v699
    %v736 = vpack.c.b16 %v704, %v700
    %v737 = vpack.c.b16 %v705, %v701
    %v738 = vpack.c.b16 %v706, %v702
    %771 = vmatpush.bf16.msra.mxu0 %v735
    %772 = vmatpush.bf16.msra.mxu0 %v731
    %773 = vmatpush.bf16.msra.mxu0 %v727
    %774 = vmatpush.bf16.msra.mxu0 %v723
    %775 = vmatpush.bf16.msra.mxu0 %v719
    %776 = vmatpush.bf16.msra.mxu0 %v715
    %777 = vmatpush.bf16.msra.mxu0 %v711
    %778 = vmatpush.bf16.msra.mxu0 %v707
    %779 = vmatmul.bf16.gmra.mxu0 %v578
    %v780 = vpop.f32.mrf.mxu0
    %v781 = vadd.f32 0.0, %v780
    %v782 = vpop.f32.mrf.mxu0
    %783 = vdwg.mxu0
    %784 = vmatpush.bf16.msra.mxu0 %v736
    %785 = vmatpush.bf16.msra.mxu0 %v732
    %786 = vmatpush.bf16.msra.mxu0 %v728
    %787 = vmatpush.bf16.msra.mxu0 %v724
    %788 = vmatpush.bf16.msra.mxu0 %v720
    %789 = vmatpush.bf16.msra.mxu0 %v716
    %790 = vmatpush.bf16.msra.mxu0 %v712
    %791 = vmatpush.bf16.msra.mxu0 %v708
    %792 = vmatmul.bf16.gmra.mxu0 %v578
    %v793 = vpop.f32.mrf.mxu0
    %v794 = vadd.f32 0.0, %v793
    %v795 = vpop.f32.mrf.mxu0
    %796 = vdwg.mxu0
    %797 = vmatpush.bf16.msra.mxu0 %v737
    %798 = vmatpush.bf16.msra.mxu0 %v733
    %799 = vmatpush.bf16.msra.mxu0 %v729
    %800 = vmatpush.bf16.msra.mxu0 %v725
    %801 = vmatpush.bf16.msra.mxu0 %v721
    %802 = vmatpush.bf16.msra.mxu0 %v717
    %803 = vmatpush.bf16.msra.mxu0 %v713
    %804 = vmatpush.bf16.msra.mxu0 %v709
    %805 = vmatmul.bf16.gmra.mxu0 %v578
    %v806 = vpop.f32.mrf.mxu0
    %v807 = vadd.f32 0.0, %v806
    %v808 = vpop.f32.mrf.mxu0
    %809 = vdwg.mxu0
    %810 = vmatpush.bf16.msra.mxu0 %v738
    %811 = vmatpush.bf16.msra.mxu0 %v734
    %812 = vmatpush.bf16.msra.mxu0 %v730
    %813 = vmatpush.bf16.msra.mxu0 %v726
    %814 = vmatpush.bf16.msra.mxu0 %v722
    %815 = vmatpush.bf16.msra.mxu0 %v718
    %816 = vmatpush.bf16.msra.mxu0 %v714
    %817 = vmatpush.bf16.msra.mxu0 %v710
    %818 = vmatmul.bf16.gmra.mxu0 %v578
    %v819 = vpop.f32.mrf.mxu0
    %v820 = vadd.f32 0.0, %v819
    %v821 = vpop.f32.mrf.mxu0
    %822 = vdwg.mxu0
    %v823 = vadd.f32 %v574, %v781
    %v824 = vadd.f32 %v575, %v794
    %v825 = vadd.f32 %v576, %v807
    %v826 = vadd.f32 %v577, %v820
    %v827 = vxor.u32 %v823, 2147483648
    %v828 = vmul.f32 %v827, 1.442695
    %v829 = vpow.pop %v828
    %v830 = vadd.f32 %v829, 1.0
    %v831 = vrcp.pop %v830
    %v832 = vmul.f32 %v830, %v831
    %v833 = vsub.f32 1.0, %v832
    %v834 = vmul.f32 %v831, %v833
    %v835 = vadd.f32 %v831, %v834
    %vm836 = vweird.f32 %v830
    %vm837 = vweird.f32 %v831
    %vm838 = vmor %vm836, %vm837
    %v839 = vsel %vm838, %v831, %v835
    %v840 = vand.u32 2147483647, %v830
    %vm841 = vcmp.eq.f32.partialorder %v840, 8.507059e+37
    %v842 = vand.u32 %v830, 2147483648
    %v843 = vor.u32 1.1754944e-38, %v842
    %v844 = vsel %vm841, %v843, %v839
    %v845 = vmul.f32 1.0, %v844
    %v846 = vxor.u32 %v824, 2147483648
    %v847 = vmul.f32 %v846, 1.442695
    %v848 = vpow.pop %v847
    %v849 = vadd.f32 %v848, 1.0
    %v850 = vrcp.pop %v849
    %v851 = vmul.f32 %v849, %v850
    %v852 = vsub.f32 1.0, %v851
    %v853 = vmul.f32 %v850, %v852
    %v854 = vadd.f32 %v850, %v853
    %vm855 = vweird.f32 %v849
    %vm856 = vweird.f32 %v850
    %vm857 = vmor %vm855, %vm856
    %v858 = vsel %vm857, %v850, %v854
    %v859 = vand.u32 2147483647, %v849
    %vm860 = vcmp.eq.f32.partialorder %v859, 8.507059e+37
    %v861 = vand.u32 %v849, 2147483648
    %v862 = vor.u32 1.1754944e-38, %v861
    %v863 = vsel %vm860, %v862, %v858
    %v864 = vmul.f32 1.0, %v863
    %v865 = vtanh.pop %v825
    %v866 = vxor.u32 %v826, 2147483648
    %v867 = vmul.f32 %v866, 1.442695
    %v868 = vpow.pop %v867
    %v869 = vadd.f32 %v868, 1.0
    %v870 = vrcp.pop %v869
    %v871 = vmul.f32 %v869, %v870
    %v872 = vsub.f32 1.0, %v871
    %v873 = vmul.f32 %v870, %v872
    %v874 = vadd.f32 %v870, %v873
    %vm875 = vweird.f32 %v869
    %vm876 = vweird.f32 %v870
    %vm877 = vmor %vm875, %vm876
    %v878 = vsel %vm877, %v870, %v874
    %v879 = vand.u32 2147483647, %v869
    %vm880 = vcmp.eq.f32.partialorder %v879, 8.507059e+37
    %v881 = vand.u32 %v869, 2147483648
    %v882 = vor.u32 1.1754944e-38, %v881
    %v883 = vsel %vm880, %v882, %v878
    %v884 = vmul.f32 1.0, %v883
    %v885 = vmul.f32 %v864, %v569
    %v886 = vmul.f32 %v845, %v865
    %v887 = vadd.f32 %v885, %v886
    %v888 = vtanh.pop %v887
    %v889 = vmul.f32 %v884, %v888
    %s890 = scalar_lea.vmem %s4, 8
    %891 = vst [vmem:[%s890] sm:$0xff] %v889
    %s892 = scalar_lea.vmem [#allocation2], 64
    %v893 = vld [vmem:[%s892] sm:$0xff]
    %v894 = vld [vmem:[%s892 + $0x8] sm:$0xff]
    %v895 = vld [vmem:[%s892 + $0x10] sm:$0xff]
    %v896 = vld [vmem:[%s892 + $0x18] sm:$0xff]
    %v897 = vpack.c.bf16 %v889, %v889
    %v898 = vld [vmem:[%s3] sm:$0xff]
    %v899 = vld [vmem:[%s3 + $0x8] sm:$0xff]
    %v900 = vld [vmem:[%s3 + $0x10] sm:$0xff]
    %v901 = vld [vmem:[%s3 + $0x18] sm:$0xff]
    %v902 = vld [vmem:[%s3 + $0x20] sm:$0xff]
    %v903 = vld [vmem:[%s3 + $0x28] sm:$0xff]
    %v904 = vld [vmem:[%s3 + $0x30] sm:$0xff]
    %v905 = vld [vmem:[%s3 + $0x38] sm:$0xff]
    %v906 = vld [vmem:[%s3 + $0x40] sm:$0xff]
    %v907 = vld [vmem:[%s3 + $0x48] sm:$0xff]
    %v908 = vld [vmem:[%s3 + $0x50] sm:$0xff]
    %v909 = vld [vmem:[%s3 + $0x58] sm:$0xff]
    %v910 = vld [vmem:[%s3 + $0x60] sm:$0xff]
    %v911 = vld [vmem:[%s3 + $0x68] sm:$0xff]
    %v912 = vld [vmem:[%s3 + $0x70] sm:$0xff]
    %v913 = vld [vmem:[%s3 + $0x78] sm:$0xff]
    %v914 = vld [vmem:[%s3 + $0x80] sm:$0xff]
    %v915 = vld [vmem:[%s3 + $0x88] sm:$0xff]
    %v916 = vld [vmem:[%s3 + $0x90] sm:$0xff]
    %v917 = vld [vmem:[%s3 + $0x98] sm:$0xff]
    %v918 = vld [vmem:[%s3 + $0xa0] sm:$0xff]
    %v919 = vld [vmem:[%s3 + $0xa8] sm:$0xff]
    %v920 = vld [vmem:[%s3 + $0xb0] sm:$0xff]
    %v921 = vld [vmem:[%s3 + $0xb8] sm:$0xff]
    %v922 = vld [vmem:[%s3 + $0xc0] sm:$0xff]
    %v923 = vld [vmem:[%s3 + $0xc8] sm:$0xff]
    %v924 = vld [vmem:[%s3 + $0xd0] sm:$0xff]
    %v925 = vld [vmem:[%s3 + $0xd8] sm:$0xff]
    %v926 = vld [vmem:[%s3 + $0xe0] sm:$0xff]
    %v927 = vld [vmem:[%s3 + $0xe8] sm:$0xff]
    %v928 = vld [vmem:[%s3 + $0xf0] sm:$0xff]
    %v929 = vld [vmem:[%s3 + $0xf8] sm:$0xff]
    %v962 = vunpack.c.l.b16 %v898
    %v963 = vunpack.c.h.b16 %v898
    %v964 = vunpack.c.l.b16 %v899
    %v965 = vunpack.c.h.b16 %v899
    %v966 = vunpack.c.l.b16 %v900
    %v967 = vunpack.c.h.b16 %v900
    %v968 = vunpack.c.l.b16 %v901
    %v969 = vunpack.c.h.b16 %v901
    %v970 = vunpack.c.l.b16 %v902
    %v971 = vunpack.c.h.b16 %v902
    %v972 = vunpack.c.l.b16 %v903
    %v973 = vunpack.c.h.b16 %v903
    %v974 = vunpack.c.l.b16 %v904
    %v975 = vunpack.c.h.b16 %v904
    %v976 = vunpack.c.l.b16 %v905
    %v977 = vunpack.c.h.b16 %v905
    %v978 = vunpack.c.l.b16 %v906
    %v979 = vunpack.c.h.b16 %v906
    %v980 = vunpack.c.l.b16 %v907
    %v981 = vunpack.c.h.b16 %v907
    %v982 = vunpack.c.l.b16 %v908
    %v983 = vunpack.c.h.b16 %v908
    %v984 = vunpack.c.l.b16 %v909
    %v985 = vunpack.c.h.b16 %v909
    %v986 = vunpack.c.l.b16 %v910
    %v987 = vunpack.c.h.b16 %v910
    %v988 = vunpack.c.l.b16 %v911
    %v989 = vunpack.c.h.b16 %v911
    %v990 = vunpack.c.l.b16 %v912
    %v991 = vunpack.c.h.b16 %v912
    %v992 = vunpack.c.l.b16 %v913
    %v993 = vunpack.c.h.b16 %v913
    %v994 = vunpack.c.l.b16 %v914
    %v995 = vunpack.c.h.b16 %v914
    %v996 = vunpack.c.l.b16 %v915
    %v997 = vunpack.c.h.b16 %v915
    %v998 = vunpack.c.l.b16 %v916
    %v999 = vunpack.c.h.b16 %v916
    %v1000 = vunpack.c.l.b16 %v917
    %v1001 = vunpack.c.h.b16 %v917
    %v1002 = vunpack.c.l.b16 %v918
    %v1003 = vunpack.c.h.b16 %v918
    %v1004 = vunpack.c.l.b16 %v919
    %v1005 = vunpack.c.h.b16 %v919
    %v1006 = vunpack.c.l.b16 %v920
    %v1007 = vunpack.c.h.b16 %v920
    %v1008 = vunpack.c.l.b16 %v921
    %v1009 = vunpack.c.h.b16 %v921
    %v1010 = vunpack.c.l.b16 %v922
    %v1011 = vunpack.c.h.b16 %v922
    %v1012 = vunpack.c.l.b16 %v923
    %v1013 = vunpack.c.h.b16 %v923
    %v1014 = vunpack.c.l.b16 %v924
    %v1015 = vunpack.c.h.b16 %v924
    %v1016 = vunpack.c.l.b16 %v925
    %v1017 = vunpack.c.h.b16 %v925
    %v1018 = vunpack.c.l.b16 %v926
    %v1019 = vunpack.c.h.b16 %v926
    %v1020 = vunpack.c.l.b16 %v927
    %v1021 = vunpack.c.h.b16 %v927
    %v1022 = vunpack.c.l.b16 %v928
    %v1023 = vunpack.c.h.b16 %v928
    %v1024 = vunpack.c.l.b16 %v929
    %v1025 = vunpack.c.h.b16 %v929
    %v1026 = vpack.c.b16 %v966, %v962
    %v1027 = vpack.c.b16 %v967, %v963
    %v1028 = vpack.c.b16 %v968, %v964
    %v1029 = vpack.c.b16 %v969, %v965
    %v1030 = vpack.c.b16 %v974, %v970
    %v1031 = vpack.c.b16 %v975, %v971
    %v1032 = vpack.c.b16 %v976, %v972
    %v1033 = vpack.c.b16 %v977, %v973
    %v1034 = vpack.c.b16 %v982, %v978
    %v1035 = vpack.c.b16 %v983, %v979
    %v1036 = vpack.c.b16 %v984, %v980
    %v1037 = vpack.c.b16 %v985, %v981
    %v1038 = vpack.c.b16 %v990, %v986
    %v1039 = vpack.c.b16 %v991, %v987
    %v1040 = vpack.c.b16 %v992, %v988
    %v1041 = vpack.c.b16 %v993, %v989
    %v1042 = vpack.c.b16 %v998, %v994
    %v1043 = vpack.c.b16 %v999, %v995
    %v1044 = vpack.c.b16 %v1000, %v996
    %v1045 = vpack.c.b16 %v1001, %v997
    %v1046 = vpack.c.b16 %v1006, %v1002
    %v1047 = vpack.c.b16 %v1007, %v1003
    %v1048 = vpack.c.b16 %v1008, %v1004
    %v1049 = vpack.c.b16 %v1009, %v1005
    %v1050 = vpack.c.b16 %v1014, %v1010
    %v1051 = vpack.c.b16 %v1015, %v1011
    %v1052 = vpack.c.b16 %v1016, %v1012
    %v1053 = vpack.c.b16 %v1017, %v1013
    %v1054 = vpack.c.b16 %v1022, %v1018
    %v1055 = vpack.c.b16 %v1023, %v1019
    %v1056 = vpack.c.b16 %v1024, %v1020
    %v1057 = vpack.c.b16 %v1025, %v1021
    %1090 = vmatpush.bf16.msra.mxu0 %v1054
    %1091 = vmatpush.bf16.msra.mxu0 %v1050
    %1092 = vmatpush.bf16.msra.mxu0 %v1046
    %1093 = vmatpush.bf16.msra.mxu0 %v1042
    %1094 = vmatpush.bf16.msra.mxu0 %v1038
    %1095 = vmatpush.bf16.msra.mxu0 %v1034
    %1096 = vmatpush.bf16.msra.mxu0 %v1030
    %1097 = vmatpush.bf16.msra.mxu0 %v1026
    %1098 = vmatmul.bf16.gmra.mxu0 %v897
    %v1099 = vpop.f32.mrf.mxu0
    %v1100 = vadd.f32 0.0, %v1099
    %v1101 = vpop.f32.mrf.mxu0
    %1102 = vdwg.mxu0
    %1103 = vmatpush.bf16.msra.mxu0 %v1055
    %1104 = vmatpush.bf16.msra.mxu0 %v1051
    %1105 = vmatpush.bf16.msra.mxu0 %v1047
    %1106 = vmatpush.bf16.msra.mxu0 %v1043
    %1107 = vmatpush.bf16.msra.mxu0 %v1039
    %1108 = vmatpush.bf16.msra.mxu0 %v1035
    %1109 = vmatpush.bf16.msra.mxu0 %v1031
    %1110 = vmatpush.bf16.msra.mxu0 %v1027
    %1111 = vmatmul.bf16.gmra.mxu0 %v897
    %v1112 = vpop.f32.mrf.mxu0
    %v1113 = vadd.f32 0.0, %v1112
    %v1114 = vpop.f32.mrf.mxu0
    %1115 = vdwg.mxu0
    %1116 = vmatpush.bf16.msra.mxu0 %v1056
    %1117 = vmatpush.bf16.msra.mxu0 %v1052
    %1118 = vmatpush.bf16.msra.mxu0 %v1048
    %1119 = vmatpush.bf16.msra.mxu0 %v1044
    %1120 = vmatpush.bf16.msra.mxu0 %v1040
    %1121 = vmatpush.bf16.msra.mxu0 %v1036
    %1122 = vmatpush.bf16.msra.mxu0 %v1032
    %1123 = vmatpush.bf16.msra.mxu0 %v1028
    %1124 = vmatmul.bf16.gmra.mxu0 %v897
    %v1125 = vpop.f32.mrf.mxu0
    %v1126 = vadd.f32 0.0, %v1125
    %v1127 = vpop.f32.mrf.mxu0
    %1128 = vdwg.mxu0
    %1129 = vmatpush.bf16.msra.mxu0 %v1057
    %1130 = vmatpush.bf16.msra.mxu0 %v1053
    %1131 = vmatpush.bf16.msra.mxu0 %v1049
    %1132 = vmatpush.bf16.msra.mxu0 %v1045
    %1133 = vmatpush.bf16.msra.mxu0 %v1041
    %1134 = vmatpush.bf16.msra.mxu0 %v1037
    %1135 = vmatpush.bf16.msra.mxu0 %v1033
    %1136 = vmatpush.bf16.msra.mxu0 %v1029
    %1137 = vmatmul.bf16.gmra.mxu0 %v897
    %v1138 = vpop.f32.mrf.mxu0
    %v1139 = vadd.f32 0.0, %v1138
    %v1140 = vpop.f32.mrf.mxu0
    %1141 = vdwg.mxu0
    %v1142 = vadd.f32 %v893, %v1100
    %v1143 = vadd.f32 %v894, %v1113
    %v1144 = vadd.f32 %v895, %v1126
    %v1145 = vadd.f32 %v896, %v1139
    %v1146 = vxor.u32 %v1142, 2147483648
    %v1147 = vmul.f32 %v1146, 1.442695
    %v1148 = vpow.pop %v1147
    %v1149 = vadd.f32 %v1148, 1.0
    %v1150 = vrcp.pop %v1149
    %v1151 = vmul.f32 %v1149, %v1150
    %v1152 = vsub.f32 1.0, %v1151
    %v1153 = vmul.f32 %v1150, %v1152
    %v1154 = vadd.f32 %v1150, %v1153
    %vm1155 = vweird.f32 %v1149
    %vm1156 = vweird.f32 %v1150
    %vm1157 = vmor %vm1155, %vm1156
    %v1158 = vsel %vm1157, %v1150, %v1154
    %v1159 = vand.u32 2147483647, %v1149
    %vm1160 = vcmp.eq.f32.partialorder %v1159, 8.507059e+37
    %v1161 = vand.u32 %v1149, 2147483648
    %v1162 = vor.u32 1.1754944e-38, %v1161
    %v1163 = vsel %vm1160, %v1162, %v1158
    %v1164 = vmul.f32 1.0, %v1163
    %v1165 = vxor.u32 %v1143, 2147483648
    %v1166 = vmul.f32 %v1165, 1.442695
    %v1167 = vpow.pop %v1166
    %v1168 = vadd.f32 %v1167, 1.0
    %v1169 = vrcp.pop %v1168
    %v1170 = vmul.f32 %v1168, %v1169
    %v1171 = vsub.f32 1.0, %v1170
    %v1172 = vmul.f32 %v1169, %v1171
    %v1173 = vadd.f32 %v1169, %v1172
    %vm1174 = vweird.f32 %v1168
    %vm1175 = vweird.f32 %v1169
    %vm1176 = vmor %vm1174, %vm1175
    %v1177 = vsel %vm1176, %v1169, %v1173
    %v1178 = vand.u32 2147483647, %v1168
    %vm1179 = vcmp.eq.f32.partialorder %v1178, 8.507059e+37
    %v1180 = vand.u32 %v1168, 2147483648
    %v1181 = vor.u32 1.1754944e-38, %v1180
    %v1182 = vsel %vm1179, %v1181, %v1177
    %v1183 = vmul.f32 1.0, %v1182
    %v1184 = vtanh.pop %v1144
    %v1185 = vxor.u32 %v1145, 2147483648
    %v1186 = vmul.f32 %v1185, 1.442695
    %v1187 = vpow.pop %v1186
    %v1188 = vadd.f32 %v1187, 1.0
    %v1189 = vrcp.pop %v1188
    %v1190 = vmul.f32 %v1188, %v1189
    %v1191 = vsub.f32 1.0, %v1190
    %v1192 = vmul.f32 %v1189, %v1191
    %v1193 = vadd.f32 %v1189, %v1192
    %vm1194 = vweird.f32 %v1188
    %vm1195 = vweird.f32 %v1189
    %vm1196 = vmor %vm1194, %vm1195
    %v1197 = vsel %vm1196, %v1189, %v1193
    %v1198 = vand.u32 2147483647, %v1188
    %vm1199 = vcmp.eq.f32.partialorder %v1198, 8.507059e+37
    %v1200 = vand.u32 %v1188, 2147483648
    %v1201 = vor.u32 1.1754944e-38, %v1200
    %v1202 = vsel %vm1199, %v1201, %v1197
    %v1203 = vmul.f32 1.0, %v1202
    %v1204 = vmul.f32 %v1183, %v887
    %v1205 = vmul.f32 %v1164, %v1184
    %v1206 = vadd.f32 %v1204, %v1205
    %v1207 = vtanh.pop %v1206
    %v1208 = vmul.f32 %v1203, %v1207
    %s1209 = scalar_lea.vmem %s4, 16
    %1210 = vst [vmem:[%s1209] sm:$0xff] %v1208
    %s1211 = scalar_lea.vmem [#allocation2], 96
    %v1212 = vld [vmem:[%s1211] sm:$0xff]
    %v1213 = vld [vmem:[%s1211 + $0x8] sm:$0xff]
    %v1214 = vld [vmem:[%s1211 + $0x10] sm:$0xff]
    %v1215 = vld [vmem:[%s1211 + $0x18] sm:$0xff]
    %v1216 = vpack.c.bf16 %v1208, %v1208
    %v1217 = vld [vmem:[%s3] sm:$0xff]
    %v1218 = vld [vmem:[%s3 + $0x8] sm:$0xff]
    %v1219 = vld [vmem:[%s3 + $0x10] sm:$0xff]
    %v1220 = vld [vmem:[%s3 + $0x18] sm:$0xff]
    %v1221 = vld [vmem:[%s3 + $0x20] sm:$0xff]
    %v1222 = vld [vmem:[%s3 + $0x28] sm:$0xff]
    %v1223 = vld [vmem:[%s3 + $0x30] sm:$0xff]
    %v1224 = vld [vmem:[%s3 + $0x38] sm:$0xff]
    %v1225 = vld [vmem:[%s3 + $0x40] sm:$0xff]
    %v1226 = vld [vmem:[%s3 + $0x48] sm:$0xff]
    %v1227 = vld [vmem:[%s3 + $0x50] sm:$0xff]
    %v1228 = vld [vmem:[%s3 + $0x58] sm:$0xff]
    %v1229 = vld [vmem:[%s3 + $0x60] sm:$0xff]
    %v1230 = vld [vmem:[%s3 + $0x68] sm:$0xff]
    %v1231 = vld [vmem:[%s3 + $0x70] sm:$0xff]
    %v1232 = vld [vmem:[%s3 + $0x78] sm:$0xff]
    %v1233 = vld [vmem:[%s3 + $0x80] sm:$0xff]
    %v1234 = vld [vmem:[%s3 + $0x88] sm:$0xff]
    %v1235 = vld [vmem:[%s3 + $0x90] sm:$0xff]
    %v1236 = vld [vmem:[%s3 + $0x98] sm:$0xff]
    %v1237 = vld [vmem:[%s3 + $0xa0] sm:$0xff]
    %v1238 = vld [vmem:[%s3 + $0xa8] sm:$0xff]
    %v1239 = vld [vmem:[%s3 + $0xb0] sm:$0xff]
    %v1240 = vld [vmem:[%s3 + $0xb8] sm:$0xff]
    %v1241 = vld [vmem:[%s3 + $0xc0] sm:$0xff]
    %v1242 = vld [vmem:[%s3 + $0xc8] sm:$0xff]
    %v1243 = vld [vmem:[%s3 + $0xd0] sm:$0xff]
    %v1244 = vld [vmem:[%s3 + $0xd8] sm:$0xff]
    %v1245 = vld [vmem:[%s3 + $0xe0] sm:$0xff]
    %v1246 = vld [vmem:[%s3 + $0xe8] sm:$0xff]
    %v1247 = vld [vmem:[%s3 + $0xf0] sm:$0xff]
    %v1248 = vld [vmem:[%s3 + $0xf8] sm:$0xff]
    %v1281 = vunpack.c.l.b16 %v1217
    %v1282 = vunpack.c.h.b16 %v1217
    %v1283 = vunpack.c.l.b16 %v1218
    %v1284 = vunpack.c.h.b16 %v1218
    %v1285 = vunpack.c.l.b16 %v1219
    %v1286 = vunpack.c.h.b16 %v1219
    %v1287 = vunpack.c.l.b16 %v1220
    %v1288 = vunpack.c.h.b16 %v1220
    %v1289 = vunpack.c.l.b16 %v1221
    %v1290 = vunpack.c.h.b16 %v1221
    %v1291 = vunpack.c.l.b16 %v1222
    %v1292 = vunpack.c.h.b16 %v1222
    %v1293 = vunpack.c.l.b16 %v1223
    %v1294 = vunpack.c.h.b16 %v1223
    %v1295 = vunpack.c.l.b16 %v1224
    %v1296 = vunpack.c.h.b16 %v1224
    %v1297 = vunpack.c.l.b16 %v1225
    %v1298 = vunpack.c.h.b16 %v1225
    %v1299 = vunpack.c.l.b16 %v1226
    %v1300 = vunpack.c.h.b16 %v1226
    %v1301 = vunpack.c.l.b16 %v1227
    %v1302 = vunpack.c.h.b16 %v1227
    %v1303 = vunpack.c.l.b16 %v1228
    %v1304 = vunpack.c.h.b16 %v1228
    %v1305 = vunpack.c.l.b16 %v1229
    %v1306 = vunpack.c.h.b16 %v1229
    %v1307 = vunpack.c.l.b16 %v1230
    %v1308 = vunpack.c.h.b16 %v1230
    %v1309 = vunpack.c.l.b16 %v1231
    %v1310 = vunpack.c.h.b16 %v1231
    %v1311 = vunpack.c.l.b16 %v1232
    %v1312 = vunpack.c.h.b16 %v1232
    %v1313 = vunpack.c.l.b16 %v1233
    %v1314 = vunpack.c.h.b16 %v1233
    %v1315 = vunpack.c.l.b16 %v1234
    %v1316 = vunpack.c.h.b16 %v1234
    %v1317 = vunpack.c.l.b16 %v1235
    %v1318 = vunpack.c.h.b16 %v1235
    %v1319 = vunpack.c.l.b16 %v1236
    %v1320 = vunpack.c.h.b16 %v1236
    %v1321 = vunpack.c.l.b16 %v1237
    %v1322 = vunpack.c.h.b16 %v1237
    %v1323 = vunpack.c.l.b16 %v1238
    %v1324 = vunpack.c.h.b16 %v1238
    %v1325 = vunpack.c.l.b16 %v1239
    %v1326 = vunpack.c.h.b16 %v1239
    %v1327 = vunpack.c.l.b16 %v1240
    %v1328 = vunpack.c.h.b16 %v1240
    %v1329 = vunpack.c.l.b16 %v1241
    %v1330 = vunpack.c.h.b16 %v1241
    %v1331 = vunpack.c.l.b16 %v1242
    %v1332 = vunpack.c.h.b16 %v1242
    %v1333 = vunpack.c.l.b16 %v1243
    %v1334 = vunpack.c.h.b16 %v1243
    %v1335 = vunpack.c.l.b16 %v1244
    %v1336 = vunpack.c.h.b16 %v1244
    %v1337 = vunpack.c.l.b16 %v1245
    %v1338 = vunpack.c.h.b16 %v1245
    %v1339 = vunpack.c.l.b16 %v1246
    %v1340 = vunpack.c.h.b16 %v1246
    %v1341 = vunpack.c.l.b16 %v1247
    %v1342 = vunpack.c.h.b16 %v1247
    %v1343 = vunpack.c.l.b16 %v1248
    %v1344 = vunpack.c.h.b16 %v1248
    %v1345 = vpack.c.b16 %v1285, %v1281
    %v1346 = vpack.c.b16 %v1286, %v1282
    %v1347 = vpack.c.b16 %v1287, %v1283
    %v1348 = vpack.c.b16 %v1288, %v1284
    %v1349 = vpack.c.b16 %v1293, %v1289
    %v1350 = vpack.c.b16 %v1294, %v1290
    %v1351 = vpack.c.b16 %v1295, %v1291
    %v1352 = vpack.c.b16 %v1296, %v1292
    %v1353 = vpack.c.b16 %v1301, %v1297
    %v1354 = vpack.c.b16 %v1302, %v1298
    %v1355 = vpack.c.b16 %v1303, %v1299
    %v1356 = vpack.c.b16 %v1304, %v1300
    %v1357 = vpack.c.b16 %v1309, %v1305
    %v1358 = vpack.c.b16 %v1310, %v1306
    %v1359 = vpack.c.b16 %v1311, %v1307
    %v1360 = vpack.c.b16 %v1312, %v1308
    %v1361 = vpack.c.b16 %v1317, %v1313
    %v1362 = vpack.c.b16 %v1318, %v1314
    %v1363 = vpack.c.b16 %v1319, %v1315
    %v1364 = vpack.c.b16 %v1320, %v1316
    %v1365 = vpack.c.b16 %v1325, %v1321
    %v1366 = vpack.c.b16 %v1326, %v1322
    %v1367 = vpack.c.b16 %v1327, %v1323
    %v1368 = vpack.c.b16 %v1328, %v1324
    %v1369 = vpack.c.b16 %v1333, %v1329
    %v1370 = vpack.c.b16 %v1334, %v1330
    %v1371 = vpack.c.b16 %v1335, %v1331
    %v1372 = vpack.c.b16 %v1336, %v1332
    %v1373 = vpack.c.b16 %v1341, %v1337
    %v1374 = vpack.c.b16 %v1342, %v1338
    %v1375 = vpack.c.b16 %v1343, %v1339
    %v1376 = vpack.c.b16 %v1344, %v1340
    %1409 = vmatpush.bf16.msra.mxu0 %v1373
    %1410 = vmatpush.bf16.msra.mxu0 %v1369
    %1411 = vmatpush.bf16.msra.mxu0 %v1365
    %1412 = vmatpush.bf16.msra.mxu0 %v1361
    %1413 = vmatpush.bf16.msra.mxu0 %v1357
    %1414 = vmatpush.bf16.msra.mxu0 %v1353
    %1415 = vmatpush.bf16.msra.mxu0 %v1349
    %1416 = vmatpush.bf16.msra.mxu0 %v1345
    %1417 = vmatmul.bf16.gmra.mxu0 %v1216
    %v1418 = vpop.f32.mrf.mxu0
    %v1419 = vadd.f32 0.0, %v1418
    %v1420 = vpop.f32.mrf.mxu0
    %1421 = vdwg.mxu0
    %1422 = vmatpush.bf16.msra.mxu0 %v1374
    %1423 = vmatpush.bf16.msra.mxu0 %v1370
    %1424 = vmatpush.bf16.msra.mxu0 %v1366
    %1425 = vmatpush.bf16.msra.mxu0 %v1362
    %1426 = vmatpush.bf16.msra.mxu0 %v1358
    %1427 = vmatpush.bf16.msra.mxu0 %v1354
    %1428 = vmatpush.bf16.msra.mxu0 %v1350
    %1429 = vmatpush.bf16.msra.mxu0 %v1346
    %1430 = vmatmul.bf16.gmra.mxu0 %v1216
    %v1431 = vpop.f32.mrf.mxu0
    %v1432 = vadd.f32 0.0, %v1431
    %v1433 = vpop.f32.mrf.mxu0
    %1434 = vdwg.mxu0
    %1435 = vmatpush.bf16.msra.mxu0 %v1375
    %1436 = vmatpush.bf16.msra.mxu0 %v1371
    %1437 = vmatpush.bf16.msra.mxu0 %v1367
    %1438 = vmatpush.bf16.msra.mxu0 %v1363
    %1439 = vmatpush.bf16.msra.mxu0 %v1359
    %1440 = vmatpush.bf16.msra.mxu0 %v1355
    %1441 = vmatpush.bf16.msra.mxu0 %v1351
    %1442 = vmatpush.bf16.msra.mxu0 %v1347
    %1443 = vmatmul.bf16.gmra.mxu0 %v1216
    %v1444 = vpop.f32.mrf.mxu0
    %v1445 = vadd.f32 0.0, %v1444
    %v1446 = vpop.f32.mrf.mxu0
    %1447 = vdwg.mxu0
    %1448 = vmatpush.bf16.msra.mxu0 %v1376
    %1449 = vmatpush.bf16.msra.mxu0 %v1372
    %1450 = vmatpush.bf16.msra.mxu0 %v1368
    %1451 = vmatpush.bf16.msra.mxu0 %v1364
    %1452 = vmatpush.bf16.msra.mxu0 %v1360
    %1453 = vmatpush.bf16.msra.mxu0 %v1356
    %1454 = vmatpush.bf16.msra.mxu0 %v1352
    %1455 = vmatpush.bf16.msra.mxu0 %v1348
    %1456 = vmatmul.bf16.gmra.mxu0 %v1216
    %v1457 = vpop.f32.mrf.mxu0
    %v1458 = vadd.f32 0.0, %v1457
    %v1459 = vpop.f32.mrf.mxu0
    %1460 = vdwg.mxu0
    %v1461 = vadd.f32 %v1212, %v1419
    %v1462 = vadd.f32 %v1213, %v1432
    %v1463 = vadd.f32 %v1214, %v1445
    %v1464 = vadd.f32 %v1215, %v1458
    %v1465 = vxor.u32 %v1461, 2147483648
    %v1466 = vmul.f32 %v1465, 1.442695
    %v1467 = vpow.pop %v1466
    %v1468 = vadd.f32 %v1467, 1.0
    %v1469 = vrcp.pop %v1468
    %v1470 = vmul.f32 %v1468, %v1469
    %v1471 = vsub.f32 1.0, %v1470
    %v1472 = vmul.f32 %v1469, %v1471
    %v1473 = vadd.f32 %v1469, %v1472
    %vm1474 = vweird.f32 %v1468
    %vm1475 = vweird.f32 %v1469
    %vm1476 = vmor %vm1474, %vm1475
    %v1477 = vsel %vm1476, %v1469, %v1473
    %v1478 = vand.u32 2147483647, %v1468
    %vm1479 = vcmp.eq.f32.partialorder %v1478, 8.507059e+37
    %v1480 = vand.u32 %v1468, 2147483648
    %v1481 = vor.u32 1.1754944e-38, %v1480
    %v1482 = vsel %vm1479, %v1481, %v1477
    %v1483 = vmul.f32 1.0, %v1482
    %v1484 = vxor.u32 %v1462, 2147483648
    %v1485 = vmul.f32 %v1484, 1.442695
    %v1486 = vpow.pop %v1485
    %v1487 = vadd.f32 %v1486, 1.0
    %v1488 = vrcp.pop %v1487
    %v1489 = vmul.f32 %v1487, %v1488
    %v1490 = vsub.f32 1.0, %v1489
    %v1491 = vmul.f32 %v1488, %v1490
    %v1492 = vadd.f32 %v1488, %v1491
    %vm1493 = vweird.f32 %v1487
    %vm1494 = vweird.f32 %v1488
    %vm1495 = vmor %vm1493, %vm1494
    %v1496 = vsel %vm1495, %v1488, %v1492
    %v1497 = vand.u32 2147483647, %v1487
    %vm1498 = vcmp.eq.f32.partialorder %v1497, 8.507059e+37
    %v1499 = vand.u32 %v1487, 2147483648
    %v1500 = vor.u32 1.1754944e-38, %v1499
    %v1501 = vsel %vm1498, %v1500, %v1496
    %v1502 = vmul.f32 1.0, %v1501
    %v1503 = vtanh.pop %v1463
    %v1504 = vxor.u32 %v1464, 2147483648
    %v1505 = vmul.f32 %v1504, 1.442695
    %v1506 = vpow.pop %v1505
    %v1507 = vadd.f32 %v1506, 1.0
    %v1508 = vrcp.pop %v1507
    %v1509 = vmul.f32 %v1507, %v1508
    %v1510 = vsub.f32 1.0, %v1509
    %v1511 = vmul.f32 %v1508, %v1510
    %v1512 = vadd.f32 %v1508, %v1511
    %vm1513 = vweird.f32 %v1507
    %vm1514 = vweird.f32 %v1508
    %vm1515 = vmor %vm1513, %vm1514
    %v1516 = vsel %vm1515, %v1508, %v1512
    %v1517 = vand.u32 2147483647, %v1507
    %vm1518 = vcmp.eq.f32.partialorder %v1517, 8.507059e+37
    %v1519 = vand.u32 %v1507, 2147483648
    %v1520 = vor.u32 1.1754944e-38, %v1519
    %v1521 = vsel %vm1518, %v1520, %v1516
    %v1522 = vmul.f32 1.0, %v1521
    %v1523 = vmul.f32 %v1502, %v1206
    %v1524 = vmul.f32 %v1483, %v1503
    %v1525 = vadd.f32 %v1523, %v1524
    %v1526 = vtanh.pop %v1525
    %v1527 = vmul.f32 %v1522, %v1526
    %s1528 = scalar_lea.vmem %s4, 24
    %1529 = vst [vmem:[%s1528] sm:$0xff] %v1527
    %s1530 = scalar_lea.vmem [#allocation2], 128
    %v1531 = vld [vmem:[%s1530] sm:$0xff]
    %v1532 = vld [vmem:[%s1530 + $0x8] sm:$0xff]
    %v1533 = vld [vmem:[%s1530 + $0x10] sm:$0xff]
    %v1534 = vld [vmem:[%s1530 + $0x18] sm:$0xff]
    %v1535 = vpack.c.bf16 %v1527, %v1527
    %v1536 = vld [vmem:[%s3] sm:$0xff]
    %v1537 = vld [vmem:[%s3 + $0x8] sm:$0xff]
    %v1538 = vld [vmem:[%s3 + $0x10] sm:$0xff]
    %v1539 = vld [vmem:[%s3 + $0x18] sm:$0xff]
    %v1540 = vld [vmem:[%s3 + $0x20] sm:$0xff]
    %v1541 = vld [vmem:[%s3 + $0x28] sm:$0xff]
    %v1542 = vld [vmem:[%s3 + $0x30] sm:$0xff]
    %v1543 = vld [vmem:[%s3 + $0x38] sm:$0xff]
    %v1544 = vld [vmem:[%s3 + $0x40] sm:$0xff]
    %v1545 = vld [vmem:[%s3 + $0x48] sm:$0xff]
    %v1546 = vld [vmem:[%s3 + $0x50] sm:$0xff]
    %v1547 = vld [vmem:[%s3 + $0x58] sm:$0xff]
    %v1548 = vld [vmem:[%s3 + $0x60] sm:$0xff]
    %v1549 = vld [vmem:[%s3 + $0x68] sm:$0xff]
    %v1550 = vld [vmem:[%s3 + $0x70] sm:$0xff]
    %v1551 = vld [vmem:[%s3 + $0x78] sm:$0xff]
    %v1552 = vld [vmem:[%s3 + $0x80] sm:$0xff]
    %v1553 = vld [vmem:[%s3 + $0x88] sm:$0xff]
    %v1554 = vld [vmem:[%s3 + $0x90] sm:$0xff]
    %v1555 = vld [vmem:[%s3 + $0x98] sm:$0xff]
    %v1556 = vld [vmem:[%s3 + $0xa0] sm:$0xff]
    %v1557 = vld [vmem:[%s3 + $0xa8] sm:$0xff]
    %v1558 = vld [vmem:[%s3 + $0xb0] sm:$0xff]
    %v1559 = vld [vmem:[%s3 + $0xb8] sm:$0xff]
    %v1560 = vld [vmem:[%s3 + $0xc0] sm:$0xff]
    %v1561 = vld [vmem:[%s3 + $0xc8] sm:$0xff]
    %v1562 = vld [vmem:[%s3 + $0xd0] sm:$0xff]
    %v1563 = vld [vmem:[%s3 + $0xd8] sm:$0xff]
    %v1564 = vld [vmem:[%s3 + $0xe0] sm:$0xff]
    %v1565 = vld [vmem:[%s3 + $0xe8] sm:$0xff]
    %v1566 = vld [vmem:[%s3 + $0xf0] sm:$0xff]
    %v1567 = vld [vmem:[%s3 + $0xf8] sm:$0xff]
    %v1600 = vunpack.c.l.b16 %v1536
    %v1601 = vunpack.c.h.b16 %v1536
    %v1602 = vunpack.c.l.b16 %v1537
    %v1603 = vunpack.c.h.b16 %v1537
    %v1604 = vunpack.c.l.b16 %v1538
    %v1605 = vunpack.c.h.b16 %v1538
    %v1606 = vunpack.c.l.b16 %v1539
    %v1607 = vunpack.c.h.b16 %v1539
    %v1608 = vunpack.c.l.b16 %v1540
    %v1609 = vunpack.c.h.b16 %v1540
    %v1610 = vunpack.c.l.b16 %v1541
    %v1611 = vunpack.c.h.b16 %v1541
    %v1612 = vunpack.c.l.b16 %v1542
    %v1613 = vunpack.c.h.b16 %v1542
    %v1614 = vunpack.c.l.b16 %v1543
    %v1615 = vunpack.c.h.b16 %v1543
    %v1616 = vunpack.c.l.b16 %v1544
    %v1617 = vunpack.c.h.b16 %v1544
    %v1618 = vunpack.c.l.b16 %v1545
    %v1619 = vunpack.c.h.b16 %v1545
    %v1620 = vunpack.c.l.b16 %v1546
    %v1621 = vunpack.c.h.b16 %v1546
    %v1622 = vunpack.c.l.b16 %v1547
    %v1623 = vunpack.c.h.b16 %v1547
    %v1624 = vunpack.c.l.b16 %v1548
    %v1625 = vunpack.c.h.b16 %v1548
    %v1626 = vunpack.c.l.b16 %v1549
    %v1627 = vunpack.c.h.b16 %v1549
    %v1628 = vunpack.c.l.b16 %v1550
    %v1629 = vunpack.c.h.b16 %v1550
    %v1630 = vunpack.c.l.b16 %v1551
    %v1631 = vunpack.c.h.b16 %v1551
    %v1632 = vunpack.c.l.b16 %v1552
    %v1633 = vunpack.c.h.b16 %v1552
    %v1634 = vunpack.c.l.b16 %v1553
    %v1635 = vunpack.c.h.b16 %v1553
    %v1636 = vunpack.c.l.b16 %v1554
    %v1637 = vunpack.c.h.b16 %v1554
    %v1638 = vunpack.c.l.b16 %v1555
    %v1639 = vunpack.c.h.b16 %v1555
    %v1640 = vunpack.c.l.b16 %v1556
    %v1641 = vunpack.c.h.b16 %v1556
    %v1642 = vunpack.c.l.b16 %v1557
    %v1643 = vunpack.c.h.b16 %v1557
    %v1644 = vunpack.c.l.b16 %v1558
    %v1645 = vunpack.c.h.b16 %v1558
    %v1646 = vunpack.c.l.b16 %v1559
    %v1647 = vunpack.c.h.b16 %v1559
    %v1648 = vunpack.c.l.b16 %v1560
    %v1649 = vunpack.c.h.b16 %v1560
    %v1650 = vunpack.c.l.b16 %v1561
    %v1651 = vunpack.c.h.b16 %v1561
    %v1652 = vunpack.c.l.b16 %v1562
    %v1653 = vunpack.c.h.b16 %v1562
    %v1654 = vunpack.c.l.b16 %v1563
    %v1655 = vunpack.c.h.b16 %v1563
    %v1656 = vunpack.c.l.b16 %v1564
    %v1657 = vunpack.c.h.b16 %v1564
    %v1658 = vunpack.c.l.b16 %v1565
    %v1659 = vunpack.c.h.b16 %v1565
    %v1660 = vunpack.c.l.b16 %v1566
    %v1661 = vunpack.c.h.b16 %v1566
    %v1662 = vunpack.c.l.b16 %v1567
    %v1663 = vunpack.c.h.b16 %v1567
    %v1664 = vpack.c.b16 %v1604, %v1600
    %v1665 = vpack.c.b16 %v1605, %v1601
    %v1666 = vpack.c.b16 %v1606, %v1602
    %v1667 = vpack.c.b16 %v1607, %v1603
    %v1668 = vpack.c.b16 %v1612, %v1608
    %v1669 = vpack.c.b16 %v1613, %v1609
    %v1670 = vpack.c.b16 %v1614, %v1610
    %v1671 = vpack.c.b16 %v1615, %v1611
    %v1672 = vpack.c.b16 %v1620, %v1616
    %v1673 = vpack.c.b16 %v1621, %v1617
    %v1674 = vpack.c.b16 %v1622, %v1618
    %v1675 = vpack.c.b16 %v1623, %v1619
    %v1676 = vpack.c.b16 %v1628, %v1624
    %v1677 = vpack.c.b16 %v1629, %v1625
    %v1678 = vpack.c.b16 %v1630, %v1626
    %v1679 = vpack.c.b16 %v1631, %v1627
    %v1680 = vpack.c.b16 %v1636, %v1632
    %v1681 = vpack.c.b16 %v1637, %v1633
    %v1682 = vpack.c.b16 %v1638, %v1634
    %v1683 = vpack.c.b16 %v1639, %v1635
    %v1684 = vpack.c.b16 %v1644, %v1640
    %v1685 = vpack.c.b16 %v1645, %v1641
    %v1686 = vpack.c.b16 %v1646, %v1642
    %v1687 = vpack.c.b16 %v1647, %v1643
    %v1688 = vpack.c.b16 %v1652, %v1648
    %v1689 = vpack.c.b16 %v1653, %v1649
    %v1690 = vpack.c.b16 %v1654, %v1650
    %v1691 = vpack.c.b16 %v1655, %v1651
    %v1692 = vpack.c.b16 %v1660, %v1656
    %v1693 = vpack.c.b16 %v1661, %v1657
    %v1694 = vpack.c.b16 %v1662, %v1658
    %v1695 = vpack.c.b16 %v1663, %v1659
    %1728 = vmatpush.bf16.msra.mxu0 %v1692
    %1729 = vmatpush.bf16.msra.mxu0 %v1688
    %1730 = vmatpush.bf16.msra.mxu0 %v1684
    %1731 = vmatpush.bf16.msra.mxu0 %v1680
    %1732 = vmatpush.bf16.msra.mxu0 %v1676
    %1733 = vmatpush.bf16.msra.mxu0 %v1672
    %1734 = vmatpush.bf16.msra.mxu0 %v1668
    %1735 = vmatpush.bf16.msra.mxu0 %v1664
    %1736 = vmatmul.bf16.gmra.mxu0 %v1535
    %v1737 = vpop.f32.mrf.mxu0
    %v1738 = vadd.f32 0.0, %v1737
    %v1739 = vpop.f32.mrf.mxu0
    %1740 = vdwg.mxu0
    %1741 = vmatpush.bf16.msra.mxu0 %v1693
    %1742 = vmatpush.bf16.msra.mxu0 %v1689
    %1743 = vmatpush.bf16.msra.mxu0 %v1685
    %1744 = vmatpush.bf16.msra.mxu0 %v1681
    %1745 = vmatpush.bf16.msra.mxu0 %v1677
    %1746 = vmatpush.bf16.msra.mxu0 %v1673
    %1747 = vmatpush.bf16.msra.mxu0 %v1669
    %1748 = vmatpush.bf16.msra.mxu0 %v1665
    %1749 = vmatmul.bf16.gmra.mxu0 %v1535
    %v1750 = vpop.f32.mrf.mxu0
    %v1751 = vadd.f32 0.0, %v1750
    %v1752 = vpop.f32.mrf.mxu0
    %1753 = vdwg.mxu0
    %1754 = vmatpush.bf16.msra.mxu0 %v1694
    %1755 = vmatpush.bf16.msra.mxu0 %v1690
    %1756 = vmatpush.bf16.msra.mxu0 %v1686
    %1757 = vmatpush.bf16.msra.mxu0 %v1682
    %1758 = vmatpush.bf16.msra.mxu0 %v1678
    %1759 = vmatpush.bf16.msra.mxu0 %v1674
    %1760 = vmatpush.bf16.msra.mxu0 %v1670
    %1761 = vmatpush.bf16.msra.mxu0 %v1666
    %1762 = vmatmul.bf16.gmra.mxu0 %v1535
    %v1763 = vpop.f32.mrf.mxu0
    %v1764 = vadd.f32 0.0, %v1763
    %v1765 = vpop.f32.mrf.mxu0
    %1766 = vdwg.mxu0
    %1767 = vmatpush.bf16.msra.mxu0 %v1695
    %1768 = vmatpush.bf16.msra.mxu0 %v1691
    %1769 = vmatpush.bf16.msra.mxu0 %v1687
    %1770 = vmatpush.bf16.msra.mxu0 %v1683
    %1771 = vmatpush.bf16.msra.mxu0 %v1679
    %1772 = vmatpush.bf16.msra.mxu0 %v1675
    %1773 = vmatpush.bf16.msra.mxu0 %v1671
    %1774 = vmatpush.bf16.msra.mxu0 %v1667
    %1775 = vmatmul.bf16.gmra.mxu0 %v1535
    %v1776 = vpop.f32.mrf.mxu0
    %v1777 = vadd.f32 0.0, %v1776
    %v1778 = vpop.f32.mrf.mxu0
    %1779 = vdwg.mxu0
    %v1780 = vadd.f32 %v1531, %v1738
    %v1781 = vadd.f32 %v1532, %v1751
    %v1782 = vadd.f32 %v1533, %v1764
    %v1783 = vadd.f32 %v1534, %v1777
    %v1784 = vxor.u32 %v1780, 2147483648
    %v1785 = vmul.f32 %v1784, 1.442695
    %v1786 = vpow.pop %v1785
    %v1787 = vadd.f32 %v1786, 1.0
    %v1788 = vrcp.pop %v1787
    %v1789 = vmul.f32 %v1787, %v1788
    %v1790 = vsub.f32 1.0, %v1789
    %v1791 = vmul.f32 %v1788, %v1790
    %v1792 = vadd.f32 %v1788, %v1791
    %vm1793 = vweird.f32 %v1787
    %vm1794 = vweird.f32 %v1788
    %vm1795 = vmor %vm1793, %vm1794
    %v1796 = vsel %vm1795, %v1788, %v1792
    %v1797 = vand.u32 2147483647, %v1787
    %vm1798 = vcmp.eq.f32.partialorder %v1797, 8.507059e+37
    %v1799 = vand.u32 %v1787, 2147483648
    %v1800 = vor.u32 1.1754944e-38, %v1799
    %v1801 = vsel %vm1798, %v1800, %v1796
    %v1802 = vmul.f32 1.0, %v1801
    %v1803 = vxor.u32 %v1781, 2147483648
    %v1804 = vmul.f32 %v1803, 1.442695
    %v1805 = vpow.pop %v1804
    %v1806 = vadd.f32 %v1805, 1.0
    %v1807 = vrcp.pop %v1806
    %v1808 = vmul.f32 %v1806, %v1807
    %v1809 = vsub.f32 1.0, %v1808
    %v1810 = vmul.f32 %v1807, %v1809
    %v1811 = vadd.f32 %v1807, %v1810
    %vm1812 = vweird.f32 %v1806
    %vm1813 = vweird.f32 %v1807
    %vm1814 = vmor %vm1812, %vm1813
    %v1815 = vsel %vm1814, %v1807, %v1811
    %v1816 = vand.u32 2147483647, %v1806
    %vm1817 = vcmp.eq.f32.partialorder %v1816, 8.507059e+37
    %v1818 = vand.u32 %v1806, 2147483648
    %v1819 = vor.u32 1.1754944e-38, %v1818
    %v1820 = vsel %vm1817, %v1819, %v1815
    %v1821 = vmul.f32 1.0, %v1820
    %v1822 = vtanh.pop %v1782
    %v1823 = vxor.u32 %v1783, 2147483648
    %v1824 = vmul.f32 %v1823, 1.442695
    %v1825 = vpow.pop %v1824
    %v1826 = vadd.f32 %v1825, 1.0
    %v1827 = vrcp.pop %v1826
    %v1828 = vmul.f32 %v1826, %v1827
    %v1829 = vsub.f32 1.0, %v1828
    %v1830 = vmul.f32 %v1827, %v1829
    %v1831 = vadd.f32 %v1827, %v1830
    %vm1832 = vweird.f32 %v1826
    %vm1833 = vweird.f32 %v1827
    %vm1834 = vmor %vm1832, %vm1833
    %v1835 = vsel %vm1834, %v1827, %v1831
    %v1836 = vand.u32 2147483647, %v1826
    %vm1837 = vcmp.eq.f32.partialorder %v1836, 8.507059e+37
    %v1838 = vand.u32 %v1826, 2147483648
    %v1839 = vor.u32 1.1754944e-38, %v1838
    %v1840 = vsel %vm1837, %v1839, %v1835
    %v1841 = vmul.f32 1.0, %v1840
    %v1842 = vmul.f32 %v1821, %v1525
    %v1843 = vmul.f32 %v1802, %v1822
    %v1844 = vadd.f32 %v1842, %v1843
    %v1845 = vtanh.pop %v1844
    %v1846 = vmul.f32 %v1841, %v1845
    %s1847 = scalar_lea.vmem %s4, 32
    %1848 = vst [vmem:[%s1847] sm:$0xff] %v1846
    %s1849 = scalar_lea.vmem [#allocation2], 160
    %v1850 = vld [vmem:[%s1849] sm:$0xff]
    %v1851 = vld [vmem:[%s1849 + $0x8] sm:$0xff]
    %v1852 = vld [vmem:[%s1849 + $0x10] sm:$0xff]
    %v1853 = vld [vmem:[%s1849 + $0x18] sm:$0xff]
    %v1854 = vpack.c.bf16 %v1846, %v1846
    %v1855 = vld [vmem:[%s3] sm:$0xff]
    %v1856 = vld [vmem:[%s3 + $0x8] sm:$0xff]
    %v1857 = vld [vmem:[%s3 + $0x10] sm:$0xff]
    %v1858 = vld [vmem:[%s3 + $0x18] sm:$0xff]
    %v1859 = vld [vmem:[%s3 + $0x20] sm:$0xff]
    %v1860 = vld [vmem:[%s3 + $0x28] sm:$0xff]
    %v1861 = vld [vmem:[%s3 + $0x30] sm:$0xff]
    %v1862 = vld [vmem:[%s3 + $0x38] sm:$0xff]
    %v1863 = vld [vmem:[%s3 + $0x40] sm:$0xff]
    %v1864 = vld [vmem:[%s3 + $0x48] sm:$0xff]
    %v1865 = vld [vmem:[%s3 + $0x50] sm:$0xff]
    %v1866 = vld [vmem:[%s3 + $0x58] sm:$0xff]
    %v1867 = vld [vmem:[%s3 + $0x60] sm:$0xff]
    %v1868 = vld [vmem:[%s3 + $0x68] sm:$0xff]
    %v1869 = vld [vmem:[%s3 + $0x70] sm:$0xff]
    %v1870 = vld [vmem:[%s3 + $0x78] sm:$0xff]
    %v1871 = vld [vmem:[%s3 + $0x80] sm:$0xff]
    %v1872 = vld [vmem:[%s3 + $0x88] sm:$0xff]
    %v1873 = vld [vmem:[%s3 + $0x90] sm:$0xff]
    %v1874 = vld [vmem:[%s3 + $0x98] sm:$0xff]
    %v1875 = vld [vmem:[%s3 + $0xa0] sm:$0xff]
    %v1876 = vld [vmem:[%s3 + $0xa8] sm:$0xff]
    %v1877 = vld [vmem:[%s3 + $0xb0] sm:$0xff]
    %v1878 = vld [vmem:[%s3 + $0xb8] sm:$0xff]
    %v1879 = vld [vmem:[%s3 + $0xc0] sm:$0xff]
    %v1880 = vld [vmem:[%s3 + $0xc8] sm:$0xff]
    %v1881 = vld [vmem:[%s3 + $0xd0] sm:$0xff]
    %v1882 = vld [vmem:[%s3 + $0xd8] sm:$0xff]
    %v1883 = vld [vmem:[%s3 + $0xe0] sm:$0xff]
    %v1884 = vld [vmem:[%s3 + $0xe8] sm:$0xff]
    %v1885 = vld [vmem:[%s3 + $0xf0] sm:$0xff]
    %v1886 = vld [vmem:[%s3 + $0xf8] sm:$0xff]
    %v1919 = vunpack.c.l.b16 %v1855
    %v1920 = vunpack.c.h.b16 %v1855
    %v1921 = vunpack.c.l.b16 %v1856
    %v1922 = vunpack.c.h.b16 %v1856
    %v1923 = vunpack.c.l.b16 %v1857
    %v1924 = vunpack.c.h.b16 %v1857
    %v1925 = vunpack.c.l.b16 %v1858
    %v1926 = vunpack.c.h.b16 %v1858
    %v1927 = vunpack.c.l.b16 %v1859
    %v1928 = vunpack.c.h.b16 %v1859
    %v1929 = vunpack.c.l.b16 %v1860
    %v1930 = vunpack.c.h.b16 %v1860
    %v1931 = vunpack.c.l.b16 %v1861
    %v1932 = vunpack.c.h.b16 %v1861
    %v1933 = vunpack.c.l.b16 %v1862
    %v1934 = vunpack.c.h.b16 %v1862
    %v1935 = vunpack.c.l.b16 %v1863
    %v1936 = vunpack.c.h.b16 %v1863
    %v1937 = vunpack.c.l.b16 %v1864
    %v1938 = vunpack.c.h.b16 %v1864
    %v1939 = vunpack.c.l.b16 %v1865
    %v1940 = vunpack.c.h.b16 %v1865
    %v1941 = vunpack.c.l.b16 %v1866
    %v1942 = vunpack.c.h.b16 %v1866
    %v1943 = vunpack.c.l.b16 %v1867
    %v1944 = vunpack.c.h.b16 %v1867
    %v1945 = vunpack.c.l.b16 %v1868
    %v1946 = vunpack.c.h.b16 %v1868
    %v1947 = vunpack.c.l.b16 %v1869
    %v1948 = vunpack.c.h.b16 %v1869
    %v1949 = vunpack.c.l.b16 %v1870
    %v1950 = vunpack.c.h.b16 %v1870
    %v1951 = vunpack.c.l.b16 %v1871
    %v1952 = vunpack.c.h.b16 %v1871
    %v1953 = vunpack.c.l.b16 %v1872
    %v1954 = vunpack.c.h.b16 %v1872
    %v1955 = vunpack.c.l.b16 %v1873
    %v1956 = vunpack.c.h.b16 %v1873
    %v1957 = vunpack.c.l.b16 %v1874
    %v1958 = vunpack.c.h.b16 %v1874
    %v1959 = vunpack.c.l.b16 %v1875
    %v1960 = vunpack.c.h.b16 %v1875
    %v1961 = vunpack.c.l.b16 %v1876
    %v1962 = vunpack.c.h.b16 %v1876
    %v1963 = vunpack.c.l.b16 %v1877
    %v1964 = vunpack.c.h.b16 %v1877
    %v1965 = vunpack.c.l.b16 %v1878
    %v1966 = vunpack.c.h.b16 %v1878
    %v1967 = vunpack.c.l.b16 %v1879
    %v1968 = vunpack.c.h.b16 %v1879
    %v1969 = vunpack.c.l.b16 %v1880
    %v1970 = vunpack.c.h.b16 %v1880
    %v1971 = vunpack.c.l.b16 %v1881
    %v1972 = vunpack.c.h.b16 %v1881
    %v1973 = vunpack.c.l.b16 %v1882
    %v1974 = vunpack.c.h.b16 %v1882
    %v1975 = vunpack.c.l.b16 %v1883
    %v1976 = vunpack.c.h.b16 %v1883
    %v1977 = vunpack.c.l.b16 %v1884
    %v1978 = vunpack.c.h.b16 %v1884
    %v1979 = vunpack.c.l.b16 %v1885
    %v1980 = vunpack.c.h.b16 %v1885
    %v1981 = vunpack.c.l.b16 %v1886
    %v1982 = vunpack.c.h.b16 %v1886
    %v1983 = vpack.c.b16 %v1923, %v1919
    %v1984 = vpack.c.b16 %v1924, %v1920
    %v1985 = vpack.c.b16 %v1925, %v1921
    %v1986 = vpack.c.b16 %v1926, %v1922
    %v1987 = vpack.c.b16 %v1931, %v1927
    %v1988 = vpack.c.b16 %v1932, %v1928
    %v1989 = vpack.c.b16 %v1933, %v1929
    %v1990 = vpack.c.b16 %v1934, %v1930
    %v1991 = vpack.c.b16 %v1939, %v1935
    %v1992 = vpack.c.b16 %v1940, %v1936
    %v1993 = vpack.c.b16 %v1941, %v1937
    %v1994 = vpack.c.b16 %v1942, %v1938
    %v1995 = vpack.c.b16 %v1947, %v1943
    %v1996 = vpack.c.b16 %v1948, %v1944
    %v1997 = vpack.c.b16 %v1949, %v1945
    %v1998 = vpack.c.b16 %v1950, %v1946
    %v1999 = vpack.c.b16 %v1955, %v1951
    %v2000 = vpack.c.b16 %v1956, %v1952
    %v2001 = vpack.c.b16 %v1957, %v1953
    %v2002 = vpack.c.b16 %v1958, %v1954
    %v2003 = vpack.c.b16 %v1963, %v1959
    %v2004 = vpack.c.b16 %v1964, %v1960
    %v2005 = vpack.c.b16 %v1965, %v1961
    %v2006 = vpack.c.b16 %v1966, %v1962
    %v2007 = vpack.c.b16 %v1971, %v1967
    %v2008 = vpack.c.b16 %v1972, %v1968
    %v2009 = vpack.c.b16 %v1973, %v1969
    %v2010 = vpack.c.b16 %v1974, %v1970
    %v2011 = vpack.c.b16 %v1979, %v1975
    %v2012 = vpack.c.b16 %v1980, %v1976
    %v2013 = vpack.c.b16 %v1981, %v1977
    %v2014 = vpack.c.b16 %v1982, %v1978
    %2047 = vmatpush.bf16.msra.mxu0 %v2011
    %2048 = vmatpush.bf16.msra.mxu0 %v2007
    %2049 = vmatpush.bf16.msra.mxu0 %v2003
    %2050 = vmatpush.bf16.msra.mxu0 %v1999
    %2051 = vmatpush.bf16.msra.mxu0 %v1995
    %2052 = vmatpush.bf16.msra.mxu0 %v1991
    %2053 = vmatpush.bf16.msra.mxu0 %v1987
    %2054 = vmatpush.bf16.msra.mxu0 %v1983
    %2055 = vmatmul.bf16.gmra.mxu0 %v1854
    %v2056 = vpop.f32.mrf.mxu0
    %v2057 = vadd.f32 0.0, %v2056
    %v2058 = vpop.f32.mrf.mxu0
    %2059 = vdwg.mxu0
    %2060 = vmatpush.bf16.msra.mxu0 %v2012
    %2061 = vmatpush.bf16.msra.mxu0 %v2008
    %2062 = vmatpush.bf16.msra.mxu0 %v2004
    %2063 = vmatpush.bf16.msra.mxu0 %v2000
    %2064 = vmatpush.bf16.msra.mxu0 %v1996
    %2065 = vmatpush.bf16.msra.mxu0 %v1992
    %2066 = vmatpush.bf16.msra.mxu0 %v1988
    %2067 = vmatpush.bf16.msra.mxu0 %v1984
    %2068 = vmatmul.bf16.gmra.mxu0 %v1854
    %v2069 = vpop.f32.mrf.mxu0
    %v2070 = vadd.f32 0.0, %v2069
    %v2071 = vpop.f32.mrf.mxu0
    %2072 = vdwg.mxu0
    %2073 = vmatpush.bf16.msra.mxu0 %v2013
    %2074 = vmatpush.bf16.msra.mxu0 %v2009
    %2075 = vmatpush.bf16.msra.mxu0 %v2005
    %2076 = vmatpush.bf16.msra.mxu0 %v2001
    %2077 = vmatpush.bf16.msra.mxu0 %v1997
    %2078 = vmatpush.bf16.msra.mxu0 %v1993
    %2079 = vmatpush.bf16.msra.mxu0 %v1989
    %2080 = vmatpush.bf16.msra.mxu0 %v1985
    %2081 = vmatmul.bf16.gmra.mxu0 %v1854
    %v2082 = vpop.f32.mrf.mxu0
    %v2083 = vadd.f32 0.0, %v2082
    %v2084 = vpop.f32.mrf.mxu0
    %2085 = vdwg.mxu0
    %2086 = vmatpush.bf16.msra.mxu0 %v2014
    %2087 = vmatpush.bf16.msra.mxu0 %v2010
    %2088 = vmatpush.bf16.msra.mxu0 %v2006
    %2089 = vmatpush.bf16.msra.mxu0 %v2002
    %2090 = vmatpush.bf16.msra.mxu0 %v1998
    %2091 = vmatpush.bf16.msra.mxu0 %v1994
    %2092 = vmatpush.bf16.msra.mxu0 %v1990
    %2093 = vmatpush.bf16.msra.mxu0 %v1986
    %2094 = vmatmul.bf16.gmra.mxu0 %v1854
    %v2095 = vpop.f32.mrf.mxu0
    %v2096 = vadd.f32 0.0, %v2095
    %v2097 = vpop.f32.mrf.mxu0
    %2098 = vdwg.mxu0
    %v2099 = vadd.f32 %v1850, %v2057
    %v2100 = vadd.f32 %v1851, %v2070
    %v2101 = vadd.f32 %v1852, %v2083
    %v2102 = vadd.f32 %v1853, %v2096
    %v2103 = vxor.u32 %v2099, 2147483648
    %v2104 = vmul.f32 %v2103, 1.442695
    %v2105 = vpow.pop %v2104
    %v2106 = vadd.f32 %v2105, 1.0
    %v2107 = vrcp.pop %v2106
    %v2108 = vmul.f32 %v2106, %v2107
    %v2109 = vsub.f32 1.0, %v2108
    %v2110 = vmul.f32 %v2107, %v2109
    %v2111 = vadd.f32 %v2107, %v2110
    %vm2112 = vweird.f32 %v2106
    %vm2113 = vweird.f32 %v2107
    %vm2114 = vmor %vm2112, %vm2113
    %v2115 = vsel %vm2114, %v2107, %v2111
    %v2116 = vand.u32 2147483647, %v2106
    %vm2117 = vcmp.eq.f32.partialorder %v2116, 8.507059e+37
    %v2118 = vand.u32 %v2106, 2147483648
    %v2119 = vor.u32 1.1754944e-38, %v2118
    %v2120 = vsel %vm2117, %v2119, %v2115
    %v2121 = vmul.f32 1.0, %v2120
    %v2122 = vxor.u32 %v2100, 2147483648
    %v2123 = vmul.f32 %v2122, 1.442695
    %v2124 = vpow.pop %v2123
    %v2125 = vadd.f32 %v2124, 1.0
    %v2126 = vrcp.pop %v2125
    %v2127 = vmul.f32 %v2125, %v2126
    %v2128 = vsub.f32 1.0, %v2127
    %v2129 = vmul.f32 %v2126, %v2128
    %v2130 = vadd.f32 %v2126, %v2129
    %vm2131 = vweird.f32 %v2125
    %vm2132 = vweird.f32 %v2126
    %vm2133 = vmor %vm2131, %vm2132
    %v2134 = vsel %vm2133, %v2126, %v2130
    %v2135 = vand.u32 2147483647, %v2125
    %vm2136 = vcmp.eq.f32.partialorder %v2135, 8.507059e+37
    %v2137 = vand.u32 %v2125, 2147483648
    %v2138 = vor.u32 1.1754944e-38, %v2137
    %v2139 = vsel %vm2136, %v2138, %v2134
    %v2140 = vmul.f32 1.0, %v2139
    %v2141 = vtanh.pop %v2101
    %v2142 = vxor.u32 %v2102, 2147483648
    %v2143 = vmul.f32 %v2142, 1.442695
    %v2144 = vpow.pop %v2143
    %v2145 = vadd.f32 %v2144, 1.0
    %v2146 = vrcp.pop %v2145
    %v2147 = vmul.f32 %v2145, %v2146
    %v2148 = vsub.f32 1.0, %v2147
    %v2149 = vmul.f32 %v2146, %v2148
    %v2150 = vadd.f32 %v2146, %v2149
    %vm2151 = vweird.f32 %v2145
    %vm2152 = vweird.f32 %v2146
    %vm2153 = vmor %vm2151, %vm2152
    %v2154 = vsel %vm2153, %v2146, %v2150
    %v2155 = vand.u32 2147483647, %v2145
    %vm2156 = vcmp.eq.f32.partialorder %v2155, 8.507059e+37
    %v2157 = vand.u32 %v2145, 2147483648
    %v2158 = vor.u32 1.1754944e-38, %v2157
    %v2159 = vsel %vm2156, %v2158, %v2154
    %v2160 = vmul.f32 1.0, %v2159
    %v2161 = vmul.f32 %v2140, %v1844
    %v2162 = vmul.f32 %v2121, %v2141
    %v2163 = vadd.f32 %v2161, %v2162
    %v2164 = vtanh.pop %v2163
    %v2165 = vmul.f32 %v2160, %v2164
    %s2166 = scalar_lea.vmem %s4, 40
    %2167 = vst [vmem:[%s2166] sm:$0xff] %v2165
    %s2168 = scalar_lea.vmem [#allocation2], 192
    %v2169 = vld [vmem:[%s2168] sm:$0xff]
    %v2170 = vld [vmem:[%s2168 + $0x8] sm:$0xff]
    %v2171 = vld [vmem:[%s2168 + $0x10] sm:$0xff]
    %v2172 = vld [vmem:[%s2168 + $0x18] sm:$0xff]
    %v2173 = vpack.c.bf16 %v2165, %v2165
    %v2174 = vld [vmem:[%s3] sm:$0xff]
    %v2175 = vld [vmem:[%s3 + $0x8] sm:$0xff]
    %v2176 = vld [vmem:[%s3 + $0x10] sm:$0xff]
    %v2177 = vld [vmem:[%s3 + $0x18] sm:$0xff]
    %v2178 = vld [vmem:[%s3 + $0x20] sm:$0xff]
    %v2179 = vld [vmem:[%s3 + $0x28] sm:$0xff]
    %v2180 = vld [vmem:[%s3 + $0x30] sm:$0xff]
    %v2181 = vld [vmem:[%s3 + $0x38] sm:$0xff]
    %v2182 = vld [vmem:[%s3 + $0x40] sm:$0xff]
    %v2183 = vld [vmem:[%s3 + $0x48] sm:$0xff]
    %v2184 = vld [vmem:[%s3 + $0x50] sm:$0xff]
    %v2185 = vld [vmem:[%s3 + $0x58] sm:$0xff]
    %v2186 = vld [vmem:[%s3 + $0x60] sm:$0xff]
    %v2187 = vld [vmem:[%s3 + $0x68] sm:$0xff]
    %v2188 = vld [vmem:[%s3 + $0x70] sm:$0xff]
    %v2189 = vld [vmem:[%s3 + $0x78] sm:$0xff]
    %v2190 = vld [vmem:[%s3 + $0x80] sm:$0xff]
    %v2191 = vld [vmem:[%s3 + $0x88] sm:$0xff]
    %v2192 = vld [vmem:[%s3 + $0x90] sm:$0xff]
    %v2193 = vld [vmem:[%s3 + $0x98] sm:$0xff]
    %v2194 = vld [vmem:[%s3 + $0xa0] sm:$0xff]
    %v2195 = vld [vmem:[%s3 + $0xa8] sm:$0xff]
    %v2196 = vld [vmem:[%s3 + $0xb0] sm:$0xff]
    %v2197 = vld [vmem:[%s3 + $0xb8] sm:$0xff]
    %v2198 = vld [vmem:[%s3 + $0xc0] sm:$0xff]
    %v2199 = vld [vmem:[%s3 + $0xc8] sm:$0xff]
    %v2200 = vld [vmem:[%s3 + $0xd0] sm:$0xff]
    %v2201 = vld [vmem:[%s3 + $0xd8] sm:$0xff]
    %v2202 = vld [vmem:[%s3 + $0xe0] sm:$0xff]
    %v2203 = vld [vmem:[%s3 + $0xe8] sm:$0xff]
    %v2204 = vld [vmem:[%s3 + $0xf0] sm:$0xff]
    %v2205 = vld [vmem:[%s3 + $0xf8] sm:$0xff]
    %v2238 = vunpack.c.l.b16 %v2174
    %v2239 = vunpack.c.h.b16 %v2174
    %v2240 = vunpack.c.l.b16 %v2175
    %v2241 = vunpack.c.h.b16 %v2175
    %v2242 = vunpack.c.l.b16 %v2176
    %v2243 = vunpack.c.h.b16 %v2176
    %v2244 = vunpack.c.l.b16 %v2177
    %v2245 = vunpack.c.h.b16 %v2177
    %v2246 = vunpack.c.l.b16 %v2178
    %v2247 = vunpack.c.h.b16 %v2178
    %v2248 = vunpack.c.l.b16 %v2179
    %v2249 = vunpack.c.h.b16 %v2179
    %v2250 = vunpack.c.l.b16 %v2180
    %v2251 = vunpack.c.h.b16 %v2180
    %v2252 = vunpack.c.l.b16 %v2181
    %v2253 = vunpack.c.h.b16 %v2181
    %v2254 = vunpack.c.l.b16 %v2182
    %v2255 = vunpack.c.h.b16 %v2182
    %v2256 = vunpack.c.l.b16 %v2183
    %v2257 = vunpack.c.h.b16 %v2183
    %v2258 = vunpack.c.l.b16 %v2184
    %v2259 = vunpack.c.h.b16 %v2184
    %v2260 = vunpack.c.l.b16 %v2185
    %v2261 = vunpack.c.h.b16 %v2185
    %v2262 = vunpack.c.l.b16 %v2186
    %v2263 = vunpack.c.h.b16 %v2186
    %v2264 = vunpack.c.l.b16 %v2187
    %v2265 = vunpack.c.h.b16 %v2187
    %v2266 = vunpack.c.l.b16 %v2188
    %v2267 = vunpack.c.h.b16 %v2188
    %v2268 = vunpack.c.l.b16 %v2189
    %v2269 = vunpack.c.h.b16 %v2189
    %v2270 = vunpack.c.l.b16 %v2190
    %v2271 = vunpack.c.h.b16 %v2190
    %v2272 = vunpack.c.l.b16 %v2191
    %v2273 = vunpack.c.h.b16 %v2191
    %v2274 = vunpack.c.l.b16 %v2192
    %v2275 = vunpack.c.h.b16 %v2192
    %v2276 = vunpack.c.l.b16 %v2193
    %v2277 = vunpack.c.h.b16 %v2193
    %v2278 = vunpack.c.l.b16 %v2194
    %v2279 = vunpack.c.h.b16 %v2194
    %v2280 = vunpack.c.l.b16 %v2195
    %v2281 = vunpack.c.h.b16 %v2195
    %v2282 = vunpack.c.l.b16 %v2196
    %v2283 = vunpack.c.h.b16 %v2196
    %v2284 = vunpack.c.l.b16 %v2197
    %v2285 = vunpack.c.h.b16 %v2197
    %v2286 = vunpack.c.l.b16 %v2198
    %v2287 = vunpack.c.h.b16 %v2198
    %v2288 = vunpack.c.l.b16 %v2199
    %v2289 = vunpack.c.h.b16 %v2199
    %v2290 = vunpack.c.l.b16 %v2200
    %v2291 = vunpack.c.h.b16 %v2200
    %v2292 = vunpack.c.l.b16 %v2201
    %v2293 = vunpack.c.h.b16 %v2201
    %v2294 = vunpack.c.l.b16 %v2202
    %v2295 = vunpack.c.h.b16 %v2202
    %v2296 = vunpack.c.l.b16 %v2203
    %v2297 = vunpack.c.h.b16 %v2203
    %v2298 = vunpack.c.l.b16 %v2204
    %v2299 = vunpack.c.h.b16 %v2204
    %v2300 = vunpack.c.l.b16 %v2205
    %v2301 = vunpack.c.h.b16 %v2205
    %v2302 = vpack.c.b16 %v2242, %v2238
    %v2303 = vpack.c.b16 %v2243, %v2239
    %v2304 = vpack.c.b16 %v2244, %v2240
    %v2305 = vpack.c.b16 %v2245, %v2241
    %v2306 = vpack.c.b16 %v2250, %v2246
    %v2307 = vpack.c.b16 %v2251, %v2247
    %v2308 = vpack.c.b16 %v2252, %v2248
    %v2309 = vpack.c.b16 %v2253, %v2249
    %v2310 = vpack.c.b16 %v2258, %v2254
    %v2311 = vpack.c.b16 %v2259, %v2255
    %v2312 = vpack.c.b16 %v2260, %v2256
    %v2313 = vpack.c.b16 %v2261, %v2257
    %v2314 = vpack.c.b16 %v2266, %v2262
    %v2315 = vpack.c.b16 %v2267, %v2263
    %v2316 = vpack.c.b16 %v2268, %v2264
    %v2317 = vpack.c.b16 %v2269, %v2265
    %v2318 = vpack.c.b16 %v2274, %v2270
    %v2319 = vpack.c.b16 %v2275, %v2271
    %v2320 = vpack.c.b16 %v2276, %v2272
    %v2321 = vpack.c.b16 %v2277, %v2273
    %v2322 = vpack.c.b16 %v2282, %v2278
    %v2323 = vpack.c.b16 %v2283, %v2279
    %v2324 = vpack.c.b16 %v2284, %v2280
    %v2325 = vpack.c.b16 %v2285, %v2281
    %v2326 = vpack.c.b16 %v2290, %v2286
    %v2327 = vpack.c.b16 %v2291, %v2287
    %v2328 = vpack.c.b16 %v2292, %v2288
    %v2329 = vpack.c.b16 %v2293, %v2289
    %v2330 = vpack.c.b16 %v2298, %v2294
    %v2331 = vpack.c.b16 %v2299, %v2295
    %v2332 = vpack.c.b16 %v2300, %v2296
    %v2333 = vpack.c.b16 %v2301, %v2297
    %2366 = vmatpush.bf16.msra.mxu0 %v2330
    %2367 = vmatpush.bf16.msra.mxu0 %v2326
    %2368 = vmatpush.bf16.msra.mxu0 %v2322
    %2369 = vmatpush.bf16.msra.mxu0 %v2318
    %2370 = vmatpush.bf16.msra.mxu0 %v2314
    %2371 = vmatpush.bf16.msra.mxu0 %v2310
    %2372 = vmatpush.bf16.msra.mxu0 %v2306
    %2373 = vmatpush.bf16.msra.mxu0 %v2302
    %2374 = vmatmul.bf16.gmra.mxu0 %v2173
    %v2375 = vpop.f32.mrf.mxu0
    %v2376 = vadd.f32 0.0, %v2375
    %v2377 = vpop.f32.mrf.mxu0
    %2378 = vdwg.mxu0
    %2379 = vmatpush.bf16.msra.mxu0 %v2331
    %2380 = vmatpush.bf16.msra.mxu0 %v2327
    %2381 = vmatpush.bf16.msra.mxu0 %v2323
    %2382 = vmatpush.bf16.msra.mxu0 %v2319
    %2383 = vmatpush.bf16.msra.mxu0 %v2315
    %2384 = vmatpush.bf16.msra.mxu0 %v2311
    %2385 = vmatpush.bf16.msra.mxu0 %v2307
    %2386 = vmatpush.bf16.msra.mxu0 %v2303
    %2387 = vmatmul.bf16.gmra.mxu0 %v2173
    %v2388 = vpop.f32.mrf.mxu0
    %v2389 = vadd.f32 0.0, %v2388
    %v2390 = vpop.f32.mrf.mxu0
    %2391 = vdwg.mxu0
    %2392 = vmatpush.bf16.msra.mxu0 %v2332
    %2393 = vmatpush.bf16.msra.mxu0 %v2328
    %2394 = vmatpush.bf16.msra.mxu0 %v2324
    %2395 = vmatpush.bf16.msra.mxu0 %v2320
    %2396 = vmatpush.bf16.msra.mxu0 %v2316
    %2397 = vmatpush.bf16.msra.mxu0 %v2312
    %2398 = vmatpush.bf16.msra.mxu0 %v2308
    %2399 = vmatpush.bf16.msra.mxu0 %v2304
    %2400 = vmatmul.bf16.gmra.mxu0 %v2173
    %v2401 = vpop.f32.mrf.mxu0
    %v2402 = vadd.f32 0.0, %v2401
    %v2403 = vpop.f32.mrf.mxu0
    %2404 = vdwg.mxu0
    %2405 = vmatpush.bf16.msra.mxu0 %v2333
    %2406 = vmatpush.bf16.msra.mxu0 %v2329
    %2407 = vmatpush.bf16.msra.mxu0 %v2325
    %2408 = vmatpush.bf16.msra.mxu0 %v2321
    %2409 = vmatpush.bf16.msra.mxu0 %v2317
    %2410 = vmatpush.bf16.msra.mxu0 %v2313
    %2411 = vmatpush.bf16.msra.mxu0 %v2309
    %2412 = vmatpush.bf16.msra.mxu0 %v2305
    %2413 = vmatmul.bf16.gmra.mxu0 %v2173
    %v2414 = vpop.f32.mrf.mxu0
    %v2415 = vadd.f32 0.0, %v2414
    %v2416 = vpop.f32.mrf.mxu0
    %2417 = vdwg.mxu0
    %v2418 = vadd.f32 %v2169, %v2376
    %v2419 = vadd.f32 %v2170, %v2389
    %v2420 = vadd.f32 %v2171, %v2402
    %v2421 = vadd.f32 %v2172, %v2415
    %v2422 = vxor.u32 %v2418, 2147483648
    %v2423 = vmul.f32 %v2422, 1.442695
    %v2424 = vpow.pop %v2423
    %v2425 = vadd.f32 %v2424, 1.0
    %v2426 = vrcp.pop %v2425
    %v2427 = vmul.f32 %v2425, %v2426
    %v2428 = vsub.f32 1.0, %v2427
    %v2429 = vmul.f32 %v2426, %v2428
    %v2430 = vadd.f32 %v2426, %v2429
    %vm2431 = vweird.f32 %v2425
    %vm2432 = vweird.f32 %v2426
    %vm2433 = vmor %vm2431, %vm2432
    %v2434 = vsel %vm2433, %v2426, %v2430
    %v2435 = vand.u32 2147483647, %v2425
    %vm2436 = vcmp.eq.f32.partialorder %v2435, 8.507059e+37
    %v2437 = vand.u32 %v2425, 2147483648
    %v2438 = vor.u32 1.1754944e-38, %v2437
    %v2439 = vsel %vm2436, %v2438, %v2434
    %v2440 = vmul.f32 1.0, %v2439
    %v2441 = vxor.u32 %v2419, 2147483648
    %v2442 = vmul.f32 %v2441, 1.442695
    %v2443 = vpow.pop %v2442
    %v2444 = vadd.f32 %v2443, 1.0
    %v2445 = vrcp.pop %v2444
    %v2446 = vmul.f32 %v2444, %v2445
    %v2447 = vsub.f32 1.0, %v2446
    %v2448 = vmul.f32 %v2445, %v2447
    %v2449 = vadd.f32 %v2445, %v2448
    %vm2450 = vweird.f32 %v2444
    %vm2451 = vweird.f32 %v2445
    %vm2452 = vmor %vm2450, %vm2451
    %v2453 = vsel %vm2452, %v2445, %v2449
    %v2454 = vand.u32 2147483647, %v2444
    %vm2455 = vcmp.eq.f32.partialorder %v2454, 8.507059e+37
    %v2456 = vand.u32 %v2444, 2147483648
    %v2457 = vor.u32 1.1754944e-38, %v2456
    %v2458 = vsel %vm2455, %v2457, %v2453
    %v2459 = vmul.f32 1.0, %v2458
    %v2460 = vtanh.pop %v2420
    %v2461 = vxor.u32 %v2421, 2147483648
    %v2462 = vmul.f32 %v2461, 1.442695
    %v2463 = vpow.pop %v2462
    %v2464 = vadd.f32 %v2463, 1.0
    %v2465 = vrcp.pop %v2464
    %v2466 = vmul.f32 %v2464, %v2465
    %v2467 = vsub.f32 1.0, %v2466
    %v2468 = vmul.f32 %v2465, %v2467
    %v2469 = vadd.f32 %v2465, %v2468
    %vm2470 = vweird.f32 %v2464
    %vm2471 = vweird.f32 %v2465
    %vm2472 = vmor %vm2470, %vm2471
    %v2473 = vsel %vm2472, %v2465, %v2469
    %v2474 = vand.u32 2147483647, %v2464
    %vm2475 = vcmp.eq.f32.partialorder %v2474, 8.507059e+37
    %v2476 = vand.u32 %v2464, 2147483648
    %v2477 = vor.u32 1.1754944e-38, %v2476
    %v2478 = vsel %vm2475, %v2477, %v2473
    %v2479 = vmul.f32 1.0, %v2478
    %v2480 = vmul.f32 %v2459, %v2163
    %v2481 = vmul.f32 %v2440, %v2460
    %v2482 = vadd.f32 %v2480, %v2481
    %v2483 = vtanh.pop %v2482
    %v2484 = vmul.f32 %v2479, %v2483
    %s2485 = scalar_lea.vmem %s4, 48
    %2486 = vst [vmem:[%s2485] sm:$0xff] %v2484
    %s2487 = scalar_lea.vmem [#allocation2], 224
    %v2488 = vld [vmem:[%s2487] sm:$0xff]
    %v2489 = vld [vmem:[%s2487 + $0x8] sm:$0xff]
    %v2490 = vld [vmem:[%s2487 + $0x10] sm:$0xff]
    %v2491 = vld [vmem:[%s2487 + $0x18] sm:$0xff]
    %v2492 = vpack.c.bf16 %v2484, %v2484
    %v2493 = vld [vmem:[%s3] sm:$0xff]
    %v2494 = vld [vmem:[%s3 + $0x8] sm:$0xff]
    %v2495 = vld [vmem:[%s3 + $0x10] sm:$0xff]
    %v2496 = vld [vmem:[%s3 + $0x18] sm:$0xff]
    %v2497 = vld [vmem:[%s3 + $0x20] sm:$0xff]
    %v2498 = vld [vmem:[%s3 + $0x28] sm:$0xff]
    %v2499 = vld [vmem:[%s3 + $0x30] sm:$0xff]
    %v2500 = vld [vmem:[%s3 + $0x38] sm:$0xff]
    %v2501 = vld [vmem:[%s3 + $0x40] sm:$0xff]
    %v2502 = vld [vmem:[%s3 + $0x48] sm:$0xff]
    %v2503 = vld [vmem:[%s3 + $0x50] sm:$0xff]
    %v2504 = vld [vmem:[%s3 + $0x58] sm:$0xff]
    %v2505 = vld [vmem:[%s3 + $0x60] sm:$0xff]
    %v2506 = vld [vmem:[%s3 + $0x68] sm:$0xff]
    %v2507 = vld [vmem:[%s3 + $0x70] sm:$0xff]
    %v2508 = vld [vmem:[%s3 + $0x78] sm:$0xff]
    %v2509 = vld [vmem:[%s3 + $0x80] sm:$0xff]
    %v2510 = vld [vmem:[%s3 + $0x88] sm:$0xff]
    %v2511 = vld [vmem:[%s3 + $0x90] sm:$0xff]
    %v2512 = vld [vmem:[%s3 + $0x98] sm:$0xff]
    %v2513 = vld [vmem:[%s3 + $0xa0] sm:$0xff]
    %v2514 = vld [vmem:[%s3 + $0xa8] sm:$0xff]
    %v2515 = vld [vmem:[%s3 + $0xb0] sm:$0xff]
    %v2516 = vld [vmem:[%s3 + $0xb8] sm:$0xff]
    %v2517 = vld [vmem:[%s3 + $0xc0] sm:$0xff]
    %v2518 = vld [vmem:[%s3 + $0xc8] sm:$0xff]
    %v2519 = vld [vmem:[%s3 + $0xd0] sm:$0xff]
    %v2520 = vld [vmem:[%s3 + $0xd8] sm:$0xff]
    %v2521 = vld [vmem:[%s3 + $0xe0] sm:$0xff]
    %v2522 = vld [vmem:[%s3 + $0xe8] sm:$0xff]
    %v2523 = vld [vmem:[%s3 + $0xf0] sm:$0xff]
    %v2524 = vld [vmem:[%s3 + $0xf8] sm:$0xff]
    %v2557 = vunpack.c.l.b16 %v2493
    %v2558 = vunpack.c.h.b16 %v2493
    %v2559 = vunpack.c.l.b16 %v2494
    %v2560 = vunpack.c.h.b16 %v2494
    %v2561 = vunpack.c.l.b16 %v2495
    %v2562 = vunpack.c.h.b16 %v2495
    %v2563 = vunpack.c.l.b16 %v2496
    %v2564 = vunpack.c.h.b16 %v2496
    %v2565 = vunpack.c.l.b16 %v2497
    %v2566 = vunpack.c.h.b16 %v2497
    %v2567 = vunpack.c.l.b16 %v2498
    %v2568 = vunpack.c.h.b16 %v2498
    %v2569 = vunpack.c.l.b16 %v2499
    %v2570 = vunpack.c.h.b16 %v2499
    %v2571 = vunpack.c.l.b16 %v2500
    %v2572 = vunpack.c.h.b16 %v2500
    %v2573 = vunpack.c.l.b16 %v2501
    %v2574 = vunpack.c.h.b16 %v2501
    %v2575 = vunpack.c.l.b16 %v2502
    %v2576 = vunpack.c.h.b16 %v2502
    %v2577 = vunpack.c.l.b16 %v2503
    %v2578 = vunpack.c.h.b16 %v2503
    %v2579 = vunpack.c.l.b16 %v2504
    %v2580 = vunpack.c.h.b16 %v2504
    %v2581 = vunpack.c.l.b16 %v2505
    %v2582 = vunpack.c.h.b16 %v2505
    %v2583 = vunpack.c.l.b16 %v2506
    %v2584 = vunpack.c.h.b16 %v2506
    %v2585 = vunpack.c.l.b16 %v2507
    %v2586 = vunpack.c.h.b16 %v2507
    %v2587 = vunpack.c.l.b16 %v2508
    %v2588 = vunpack.c.h.b16 %v2508
    %v2589 = vunpack.c.l.b16 %v2509
    %v2590 = vunpack.c.h.b16 %v2509
    %v2591 = vunpack.c.l.b16 %v2510
    %v2592 = vunpack.c.h.b16 %v2510
    %v2593 = vunpack.c.l.b16 %v2511
    %v2594 = vunpack.c.h.b16 %v2511
    %v2595 = vunpack.c.l.b16 %v2512
    %v2596 = vunpack.c.h.b16 %v2512
    %v2597 = vunpack.c.l.b16 %v2513
    %v2598 = vunpack.c.h.b16 %v2513
    %v2599 = vunpack.c.l.b16 %v2514
    %v2600 = vunpack.c.h.b16 %v2514
    %v2601 = vunpack.c.l.b16 %v2515
    %v2602 = vunpack.c.h.b16 %v2515
    %v2603 = vunpack.c.l.b16 %v2516
    %v2604 = vunpack.c.h.b16 %v2516
    %v2605 = vunpack.c.l.b16 %v2517
    %v2606 = vunpack.c.h.b16 %v2517
    %v2607 = vunpack.c.l.b16 %v2518
    %v2608 = vunpack.c.h.b16 %v2518
    %v2609 = vunpack.c.l.b16 %v2519
    %v2610 = vunpack.c.h.b16 %v2519
    %v2611 = vunpack.c.l.b16 %v2520
    %v2612 = vunpack.c.h.b16 %v2520
    %v2613 = vunpack.c.l.b16 %v2521
    %v2614 = vunpack.c.h.b16 %v2521
    %v2615 = vunpack.c.l.b16 %v2522
    %v2616 = vunpack.c.h.b16 %v2522
    %v2617 = vunpack.c.l.b16 %v2523
    %v2618 = vunpack.c.h.b16 %v2523
    %v2619 = vunpack.c.l.b16 %v2524
    %v2620 = vunpack.c.h.b16 %v2524
    %v2621 = vpack.c.b16 %v2561, %v2557
    %v2622 = vpack.c.b16 %v2562, %v2558
    %v2623 = vpack.c.b16 %v2563, %v2559
    %v2624 = vpack.c.b16 %v2564, %v2560
    %v2625 = vpack.c.b16 %v2569, %v2565
    %v2626 = vpack.c.b16 %v2570, %v2566
    %v2627 = vpack.c.b16 %v2571, %v2567
    %v2628 = vpack.c.b16 %v2572, %v2568
    %v2629 = vpack.c.b16 %v2577, %v2573
    %v2630 = vpack.c.b16 %v2578, %v2574
    %v2631 = vpack.c.b16 %v2579, %v2575
    %v2632 = vpack.c.b16 %v2580, %v2576
    %v2633 = vpack.c.b16 %v2585, %v2581
    %v2634 = vpack.c.b16 %v2586, %v2582
    %v2635 = vpack.c.b16 %v2587, %v2583
    %v2636 = vpack.c.b16 %v2588, %v2584
    %v2637 = vpack.c.b16 %v2593, %v2589
    %v2638 = vpack.c.b16 %v2594, %v2590
    %v2639 = vpack.c.b16 %v2595, %v2591
    %v2640 = vpack.c.b16 %v2596, %v2592
    %v2641 = vpack.c.b16 %v2601, %v2597
    %v2642 = vpack.c.b16 %v2602, %v2598
    %v2643 = vpack.c.b16 %v2603, %v2599
    %v2644 = vpack.c.b16 %v2604, %v2600
    %v2645 = vpack.c.b16 %v2609, %v2605
    %v2646 = vpack.c.b16 %v2610, %v2606
    %v2647 = vpack.c.b16 %v2611, %v2607
    %v2648 = vpack.c.b16 %v2612, %v2608
    %v2649 = vpack.c.b16 %v2617, %v2613
    %v2650 = vpack.c.b16 %v2618, %v2614
    %v2651 = vpack.c.b16 %v2619, %v2615
    %v2652 = vpack.c.b16 %v2620, %v2616
    %2685 = vmatpush.bf16.msra.mxu0 %v2649
    %2686 = vmatpush.bf16.msra.mxu0 %v2645
    %2687 = vmatpush.bf16.msra.mxu0 %v2641
    %2688 = vmatpush.bf16.msra.mxu0 %v2637
    %2689 = vmatpush.bf16.msra.mxu0 %v2633
    %2690 = vmatpush.bf16.msra.mxu0 %v2629
    %2691 = vmatpush.bf16.msra.mxu0 %v2625
    %2692 = vmatpush.bf16.msra.mxu0 %v2621
    %2693 = vmatmul.bf16.gmra.mxu0 %v2492
    %v2694 = vpop.f32.mrf.mxu0
    %v2695 = vadd.f32 0.0, %v2694
    %v2696 = vpop.f32.mrf.mxu0
    %2697 = vdwg.mxu0
    %2698 = vmatpush.bf16.msra.mxu0 %v2650
    %2699 = vmatpush.bf16.msra.mxu0 %v2646
    %2700 = vmatpush.bf16.msra.mxu0 %v2642
    %2701 = vmatpush.bf16.msra.mxu0 %v2638
    %2702 = vmatpush.bf16.msra.mxu0 %v2634
    %2703 = vmatpush.bf16.msra.mxu0 %v2630
    %2704 = vmatpush.bf16.msra.mxu0 %v2626
    %2705 = vmatpush.bf16.msra.mxu0 %v2622
    %2706 = vmatmul.bf16.gmra.mxu0 %v2492
    %v2707 = vpop.f32.mrf.mxu0
    %v2708 = vadd.f32 0.0, %v2707
    %v2709 = vpop.f32.mrf.mxu0
    %2710 = vdwg.mxu0
    %2711 = vmatpush.bf16.msra.mxu0 %v2651
    %2712 = vmatpush.bf16.msra.mxu0 %v2647
    %2713 = vmatpush.bf16.msra.mxu0 %v2643
    %2714 = vmatpush.bf16.msra.mxu0 %v2639
    %2715 = vmatpush.bf16.msra.mxu0 %v2635
    %2716 = vmatpush.bf16.msra.mxu0 %v2631
    %2717 = vmatpush.bf16.msra.mxu0 %v2627
    %2718 = vmatpush.bf16.msra.mxu0 %v2623
    %2719 = vmatmul.bf16.gmra.mxu0 %v2492
    %v2720 = vpop.f32.mrf.mxu0
    %v2721 = vadd.f32 0.0, %v2720
    %v2722 = vpop.f32.mrf.mxu0
    %2723 = vdwg.mxu0
    %2724 = vmatpush.bf16.msra.mxu0 %v2652
    %2725 = vmatpush.bf16.msra.mxu0 %v2648
    %2726 = vmatpush.bf16.msra.mxu0 %v2644
    %2727 = vmatpush.bf16.msra.mxu0 %v2640
    %2728 = vmatpush.bf16.msra.mxu0 %v2636
    %2729 = vmatpush.bf16.msra.mxu0 %v2632
    %2730 = vmatpush.bf16.msra.mxu0 %v2628
    %2731 = vmatpush.bf16.msra.mxu0 %v2624
    %2732 = vmatmul.bf16.gmra.mxu0 %v2492
    %v2733 = vpop.f32.mrf.mxu0
    %v2734 = vadd.f32 0.0, %v2733
    %v2735 = vpop.f32.mrf.mxu0
    %2736 = vdwg.mxu0
    %v2737 = vadd.f32 %v2488, %v2695
    %v2738 = vadd.f32 %v2489, %v2708
    %v2739 = vadd.f32 %v2490, %v2721
    %v2740 = vadd.f32 %v2491, %v2734
    %v2741 = vxor.u32 %v2737, 2147483648
    %v2742 = vmul.f32 %v2741, 1.442695
    %v2743 = vpow.pop %v2742
    %v2744 = vadd.f32 %v2743, 1.0
    %v2745 = vrcp.pop %v2744
    %v2746 = vmul.f32 %v2744, %v2745
    %v2747 = vsub.f32 1.0, %v2746
    %v2748 = vmul.f32 %v2745, %v2747
    %v2749 = vadd.f32 %v2745, %v2748
    %vm2750 = vweird.f32 %v2744
    %vm2751 = vweird.f32 %v2745
    %vm2752 = vmor %vm2750, %vm2751
    %v2753 = vsel %vm2752, %v2745, %v2749
    %v2754 = vand.u32 2147483647, %v2744
    %vm2755 = vcmp.eq.f32.partialorder %v2754, 8.507059e+37
    %v2756 = vand.u32 %v2744, 2147483648
    %v2757 = vor.u32 1.1754944e-38, %v2756
    %v2758 = vsel %vm2755, %v2757, %v2753
    %v2759 = vmul.f32 1.0, %v2758
    %v2760 = vxor.u32 %v2738, 2147483648
    %v2761 = vmul.f32 %v2760, 1.442695
    %v2762 = vpow.pop %v2761
    %v2763 = vadd.f32 %v2762, 1.0
    %v2764 = vrcp.pop %v2763
    %v2765 = vmul.f32 %v2763, %v2764
    %v2766 = vsub.f32 1.0, %v2765
    %v2767 = vmul.f32 %v2764, %v2766
    %v2768 = vadd.f32 %v2764, %v2767
    %vm2769 = vweird.f32 %v2763
    %vm2770 = vweird.f32 %v2764
    %vm2771 = vmor %vm2769, %vm2770
    %v2772 = vsel %vm2771, %v2764, %v2768
    %v2773 = vand.u32 2147483647, %v2763
    %vm2774 = vcmp.eq.f32.partialorder %v2773, 8.507059e+37
    %v2775 = vand.u32 %v2763, 2147483648
    %v2776 = vor.u32 1.1754944e-38, %v2775
    %v2777 = vsel %vm2774, %v2776, %v2772
    %v2778 = vmul.f32 1.0, %v2777
    %v2779 = vtanh.pop %v2739
    %v2780 = vxor.u32 %v2740, 2147483648
    %v2781 = vmul.f32 %v2780, 1.442695
    %v2782 = vpow.pop %v2781
    %v2783 = vadd.f32 %v2782, 1.0
    %v2784 = vrcp.pop %v2783
    %v2785 = vmul.f32 %v2783, %v2784
    %v2786 = vsub.f32 1.0, %v2785
    %v2787 = vmul.f32 %v2784, %v2786
    %v2788 = vadd.f32 %v2784, %v2787
    %vm2789 = vweird.f32 %v2783
    %vm2790 = vweird.f32 %v2784
    %vm2791 = vmor %vm2789, %vm2790
    %v2792 = vsel %vm2791, %v2784, %v2788
    %v2793 = vand.u32 2147483647, %v2783
    %vm2794 = vcmp.eq.f32.partialorder %v2793, 8.507059e+37
    %v2795 = vand.u32 %v2783, 2147483648
    %v2796 = vor.u32 1.1754944e-38, %v2795
    %v2797 = vsel %vm2794, %v2796, %v2792
    %v2798 = vmul.f32 1.0, %v2797
    %v2799 = vmul.f32 %v2778, %v2482
    %v2800 = vmul.f32 %v2759, %v2779
    %v2801 = vadd.f32 %v2799, %v2800
    %v2802 = vtanh.pop %v2801
    %v2803 = vmul.f32 %v2798, %v2802
    %s2804 = scalar_lea.vmem %s4, 56
    %2805 = vst [vmem:[%s2804] sm:$0xff] %v2803
    %2806 = vst [vmem:[#allocation3] sm:$0xff] %v2803
    %2807 = vst [vmem:[#allocation4] sm:$0xff] %v2801
    %2808 = vst [vmem:[%s5] sm:$0xff] %v2803
    %2809 = vst [vmem:[%s6] sm:$0xff] %v2801
  $region25: #{encoder_forward.1} parent=0 // pred_fallthru
    _
  // Predicated region
  $region26: #{encoder_forward.1} parent=0 // pred_check
    _
  $region27: #{encoder_forward.1} parent=0 // pred_check_branch
    %2811 = sbr.rel (0) target = $region29
  $region28: #{encoder_forward.1} parent=0 // pred_region
    _
  $region29: #{encoder_forward.1} parent=0 // pred_fallthru
    _
  // Predicated region
  $region30: #{encoder_forward.1} parent=0 // pred_check
    _
  $region31: #{encoder_forward.1} parent=0 // pred_check_branch
    %2813 = sbr.rel (0) target = $region33
  $region32: #{encoder_forward.1} parent=0 // pred_region
    _
  $region33: #{encoder_forward.1} parent=0 // pred_fallthru
    _
  // Predicated region
  $region34: #{encoder_forward.1} parent=0 // pred_check
    _
  $region35: #{encoder_forward.1} parent=0 // pred_check_branch
    %2815 = sbr.rel (0) target = $region37
  $region36: #{encoder_forward.1} parent=0 // pred_region
    _
  $region37: #{encoder_forward.1} parent=0 // pred_fallthru
    _
  // Predicated region
  $region38: #{encoder_forward.1} parent=0 // pred_check
    _
  $region39: #{encoder_forward.1} parent=0 // pred_check_branch
    %2817 = sbr.rel (0) target = $region41
  $region40: #{encoder_forward.1} parent=0 // pred_region
    _
  $region41: #{encoder_forward.1} parent=0 // pred_fallthru
    _
  // Predicated region
  $region42: #{encoder_forward.1} parent=0 // pred_check
    _
  $region43: #{encoder_forward.1} parent=0 // pred_check_branch
    %2819 = sbr.rel (0) target = $region45
  $region44: #{encoder_forward.1} parent=0 // pred_region
    _
  $region45: #{encoder_forward.1} parent=0 // pred_fallthru
    _
  // Predicated region
  $region46: #{encoder_forward.1} parent=0 // pred_check
    _
  $region47: #{encoder_forward.1} parent=0 // pred_check_branch
    %2821 = sbr.rel (0) target = $region49
  $region48: #{encoder_forward.1} parent=0 // pred_region
    _
  $region49: #{encoder_forward.1} parent=0 // pred_fallthru
    _

</llo_original>
